<compile_context>
chip_gen: v7x
topology: tpu7x:2x2x1
jax: 0.10.0
libtpu: 0.0.40
codegen_flags: <defaults>
</compile_context>

<pallas_src>
import numpy as np

import jax
import jax.numpy as jnp
from jax import lax
from jax.experimental import pallas as pl
from jax.experimental.pallas import tpu as pltpu

# Halo widths (in pixels, same for rows and cols) of the padded slabs.
_PX, _PC, _PA5, _PA7 = 1, 3, 6, 9    # x (3x3) / c (3x3,dw5,dw7 d=1) / dw5 d=3 / dw7 d=3


# --------------------------------------------------------------------------
# Host-side banded-weight construction (lane layout: lane = w*C + c)
# --------------------------------------------------------------------------
def _band_from_dense(w_flat, k, d, cin, cout, W, pw, wp):
    """Dense conv weight (k*k*cin, cout), tap-major HWIO -> (k, wp*cin, W*cout)
    banded matrices.  out_row[h] = sum_dy pad_row[h + (dy-ctr)*d] @ band[dy]."""
    w = w_flat.reshape(k, k, cin, cout)
    ctr = (k - 1) // 2
    wi, dxi, cii, coi = np.meshgrid(np.arange(W), np.arange(k), np.arange(cin),
                                    np.arange(cout), indexing="ij")
    rows = (wi + pw + (dxi - ctr) * d) * cin + cii
    cols = wi * cout + coi
    bands = [jnp.zeros((wp * cin, W * cout), jnp.float32)
             .at[rows, cols].set(w[dy][dxi, cii, coi]) for dy in range(k)]
    return jnp.stack(bands).astype(jnp.bfloat16)


def _band_from_dw(w_dw, k, d, C, W, pw, wp):
    """Depthwise weight (k*k, C) -> (k, wp*C, W*C) banded diagonal matrices."""
    w = w_dw.reshape(k, k, C)
    ctr = (k - 1) // 2
    wi, dxi, ci = np.meshgrid(np.arange(W), np.arange(k), np.arange(C), indexing="ij")
    rows = (wi + pw + (dxi - ctr) * d) * C + ci
    cols = wi * C + ci
    bands = [jnp.zeros((wp * C, W * C), jnp.float32)
             .at[rows, cols].set(w[dy][dxi, ci]) for dy in range(k)]
    return jnp.stack(bands).astype(jnp.bfloat16)


def _tile_vec(v, W):
    # per-channel vector (C,) -> per-lane row (1, W*C) for the (w,c)-packed layout
    return jnp.tile(v, W).reshape(1, -1).astype(jnp.float32)


# --------------------------------------------------------------------------
# Fused Pallas kernel
# --------------------------------------------------------------------------
def _make_fused_kernel(dim, H, W):
    C2 = dim // 2

    def silu(v):
        return v * jax.nn.sigmoid(v)

    def pad2(v, p, C):
        # (H, W*C) -> (H + 2p, (W + 2p)*C) with zero halos, built as a value
        # (single pass, no scratch zero-fill).
        zlr = jnp.zeros((H, p * C), v.dtype)
        rows = jnp.concatenate([zlr, v, zlr], axis=1)
        ztb = jnp.zeros((p, rows.shape[1]), v.dtype)
        return jnp.concatenate([ztb, rows, ztb], axis=0)

    def band_conv(pad_v, bw_ref, k, d, p):
        # conv = sum over kernel rows dy of one MXU matmul:
        #   out(H, W*Cout) += pad_v[rows(dy)] @ band[dy]
        # the banded weight (built host-side) folds dx taps, dilation and the
        # channel mixing / depthwise diagonal.  bf16 operands, f32 accumulation.
        ctr = (k - 1) // 2
        acc = None
        for dy in range(k):
            r0 = p + (dy - ctr) * d
            t = jnp.dot(pad_v[r0:r0 + H, :].astype(jnp.bfloat16), bw_ref[dy],
                        preferred_element_type=jnp.float32)
            acc = t if acc is None else acc + t
        return acc

    def kernel(x_ref,
               w33_ref, s33_ref, b33_ref,
               w31_ref, s31_ref, b31_ref,
               w5a_ref, b5a_ref, w5b_ref, b5b_ref, w5c_ref, b5c_ref,
               w7a_ref, b7a_ref, w7b_ref, b7b_ref, w7c_ref, b7c_ref,
               w11_ref, s11_ref, b11_ref,
               o_ref):
        x = x_ref[0].astype(jnp.float32)                       # (H, W*dim) lane-dense

        # ---- stage 1: c = SiLU(BN(conv_3x3(x)))  (dim -> dim//2) ------------
        xpad = pad2(x, _PX, dim)
        c = band_conv(xpad, w33_ref, 3, 1, _PX)                # (H, W*C2) f32
        c = silu(c * s33_ref[...] + b33_ref[...])
        cpad = pad2(c, _PC, C2)                                # shared by 3 branches

        # ---- stage 2a: x1 = SiLU(BN(conv_3x3_d1(c)))  (dim//2 -> dim) -------
        x1 = band_conv(cpad, w31_ref, 3, 1, _PC)               # (H, W*dim)
        x1 = silu(x1 * s31_ref[...] + b31_ref[...])

        # ---- stage 2b: x2 = DKA block (k=5): dw(d=1)->dw(d=3)->1x1, gate by c
        a = band_conv(cpad, w5a_ref, 5, 1, _PC) + b5a_ref[...]
        a = band_conv(pad2(a, _PA5, C2), w5b_ref, 5, 3, _PA5) + b5b_ref[...]
        attn = jnp.dot(a.astype(jnp.bfloat16), w5c_ref[...],
                       preferred_element_type=jnp.float32) + b5c_ref[...]
        x2 = attn * c                                          # c kept live (no re-read)

        # ---- stage 2c: x3 = DKA block (k=7) ---------------------------------
        a = band_conv(cpad, w7a_ref, 7, 1, _PC) + b7a_ref[...]
        a = band_conv(pad2(a, _PA7, C2), w7b_ref, 7, 3, _PA7) + b7b_ref[...]
        attn = jnp.dot(a.astype(jnp.bfloat16), w7c_ref[...],
                       preferred_element_type=jnp.float32) + b7c_ref[...]
        x3 = attn * c

        # ---- stage 3: one fused 1x1 over [x1|x2|x3], + residual -------------
        xc = jnp.concatenate([x1, x2, x3], axis=1).astype(jnp.bfloat16)  # (H, W*2dim)
        y = jnp.dot(xc, w11_ref[...], preferred_element_type=jnp.float32)
        y = silu(y * s11_ref[...] + b11_ref[...]) + x
        o_ref[0] = y.astype(o_ref.dtype)                        # lane-dense (16,128) store

    return kernel


# --------------------------------------------------------------------------
# Public wrapper (NCHW in / NCHW out)
# --------------------------------------------------------------------------
def mdka_conv_forward(x_nchw, params):
    N, dim, H, W = x_nchw.shape
    assert dim % 2 == 0
    C2 = dim // 2
    # Lane-dense layout: (N, H, W*dim), lane = w*dim + c.
    x = jnp.transpose(x_nchw, (0, 2, 3, 1)).reshape(N, H, W * dim)

    w33, s33, b33 = params["conv_3x3"]
    w31, s31, b31 = params["conv_3x3_d1"]
    d5, d7 = params["dka5"], params["dka7"]
    w11, s11, b11 = params["conv_1x1"]

    w33b = _band_from_dense(w33, 3, 1, dim, C2, W, _PX, W + 2 * _PX)
    w31b = _band_from_dense(w31, 3, 1, C2, dim, W, _PC, W + 2 * _PC)
    w5ab = _band_from_dw(d5["w0"], 5, 1, C2, W, _PC, W + 2 * _PC)
    w5bb = _band_from_dw(d5["w_sp"], 5, 3, C2, W, _PA5, W + 2 * _PA5)
    w5cb = _band_from_dense(d5["w1"], 1, 1, C2, C2, W, 0, W)[0]
    w7ab = _band_from_dw(d7["w0"], 7, 1, C2, W, _PC, W + 2 * _PC)
    w7bb = _band_from_dw(d7["w_sp"], 7, 3, C2, W, _PA7, W + 2 * _PA7)
    w7cb = _band_from_dense(d7["w1"], 1, 1, C2, C2, W, 0, W)[0]
    # Final 1x1 over [x1 | x2 | x3] lane blocks -> one (W*2dim, W*dim) matrix.
    w11b = jnp.concatenate([
        _band_from_dense(w11[0:dim], 1, 1, dim, dim, W, 0, W)[0],
        _band_from_dense(w11[dim:dim + C2], 1, 1, C2, dim, W, 0, W)[0],
        _band_from_dense(w11[dim + C2:2 * dim], 1, 1, C2, dim, W, 0, W)[0]], axis=0)

    args = [x,
            w33b, _tile_vec(s33, W), _tile_vec(b33, W),
            w31b, _tile_vec(s31, W), _tile_vec(b31, W),
            w5ab, _tile_vec(d5["b0"], W), w5bb, _tile_vec(d5["b_sp"], W),
            w5cb, _tile_vec(d5["b1"], W),
            w7ab, _tile_vec(d7["b0"], W), w7bb, _tile_vec(d7["b_sp"], W),
            w7cb, _tile_vec(d7["b1"], W),
            w11b, _tile_vec(s11, W), _tile_vec(b11, W)]

    def full_spec(a):
        nd = a.ndim
        return pl.BlockSpec(a.shape, lambda n, _nd=nd: (0,) * _nd)

    in_specs = ([pl.BlockSpec((1, H, W * dim), lambda n: (n, 0, 0))]
                + [full_spec(a) for a in args[1:]])

    out = pl.pallas_call(
        _make_fused_kernel(dim, H, W),
        out_shape=jax.ShapeDtypeStruct((N, H, W * dim), x.dtype),
        grid=(N,),
        in_specs=in_specs,
        out_specs=pl.BlockSpec((1, H, W * dim), lambda n: (n, 0, 0)),
        compiler_params=pltpu.CompilerParams(
            dimension_semantics=("parallel",)),
    )(*args)
    return jnp.transpose(out.reshape(N, H, W, dim), (0, 3, 1, 2))


# --------------------------------------------------------------------------
# Parameter init (deterministic, synthetic)
# --------------------------------------------------------------------------
def conv_bn_params(key, cin, cout, k):
    k1, k2, k3, k4, k5 = jax.random.split(key, 5)
    w = jax.random.normal(k1, (k * k * cin, cout), jnp.float32) / (k * cin ** 0.5)
    gamma = 1.0 + 0.1 * jax.random.normal(k2, (cout,), jnp.float32)
    beta = 0.1 * jax.random.normal(k3, (cout,), jnp.float32)
    mean = 0.1 * jax.random.normal(k4, (cout,), jnp.float32)
    var = jnp.abs(1.0 + 0.1 * jax.random.normal(k5, (cout,), jnp.float32))
    scale = gamma / jnp.sqrt(var + 1e-5)
    bias = beta - mean * scale
    return w, scale, bias


def dka_params(key, c, k):
    ks = jax.random.split(key, 6)
    return dict(
        w0=jax.random.normal(ks[0], (k * k, c), jnp.float32) / k,
        b0=0.1 * jax.random.normal(ks[1], (c,), jnp.float32),
        w_sp=jax.random.normal(ks[2], (k * k, c), jnp.float32) / k,
        b_sp=0.1 * jax.random.normal(ks[3], (c,), jnp.float32),
        w1=jax.random.normal(ks[4], (c, c), jnp.float32) / (c ** 0.5),
        b1=0.1 * jax.random.normal(ks[5], (c,), jnp.float32),
    )


def init_params(dim, key):
    ks = jax.random.split(key, 5)
    return {
        "conv_3x3": conv_bn_params(ks[0], dim, dim // 2, 3),
        "conv_3x3_d1": conv_bn_params(ks[1], dim // 2, dim, 3),
        "dka5": dka_params(ks[2], dim // 2, 5),
        "dka7": dka_params(ks[3], dim // 2, 7),
        "conv_1x1": conv_bn_params(ks[4], dim * 2, dim, 1),
    }


# --------------------------------------------------------------------------
# Pure-JAX reference (matches kernel numerics: bf16 MXU operands, f32 accum)
# --------------------------------------------------------------------------
def _ref_dense(x, w_flat, scale, bias, k, d, act, residual=None, res_mode=None):
    cin, cout = x.shape[-1], w_flat.shape[-1]
    pad = (d * (k - 1)) // 2
    w_hwio = w_flat.reshape(k, k, cin, cout).astype(jnp.bfloat16)
    y = lax.conv_general_dilated(
        x.astype(jnp.bfloat16), w_hwio, (1, 1), [(pad, pad), (pad, pad)],
        rhs_dilation=(d, d), dimension_numbers=("NHWC", "HWIO", "NHWC"),
        preferred_element_type=jnp.float32)
    if scale is not None:
        y = y * scale
    y = y + bias
    if act:
        y = y * jax.nn.sigmoid(y)
    if res_mode == "add":
        y = y + residual
    elif res_mode == "mul":
        y = y * residual
    return y


def _ref_dw(x, w, b, k, d):
    C = x.shape[-1]
    pad = (d * (k - 1)) // 2
    w_hwio = w.reshape(k, k, 1, C).astype(jnp.bfloat16)
    y = lax.conv_general_dilated(
        x.astype(jnp.bfloat16), w_hwio, (1, 1), [(pad, pad), (pad, pad)],
        rhs_dilation=(d, d), dimension_numbers=("NHWC", "HWIO", "NHWC"),
        feature_group_count=C, preferred_element_type=jnp.float32)
    return y + b


def ref_forward(x_nchw, params):
    x = jnp.transpose(x_nchw, (0, 2, 3, 1))
    c = _ref_dense(x, *params["conv_3x3"], 3, 1, True)
    x1 = _ref_dense(c, *params["conv_3x3_d1"], 3, 1, True)

    def ref_dka(u, p, k):
        a = _ref_dw(u, p["w0"], p["b0"], k, 1)
        a = _ref_dw(a, p["w_sp"], p["b_sp"], k, 3)
        return _ref_dense(a, p["w1"], None, p["b1"], 1, 1, False,
                          residual=u, res_mode="mul")

    x2 = ref_dka(c, params["dka5"], 5)
    x3 = ref_dka(c, params["dka7"], 7)
    xcat = jnp.concatenate([x1, x2, x3], axis=-1)
    out = _ref_dense(xcat, *params["conv_1x1"], 1, 1, True,
                     residual=x, res_mode="add")
    return jnp.transpose(out, (0, 3, 1, 2))


# --------------------------------------------------------------------------
if __name__ == "__main__":
    key = jax.random.PRNGKey(0)
    kx, kp = jax.random.split(key)

    dim, N, H, W = 8, 2, 16, 16
    x = jax.random.normal(kx, (N, dim, H, W), jnp.float32)      # NCHW, like PyTorch
    params = init_params(dim, kp)

    out = jax.block_until_ready(mdka_conv_forward(x, params))
    assert out.shape == (N, dim, H, W)

    ref = jax.block_until_ready(ref_forward(x, params))
    max_err = float(jnp.max(jnp.abs(out - ref)))
    # bf16 MXU operands with different summation orders (kernel vs XLA conv)
    # give small boundary-rounding differences; 2e-2 still catches any real
    # layout / index bug (those are O(1) errors).
    if not bool(jnp.allclose(out, ref, atol=2e-2, rtol=2e-2)):
        raise AssertionError(f"Pallas output mismatch vs reference, max_abs_err={max_err}")

    print("KERNEL_OK")
</pallas_src>

<mosaic_0001>
module attributes {stable_mosaic.version = 11 : i64} {
  func.func @kernel(%arg0: i32, %arg1: memref<1x16x128xf32, #tpu.memory_space<vmem>>, %arg2: memref<3x144x64xbf16, #tpu.memory_space<vmem>>, %arg3: memref<1x64xf32, #tpu.memory_space<vmem>>, %arg4: memref<1x64xf32, #tpu.memory_space<vmem>>, %arg5: memref<3x88x128xbf16, #tpu.memory_space<vmem>>, %arg6: memref<1x128xf32, #tpu.memory_space<vmem>>, %arg7: memref<1x128xf32, #tpu.memory_space<vmem>>, %arg8: memref<5x88x64xbf16, #tpu.memory_space<vmem>>, %arg9: memref<1x64xf32, #tpu.memory_space<vmem>>, %arg10: memref<5x112x64xbf16, #tpu.memory_space<vmem>>, %arg11: memref<1x64xf32, #tpu.memory_space<vmem>>, %arg12: memref<64x64xbf16, #tpu.memory_space<vmem>>, %arg13: memref<1x64xf32, #tpu.memory_space<vmem>>, %arg14: memref<7x88x64xbf16, #tpu.memory_space<vmem>>, %arg15: memref<1x64xf32, #tpu.memory_space<vmem>>, %arg16: memref<7x136x64xbf16, #tpu.memory_space<vmem>>, %arg17: memref<1x64xf32, #tpu.memory_space<vmem>>, %arg18: memref<64x64xbf16, #tpu.memory_space<vmem>>, %arg19: memref<1x64xf32, #tpu.memory_space<vmem>>, %arg20: memref<256x128xbf16, #tpu.memory_space<vmem>>, %arg21: memref<1x128xf32, #tpu.memory_space<vmem>>, %arg22: memref<1x128xf32, #tpu.memory_space<vmem>>, %arg23: memref<1x16x128xf32, #tpu.memory_space<vmem>>) attributes {dimension_semantics = [#tpu.dimension_semantics<parallel>], iteration_bounds = array<i64: 2>, scalar_prefetch = 0 : i64, scratch_operands = 0 : i64, tpu.core_type = #tpu.core_type<tc>, window_params = [{transform_indices = @transform_0, window_bounds = array<i64: 1, 16, 128>}, {pipeline_mode = #tpu.pipeline_mode<synchronous>, transform_indices = @transform_1, window_bounds = array<i64: 3, 144, 64>}, {pipeline_mode = #tpu.pipeline_mode<synchronous>, transform_indices = @transform_2, window_bounds = array<i64: 1, 64>}, {pipeline_mode = #tpu.pipeline_mode<synchronous>, transform_indices = @transform_3, window_bounds = array<i64: 1, 64>}, {pipeline_mode = #tpu.pipeline_mode<synchronous>, transform_indices = @transform_4, window_bounds = array<i64: 3, 88, 128>}, {pipeline_mode = #tpu.pipeline_mode<synchronous>, transform_indices = @transform_5, window_bounds = array<i64: 1, 128>}, {pipeline_mode = #tpu.pipeline_mode<synchronous>, transform_indices = @transform_6, window_bounds = array<i64: 1, 128>}, {pipeline_mode = #tpu.pipeline_mode<synchronous>, transform_indices = @transform_7, window_bounds = array<i64: 5, 88, 64>}, {pipeline_mode = #tpu.pipeline_mode<synchronous>, transform_indices = @transform_8, window_bounds = array<i64: 1, 64>}, {pipeline_mode = #tpu.pipeline_mode<synchronous>, transform_indices = @transform_9, window_bounds = array<i64: 5, 112, 64>}, {pipeline_mode = #tpu.pipeline_mode<synchronous>, transform_indices = @transform_10, window_bounds = array<i64: 1, 64>}, {pipeline_mode = #tpu.pipeline_mode<synchronous>, transform_indices = @transform_11, window_bounds = array<i64: 64, 64>}, {pipeline_mode = #tpu.pipeline_mode<synchronous>, transform_indices = @transform_12, window_bounds = array<i64: 1, 64>}, {pipeline_mode = #tpu.pipeline_mode<synchronous>, transform_indices = @transform_13, window_bounds = array<i64: 7, 88, 64>}, {pipeline_mode = #tpu.pipeline_mode<synchronous>, transform_indices = @transform_14, window_bounds = array<i64: 1, 64>}, {pipeline_mode = #tpu.pipeline_mode<synchronous>, transform_indices = @transform_15, window_bounds = array<i64: 7, 136, 64>}, {pipeline_mode = #tpu.pipeline_mode<synchronous>, transform_indices = @transform_16, window_bounds = array<i64: 1, 64>}, {pipeline_mode = #tpu.pipeline_mode<synchronous>, transform_indices = @transform_17, window_bounds = array<i64: 64, 64>}, {pipeline_mode = #tpu.pipeline_mode<synchronous>, transform_indices = @transform_18, window_bounds = array<i64: 1, 64>}, {pipeline_mode = #tpu.pipeline_mode<synchronous>, transform_indices = @transform_19, window_bounds = array<i64: 256, 128>}, {pipeline_mode = #tpu.pipeline_mode<synchronous>, transform_indices = @transform_20, window_bounds = array<i64: 1, 128>}, {pipeline_mode = #tpu.pipeline_mode<synchronous>, transform_indices = @transform_21, window_bounds = array<i64: 1, 128>}, {transform_indices = @transform_22, window_bounds = array<i64: 1, 16, 128>}]} {
    %c0 = arith.constant 0 : index
    %c0_0 = arith.constant 0 : index
    %c0_1 = arith.constant 0 : index
    %0 = vector.load %arg1[%c0, %c0_0, %c0_1] : memref<1x16x128xf32, #tpu.memory_space<vmem>>, vector<1x16x128xf32>
    %1 = vector.shape_cast %0 : vector<1x16x128xf32> to vector<16x128xf32>
    %cst = arith.constant 0.000000e+00 : f32
    %2 = vector.broadcast %cst : f32 to vector<16x8xf32>
    %3 = tpu.concatenate %2, %1, %2 in 1 : vector<16x8xf32>, vector<16x128xf32>, vector<16x8xf32> -> vector<16x144xf32>
    %cst_2 = arith.constant 0.000000e+00 : f32
    %4 = vector.broadcast %cst_2 : f32 to vector<1x144xf32>
    %5 = tpu.concatenate %4, %3, %4 in 0 : vector<1x144xf32>, vector<16x144xf32>, vector<1x144xf32> -> vector<18x144xf32>
    %6 = vector.extract_strided_slice %5 {offsets = [0, 0], sizes = [16, 144], strides = [1, 1]} : vector<18x144xf32> to vector<16x144xf32>
    %7 = arith.truncf %6 : vector<16x144xf32> to vector<16x144xbf16>
    %c0_3 = arith.constant 0 : index
    %c0_4 = arith.constant 0 : index
    %c0_5 = arith.constant 0 : index
    %8 = vector.load %arg2[%c0_3, %c0_4, %c0_5] : memref<3x144x64xbf16, #tpu.memory_space<vmem>>, vector<1x144x64xbf16>
    %9 = vector.shape_cast %8 : vector<1x144x64xbf16> to vector<144x64xbf16>
    %cst_6 = arith.constant dense<0.000000e+00> : vector<16x64xf32>
    %10 = tpu.matmul %7, %9, %cst_6 {dimension_numbers = #tpu.dot_dimension_numbers<[1], [0], [0], [1], [0, 0, 1, 1], [], []>} : vector<16x144xbf16>, vector<144x64xbf16>, vector<16x64xf32> -> vector<16x64xf32>
    %11 = vector.extract_strided_slice %5 {offsets = [1, 0], sizes = [16, 144], strides = [1, 1]} : vector<18x144xf32> to vector<16x144xf32>
    %12 = arith.truncf %11 : vector<16x144xf32> to vector<16x144xbf16>
    %c1 = arith.constant 1 : index
    %c0_7 = arith.constant 0 : index
    %c0_8 = arith.constant 0 : index
    %13 = vector.load %arg2[%c1, %c0_7, %c0_8] : memref<3x144x64xbf16, #tpu.memory_space<vmem>>, vector<1x144x64xbf16>
    %14 = vector.shape_cast %13 : vector<1x144x64xbf16> to vector<144x64xbf16>
    %cst_9 = arith.constant dense<0.000000e+00> : vector<16x64xf32>
    %15 = tpu.matmul %12, %14, %cst_9 {dimension_numbers = #tpu.dot_dimension_numbers<[1], [0], [0], [1], [0, 0, 1, 1], [], []>} : vector<16x144xbf16>, vector<144x64xbf16>, vector<16x64xf32> -> vector<16x64xf32>
    %16 = arith.addf %10, %15 : vector<16x64xf32>
    %17 = vector.extract_strided_slice %5 {offsets = [2, 0], sizes = [16, 144], strides = [1, 1]} : vector<18x144xf32> to vector<16x144xf32>
    %18 = arith.truncf %17 : vector<16x144xf32> to vector<16x144xbf16>
    %c2 = arith.constant 2 : index
    %c0_10 = arith.constant 0 : index
    %c0_11 = arith.constant 0 : index
    %19 = vector.load %arg2[%c2, %c0_10, %c0_11] : memref<3x144x64xbf16, #tpu.memory_space<vmem>>, vector<1x144x64xbf16>
    %20 = vector.shape_cast %19 : vector<1x144x64xbf16> to vector<144x64xbf16>
    %cst_12 = arith.constant dense<0.000000e+00> : vector<16x64xf32>
    %21 = tpu.matmul %18, %20, %cst_12 {dimension_numbers = #tpu.dot_dimension_numbers<[1], [0], [0], [1], [0, 0, 1, 1], [], []>} : vector<16x144xbf16>, vector<144x64xbf16>, vector<16x64xf32> -> vector<16x64xf32>
    %22 = arith.addf %16, %21 : vector<16x64xf32>
    %c0_13 = arith.constant 0 : index
    %c0_14 = arith.constant 0 : index
    %23 = vector.load %arg3[%c0_13, %c0_14] : memref<1x64xf32, #tpu.memory_space<vmem>>, vector<1x64xf32>
    %24 = vector.broadcast %23 : vector<1x64xf32> to vector<16x64xf32>
    %25 = arith.mulf %22, %24 : vector<16x64xf32>
    %c0_15 = arith.constant 0 : index
    %c0_16 = arith.constant 0 : index
    %26 = vector.load %arg4[%c0_15, %c0_16] : memref<1x64xf32, #tpu.memory_space<vmem>>, vector<1x64xf32>
    %27 = vector.broadcast %26 : vector<1x64xf32> to vector<16x64xf32>
    %28 = arith.addf %25, %27 : vector<16x64xf32>
    %29 = arith.negf %28 : vector<16x64xf32>
    %30 = math.exp %29 : vector<16x64xf32>
    %cst_17 = arith.constant 1.000000e+00 : f32
    %31 = vector.broadcast %cst_17 : f32 to vector<16x64xf32>
    %32 = arith.addf %31, %30 : vector<16x64xf32>
    %33 = arith.divf %31, %32 : vector<16x64xf32>
    %34 = arith.mulf %28, %33 : vector<16x64xf32>
    %cst_18 = arith.constant 0.000000e+00 : f32
    %35 = vector.broadcast %cst_18 : f32 to vector<16x12xf32>
    %36 = tpu.concatenate %35, %34, %35 in 1 : vector<16x12xf32>, vector<16x64xf32>, vector<16x12xf32> -> vector<16x88xf32>
    %cst_19 = arith.constant 0.000000e+00 : f32
    %37 = vector.broadcast %cst_19 : f32 to vector<3x88xf32>
    %38 = tpu.concatenate %37, %36, %37 in 0 : vector<3x88xf32>, vector<16x88xf32>, vector<3x88xf32> -> vector<22x88xf32>
    %39 = vector.extract_strided_slice %38 {offsets = [2, 0], sizes = [16, 88], strides = [1, 1]} : vector<22x88xf32> to vector<16x88xf32>
    %40 = arith.truncf %39 : vector<16x88xf32> to vector<16x88xbf16>
    %c0_20 = arith.constant 0 : index
    %c0_21 = arith.constant 0 : index
    %c0_22 = arith.constant 0 : index
    %41 = vector.load %arg5[%c0_20, %c0_21, %c0_22] : memref<3x88x128xbf16, #tpu.memory_space<vmem>>, vector<1x88x128xbf16>
    %42 = vector.shape_cast %41 : vector<1x88x128xbf16> to vector<88x128xbf16>
    %cst_23 = arith.constant dense<0.000000e+00> : vector<16x128xf32>
    %43 = tpu.matmul %40, %42, %cst_23 {dimension_numbers = #tpu.dot_dimension_numbers<[1], [0], [0], [1], [0, 0, 1, 1], [], []>} : vector<16x88xbf16>, vector<88x128xbf16>, vector<16x128xf32> -> vector<16x128xf32>
    %44 = vector.extract_strided_slice %38 {offsets = [3, 0], sizes = [16, 88], strides = [1, 1]} : vector<22x88xf32> to vector<16x88xf32>
    %45 = arith.truncf %44 : vector<16x88xf32> to vector<16x88xbf16>
    %c1_24 = arith.constant 1 : index
    %c0_25 = arith.constant 0 : index
    %c0_26 = arith.constant 0 : index
    %46 = vector.load %arg5[%c1_24, %c0_25, %c0_26] : memref<3x88x128xbf16, #tpu.memory_space<vmem>>, vector<1x88x128xbf16>
    %47 = vector.shape_cast %46 : vector<1x88x128xbf16> to vector<88x128xbf16>
    %cst_27 = arith.constant dense<0.000000e+00> : vector<16x128xf32>
    %48 = tpu.matmul %45, %47, %cst_27 {dimension_numbers = #tpu.dot_dimension_numbers<[1], [0], [0], [1], [0, 0, 1, 1], [], []>} : vector<16x88xbf16>, vector<88x128xbf16>, vector<16x128xf32> -> vector<16x128xf32>
    %49 = arith.addf %43, %48 : vector<16x128xf32>
    %50 = vector.extract_strided_slice %38 {offsets = [4, 0], sizes = [16, 88], strides = [1, 1]} : vector<22x88xf32> to vector<16x88xf32>
    %51 = arith.truncf %50 : vector<16x88xf32> to vector<16x88xbf16>
    %c2_28 = arith.constant 2 : index
    %c0_29 = arith.constant 0 : index
    %c0_30 = arith.constant 0 : index
    %52 = vector.load %arg5[%c2_28, %c0_29, %c0_30] : memref<3x88x128xbf16, #tpu.memory_space<vmem>>, vector<1x88x128xbf16>
    %53 = vector.shape_cast %52 : vector<1x88x128xbf16> to vector<88x128xbf16>
    %cst_31 = arith.constant dense<0.000000e+00> : vector<16x128xf32>
    %54 = tpu.matmul %51, %53, %cst_31 {dimension_numbers = #tpu.dot_dimension_numbers<[1], [0], [0], [1], [0, 0, 1, 1], [], []>} : vector<16x88xbf16>, vector<88x128xbf16>, vector<16x128xf32> -> vector<16x128xf32>
    %55 = arith.addf %49, %54 : vector<16x128xf32>
    %c0_32 = arith.constant 0 : index
    %c0_33 = arith.constant 0 : index
    %56 = vector.load %arg6[%c0_32, %c0_33] : memref<1x128xf32, #tpu.memory_space<vmem>>, vector<1x128xf32>
    %57 = vector.broadcast %56 : vector<1x128xf32> to vector<16x128xf32>
    %58 = arith.mulf %55, %57 : vector<16x128xf32>
    %c0_34 = arith.constant 0 : index
    %c0_35 = arith.constant 0 : index
    %59 = vector.load %arg7[%c0_34, %c0_35] : memref<1x128xf32, #tpu.memory_space<vmem>>, vector<1x128xf32>
    %60 = vector.broadcast %59 : vector<1x128xf32> to vector<16x128xf32>
    %61 = arith.addf %58, %60 : vector<16x128xf32>
    %62 = arith.negf %61 : vector<16x128xf32>
    %63 = math.exp %62 : vector<16x128xf32>
    %cst_36 = arith.constant 1.000000e+00 : f32
    %64 = vector.broadcast %cst_36 : f32 to vector<16x128xf32>
    %65 = arith.addf %64, %63 : vector<16x128xf32>
    %66 = arith.divf %64, %65 : vector<16x128xf32>
    %67 = arith.mulf %61, %66 : vector<16x128xf32>
    %68 = vector.extract_strided_slice %38 {offsets = [1, 0], sizes = [16, 88], strides = [1, 1]} : vector<22x88xf32> to vector<16x88xf32>
    %69 = arith.truncf %68 : vector<16x88xf32> to vector<16x88xbf16>
    %c0_37 = arith.constant 0 : index
    %c0_38 = arith.constant 0 : index
    %c0_39 = arith.constant 0 : index
    %70 = vector.load %arg8[%c0_37, %c0_38, %c0_39] : memref<5x88x64xbf16, #tpu.memory_space<vmem>>, vector<1x88x64xbf16>
    %71 = vector.shape_cast %70 : vector<1x88x64xbf16> to vector<88x64xbf16>
    %cst_40 = arith.constant dense<0.000000e+00> : vector<16x64xf32>
    %72 = tpu.matmul %69, %71, %cst_40 {dimension_numbers = #tpu.dot_dimension_numbers<[1], [0], [0], [1], [0, 0, 1, 1], [], []>} : vector<16x88xbf16>, vector<88x64xbf16>, vector<16x64xf32> -> vector<16x64xf32>
    %73 = vector.extract_strided_slice %38 {offsets = [2, 0], sizes = [16, 88], strides = [1, 1]} : vector<22x88xf32> to vector<16x88xf32>
    %74 = arith.truncf %73 : vector<16x88xf32> to vector<16x88xbf16>
    %c1_41 = arith.constant 1 : index
    %c0_42 = arith.constant 0 : index
    %c0_43 = arith.constant 0 : index
    %75 = vector.load %arg8[%c1_41, %c0_42, %c0_43] : memref<5x88x64xbf16, #tpu.memory_space<vmem>>, vector<1x88x64xbf16>
    %76 = vector.shape_cast %75 : vector<1x88x64xbf16> to vector<88x64xbf16>
    %cst_44 = arith.constant dense<0.000000e+00> : vector<16x64xf32>
    %77 = tpu.matmul %74, %76, %cst_44 {dimension_numbers = #tpu.dot_dimension_numbers<[1], [0], [0], [1], [0, 0, 1, 1], [], []>} : vector<16x88xbf16>, vector<88x64xbf16>, vector<16x64xf32> -> vector<16x64xf32>
    %78 = arith.addf %72, %77 : vector<16x64xf32>
    %79 = vector.extract_strided_slice %38 {offsets = [3, 0], sizes = [16, 88], strides = [1, 1]} : vector<22x88xf32> to vector<16x88xf32>
    %80 = arith.truncf %79 : vector<16x88xf32> to vector<16x88xbf16>
    %c2_45 = arith.constant 2 : index
    %c0_46 = arith.constant 0 : index
    %c0_47 = arith.constant 0 : index
    %81 = vector.load %arg8[%c2_45, %c0_46, %c0_47] : memref<5x88x64xbf16, #tpu.memory_space<vmem>>, vector<1x88x64xbf16>
    %82 = vector.shape_cast %81 : vector<1x88x64xbf16> to vector<88x64xbf16>
    %cst_48 = arith.constant dense<0.000000e+00> : vector<16x64xf32>
    %83 = tpu.matmul %80, %82, %cst_48 {dimension_numbers = #tpu.dot_dimension_numbers<[1], [0], [0], [1], [0, 0, 1, 1], [], []>} : vector<16x88xbf16>, vector<88x64xbf16>, vector<16x64xf32> -> vector<16x64xf32>
    %84 = arith.addf %78, %83 : vector<16x64xf32>
    %85 = vector.extract_strided_slice %38 {offsets = [4, 0], sizes = [16, 88], strides = [1, 1]} : vector<22x88xf32> to vector<16x88xf32>
    %86 = arith.truncf %85 : vector<16x88xf32> to vector<16x88xbf16>
    %c3 = arith.constant 3 : index
    %c0_49 = arith.constant 0 : index
    %c0_50 = arith.constant 0 : index
    %87 = vector.load %arg8[%c3, %c0_49, %c0_50] : memref<5x88x64xbf16, #tpu.memory_space<vmem>>, vector<1x88x64xbf16>
    %88 = vector.shape_cast %87 : vector<1x88x64xbf16> to vector<88x64xbf16>
    %cst_51 = arith.constant dense<0.000000e+00> : vector<16x64xf32>
    %89 = tpu.matmul %86, %88, %cst_51 {dimension_numbers = #tpu.dot_dimension_numbers<[1], [0], [0], [1], [0, 0, 1, 1], [], []>} : vector<16x88xbf16>, vector<88x64xbf16>, vector<16x64xf32> -> vector<16x64xf32>
    %90 = arith.addf %84, %89 : vector<16x64xf32>
    %91 = vector.extract_strided_slice %38 {offsets = [5, 0], sizes = [16, 88], strides = [1, 1]} : vector<22x88xf32> to vector<16x88xf32>
    %92 = arith.truncf %91 : vector<16x88xf32> to vector<16x88xbf16>
    %c4 = arith.constant 4 : index
    %c0_52 = arith.constant 0 : index
    %c0_53 = arith.constant 0 : index
    %93 = vector.load %arg8[%c4, %c0_52, %c0_53] : memref<5x88x64xbf16, #tpu.memory_space<vmem>>, vector<1x88x64xbf16>
    %94 = vector.shape_cast %93 : vector<1x88x64xbf16> to vector<88x64xbf16>
    %cst_54 = arith.constant dense<0.000000e+00> : vector<16x64xf32>
    %95 = tpu.matmul %92, %94, %cst_54 {dimension_numbers = #tpu.dot_dimension_numbers<[1], [0], [0], [1], [0, 0, 1, 1], [], []>} : vector<16x88xbf16>, vector<88x64xbf16>, vector<16x64xf32> -> vector<16x64xf32>
    %96 = arith.addf %90, %95 : vector<16x64xf32>
    %c0_55 = arith.constant 0 : index
    %c0_56 = arith.constant 0 : index
    %97 = vector.load %arg9[%c0_55, %c0_56] : memref<1x64xf32, #tpu.memory_space<vmem>>, vector<1x64xf32>
    %98 = vector.broadcast %97 : vector<1x64xf32> to vector<16x64xf32>
    %99 = arith.addf %96, %98 : vector<16x64xf32>
    %cst_57 = arith.constant 0.000000e+00 : f32
    %100 = vector.broadcast %cst_57 : f32 to vector<16x24xf32>
    %101 = tpu.concatenate %100, %99, %100 in 1 : vector<16x24xf32>, vector<16x64xf32>, vector<16x24xf32> -> vector<16x112xf32>
    %cst_58 = arith.constant 0.000000e+00 : f32
    %102 = vector.broadcast %cst_58 : f32 to vector<6x112xf32>
    %103 = tpu.concatenate %102, %101, %102 in 0 : vector<6x112xf32>, vector<16x112xf32>, vector<6x112xf32> -> vector<28x112xf32>
    %104 = vector.extract_strided_slice %103 {offsets = [0, 0], sizes = [16, 112], strides = [1, 1]} : vector<28x112xf32> to vector<16x112xf32>
    %105 = arith.truncf %104 : vector<16x112xf32> to vector<16x112xbf16>
    %c0_59 = arith.constant 0 : index
    %c0_60 = arith.constant 0 : index
    %c0_61 = arith.constant 0 : index
    %106 = vector.load %arg10[%c0_59, %c0_60, %c0_61] : memref<5x112x64xbf16, #tpu.memory_space<vmem>>, vector<1x112x64xbf16>
    %107 = vector.shape_cast %106 : vector<1x112x64xbf16> to vector<112x64xbf16>
    %cst_62 = arith.constant dense<0.000000e+00> : vector<16x64xf32>
    %108 = tpu.matmul %105, %107, %cst_62 {dimension_numbers = #tpu.dot_dimension_numbers<[1], [0], [0], [1], [0, 0, 1, 1], [], []>} : vector<16x112xbf16>, vector<112x64xbf16>, vector<16x64xf32> -> vector<16x64xf32>
    %109 = vector.extract_strided_slice %103 {offsets = [3, 0], sizes = [16, 112], strides = [1, 1]} : vector<28x112xf32> to vector<16x112xf32>
    %110 = arith.truncf %109 : vector<16x112xf32> to vector<16x112xbf16>
    %c1_63 = arith.constant 1 : index
    %c0_64 = arith.constant 0 : index
    %c0_65 = arith.constant 0 : index
    %111 = vector.load %arg10[%c1_63, %c0_64, %c0_65] : memref<5x112x64xbf16, #tpu.memory_space<vmem>>, vector<1x112x64xbf16>
    %112 = vector.shape_cast %111 : vector<1x112x64xbf16> to vector<112x64xbf16>
    %cst_66 = arith.constant dense<0.000000e+00> : vector<16x64xf32>
    %113 = tpu.matmul %110, %112, %cst_66 {dimension_numbers = #tpu.dot_dimension_numbers<[1], [0], [0], [1], [0, 0, 1, 1], [], []>} : vector<16x112xbf16>, vector<112x64xbf16>, vector<16x64xf32> -> vector<16x64xf32>
    %114 = arith.addf %108, %113 : vector<16x64xf32>
    %115 = vector.extract_strided_slice %103 {offsets = [6, 0], sizes = [16, 112], strides = [1, 1]} : vector<28x112xf32> to vector<16x112xf32>
    %116 = arith.truncf %115 : vector<16x112xf32> to vector<16x112xbf16>
    %c2_67 = arith.constant 2 : index
    %c0_68 = arith.constant 0 : index
    %c0_69 = arith.constant 0 : index
    %117 = vector.load %arg10[%c2_67, %c0_68, %c0_69] : memref<5x112x64xbf16, #tpu.memory_space<vmem>>, vector<1x112x64xbf16>
    %118 = vector.shape_cast %117 : vector<1x112x64xbf16> to vector<112x64xbf16>
    %cst_70 = arith.constant dense<0.000000e+00> : vector<16x64xf32>
    %119 = tpu.matmul %116, %118, %cst_70 {dimension_numbers = #tpu.dot_dimension_numbers<[1], [0], [0], [1], [0, 0, 1, 1], [], []>} : vector<16x112xbf16>, vector<112x64xbf16>, vector<16x64xf32> -> vector<16x64xf32>
    %120 = arith.addf %114, %119 : vector<16x64xf32>
    %121 = vector.extract_strided_slice %103 {offsets = [9, 0], sizes = [16, 112], strides = [1, 1]} : vector<28x112xf32> to vector<16x112xf32>
    %122 = arith.truncf %121 : vector<16x112xf32> to vector<16x112xbf16>
    %c3_71 = arith.constant 3 : index
    %c0_72 = arith.constant 0 : index
    %c0_73 = arith.constant 0 : index
    %123 = vector.load %arg10[%c3_71, %c0_72, %c0_73] : memref<5x112x64xbf16, #tpu.memory_space<vmem>>, vector<1x112x64xbf16>
    %124 = vector.shape_cast %123 : vector<1x112x64xbf16> to vector<112x64xbf16>
    %cst_74 = arith.constant dense<0.000000e+00> : vector<16x64xf32>
    %125 = tpu.matmul %122, %124, %cst_74 {dimension_numbers = #tpu.dot_dimension_numbers<[1], [0], [0], [1], [0, 0, 1, 1], [], []>} : vector<16x112xbf16>, vector<112x64xbf16>, vector<16x64xf32> -> vector<16x64xf32>
    %126 = arith.addf %120, %125 : vector<16x64xf32>
    %127 = vector.extract_strided_slice %103 {offsets = [12, 0], sizes = [16, 112], strides = [1, 1]} : vector<28x112xf32> to vector<16x112xf32>
    %128 = arith.truncf %127 : vector<16x112xf32> to vector<16x112xbf16>
    %c4_75 = arith.constant 4 : index
    %c0_76 = arith.constant 0 : index
    %c0_77 = arith.constant 0 : index
    %129 = vector.load %arg10[%c4_75, %c0_76, %c0_77] : memref<5x112x64xbf16, #tpu.memory_space<vmem>>, vector<1x112x64xbf16>
    %130 = vector.shape_cast %129 : vector<1x112x64xbf16> to vector<112x64xbf16>
    %cst_78 = arith.constant dense<0.000000e+00> : vector<16x64xf32>
    %131 = tpu.matmul %128, %130, %cst_78 {dimension_numbers = #tpu.dot_dimension_numbers<[1], [0], [0], [1], [0, 0, 1, 1], [], []>} : vector<16x112xbf16>, vector<112x64xbf16>, vector<16x64xf32> -> vector<16x64xf32>
    %132 = arith.addf %126, %131 : vector<16x64xf32>
    %c0_79 = arith.constant 0 : index
    %c0_80 = arith.constant 0 : index
    %133 = vector.load %arg11[%c0_79, %c0_80] : memref<1x64xf32, #tpu.memory_space<vmem>>, vector<1x64xf32>
    %134 = vector.broadcast %133 : vector<1x64xf32> to vector<16x64xf32>
    %135 = arith.addf %132, %134 : vector<16x64xf32>
    %136 = arith.truncf %135 : vector<16x64xf32> to vector<16x64xbf16>
    %c0_81 = arith.constant 0 : index
    %c0_82 = arith.constant 0 : index
    %137 = vector.load %arg12[%c0_81, %c0_82] : memref<64x64xbf16, #tpu.memory_space<vmem>>, vector<64x64xbf16>
    %cst_83 = arith.constant dense<0.000000e+00> : vector<16x64xf32>
    %138 = tpu.matmul %136, %137, %cst_83 {dimension_numbers = #tpu.dot_dimension_numbers<[1], [0], [0], [1], [0, 0, 1, 1], [], []>} : vector<16x64xbf16>, vector<64x64xbf16>, vector<16x64xf32> -> vector<16x64xf32>
    %c0_84 = arith.constant 0 : index
    %c0_85 = arith.constant 0 : index
    %139 = vector.load %arg13[%c0_84, %c0_85] : memref<1x64xf32, #tpu.memory_space<vmem>>, vector<1x64xf32>
    %140 = vector.broadcast %139 : vector<1x64xf32> to vector<16x64xf32>
    %141 = arith.addf %138, %140 : vector<16x64xf32>
    %142 = arith.mulf %141, %34 : vector<16x64xf32>
    %143 = vector.extract_strided_slice %38 {offsets = [0, 0], sizes = [16, 88], strides = [1, 1]} : vector<22x88xf32> to vector<16x88xf32>
    %144 = arith.truncf %143 : vector<16x88xf32> to vector<16x88xbf16>
    %c0_86 = arith.constant 0 : index
    %c0_87 = arith.constant 0 : index
    %c0_88 = arith.constant 0 : index
    %145 = vector.load %arg14[%c0_86, %c0_87, %c0_88] : memref<7x88x64xbf16, #tpu.memory_space<vmem>>, vector<1x88x64xbf16>
    %146 = vector.shape_cast %145 : vector<1x88x64xbf16> to vector<88x64xbf16>
    %cst_89 = arith.constant dense<0.000000e+00> : vector<16x64xf32>
    %147 = tpu.matmul %144, %146, %cst_89 {dimension_numbers = #tpu.dot_dimension_numbers<[1], [0], [0], [1], [0, 0, 1, 1], [], []>} : vector<16x88xbf16>, vector<88x64xbf16>, vector<16x64xf32> -> vector<16x64xf32>
    %148 = vector.extract_strided_slice %38 {offsets = [1, 0], sizes = [16, 88], strides = [1, 1]} : vector<22x88xf32> to vector<16x88xf32>
    %149 = arith.truncf %148 : vector<16x88xf32> to vector<16x88xbf16>
    %c1_90 = arith.constant 1 : index
    %c0_91 = arith.constant 0 : index
    %c0_92 = arith.constant 0 : index
    %150 = vector.load %arg14[%c1_90, %c0_91, %c0_92] : memref<7x88x64xbf16, #tpu.memory_space<vmem>>, vector<1x88x64xbf16>
    %151 = vector.shape_cast %150 : vector<1x88x64xbf16> to vector<88x64xbf16>
    %cst_93 = arith.constant dense<0.000000e+00> : vector<16x64xf32>
    %152 = tpu.matmul %149, %151, %cst_93 {dimension_numbers = #tpu.dot_dimension_numbers<[1], [0], [0], [1], [0, 0, 1, 1], [], []>} : vector<16x88xbf16>, vector<88x64xbf16>, vector<16x64xf32> -> vector<16x64xf32>
    %153 = arith.addf %147, %152 : vector<16x64xf32>
    %154 = vector.extract_strided_slice %38 {offsets = [2, 0], sizes = [16, 88], strides = [1, 1]} : vector<22x88xf32> to vector<16x88xf32>
    %155 = arith.truncf %154 : vector<16x88xf32> to vector<16x88xbf16>
    %c2_94 = arith.constant 2 : index
    %c0_95 = arith.constant 0 : index
    %c0_96 = arith.constant 0 : index
    %156 = vector.load %arg14[%c2_94, %c0_95, %c0_96] : memref<7x88x64xbf16, #tpu.memory_space<vmem>>, vector<1x88x64xbf16>
    %157 = vector.shape_cast %156 : vector<1x88x64xbf16> to vector<88x64xbf16>
    %cst_97 = arith.constant dense<0.000000e+00> : vector<16x64xf32>
    %158 = tpu.matmul %155, %157, %cst_97 {dimension_numbers = #tpu.dot_dimension_numbers<[1], [0], [0], [1], [0, 0, 1, 1], [], []>} : vector<16x88xbf16>, vector<88x64xbf16>, vector<16x64xf32> -> vector<16x64xf32>
    %159 = arith.addf %153, %158 : vector<16x64xf32>
    %160 = vector.extract_strided_slice %38 {offsets = [3, 0], sizes = [16, 88], strides = [1, 1]} : vector<22x88xf32> to vector<16x88xf32>
    %161 = arith.truncf %160 : vector<16x88xf32> to vector<16x88xbf16>
    %c3_98 = arith.constant 3 : index
    %c0_99 = arith.constant 0 : index
    %c0_100 = arith.constant 0 : index
    %162 = vector.load %arg14[%c3_98, %c0_99, %c0_100] : memref<7x88x64xbf16, #tpu.memory_space<vmem>>, vector<1x88x64xbf16>
    %163 = vector.shape_cast %162 : vector<1x88x64xbf16> to vector<88x64xbf16>
    %cst_101 = arith.constant dense<0.000000e+00> : vector<16x64xf32>
    %164 = tpu.matmul %161, %163, %cst_101 {dimension_numbers = #tpu.dot_dimension_numbers<[1], [0], [0], [1], [0, 0, 1, 1], [], []>} : vector<16x88xbf16>, vector<88x64xbf16>, vector<16x64xf32> -> vector<16x64xf32>
    %165 = arith.addf %159, %164 : vector<16x64xf32>
    %166 = vector.extract_strided_slice %38 {offsets = [4, 0], sizes = [16, 88], strides = [1, 1]} : vector<22x88xf32> to vector<16x88xf32>
    %167 = arith.truncf %166 : vector<16x88xf32> to vector<16x88xbf16>
    %c4_102 = arith.constant 4 : index
    %c0_103 = arith.constant 0 : index
    %c0_104 = arith.constant 0 : index
    %168 = vector.load %arg14[%c4_102, %c0_103, %c0_104] : memref<7x88x64xbf16, #tpu.memory_space<vmem>>, vector<1x88x64xbf16>
    %169 = vector.shape_cast %168 : vector<1x88x64xbf16> to vector<88x64xbf16>
    %cst_105 = arith.constant dense<0.000000e+00> : vector<16x64xf32>
    %170 = tpu.matmul %167, %169, %cst_105 {dimension_numbers = #tpu.dot_dimension_numbers<[1], [0], [0], [1], [0, 0, 1, 1], [], []>} : vector<16x88xbf16>, vector<88x64xbf16>, vector<16x64xf32> -> vector<16x64xf32>
    %171 = arith.addf %165, %170 : vector<16x64xf32>
    %172 = vector.extract_strided_slice %38 {offsets = [5, 0], sizes = [16, 88], strides = [1, 1]} : vector<22x88xf32> to vector<16x88xf32>
    %173 = arith.truncf %172 : vector<16x88xf32> to vector<16x88xbf16>
    %c5 = arith.constant 5 : index
    %c0_106 = arith.constant 0 : index
    %c0_107 = arith.constant 0 : index
    %174 = vector.load %arg14[%c5, %c0_106, %c0_107] : memref<7x88x64xbf16, #tpu.memory_space<vmem>>, vector<1x88x64xbf16>
    %175 = vector.shape_cast %174 : vector<1x88x64xbf16> to vector<88x64xbf16>
    %cst_108 = arith.constant dense<0.000000e+00> : vector<16x64xf32>
    %176 = tpu.matmul %173, %175, %cst_108 {dimension_numbers = #tpu.dot_dimension_numbers<[1], [0], [0], [1], [0, 0, 1, 1], [], []>} : vector<16x88xbf16>, vector<88x64xbf16>, vector<16x64xf32> -> vector<16x64xf32>
    %177 = arith.addf %171, %176 : vector<16x64xf32>
    %178 = vector.extract_strided_slice %38 {offsets = [6, 0], sizes = [16, 88], strides = [1, 1]} : vector<22x88xf32> to vector<16x88xf32>
    %179 = arith.truncf %178 : vector<16x88xf32> to vector<16x88xbf16>
    %c6 = arith.constant 6 : index
    %c0_109 = arith.constant 0 : index
    %c0_110 = arith.constant 0 : index
    %180 = vector.load %arg14[%c6, %c0_109, %c0_110] : memref<7x88x64xbf16, #tpu.memory_space<vmem>>, vector<1x88x64xbf16>
    %181 = vector.shape_cast %180 : vector<1x88x64xbf16> to vector<88x64xbf16>
    %cst_111 = arith.constant dense<0.000000e+00> : vector<16x64xf32>
    %182 = tpu.matmul %179, %181, %cst_111 {dimension_numbers = #tpu.dot_dimension_numbers<[1], [0], [0], [1], [0, 0, 1, 1], [], []>} : vector<16x88xbf16>, vector<88x64xbf16>, vector<16x64xf32> -> vector<16x64xf32>
    %183 = arith.addf %177, %182 : vector<16x64xf32>
    %c0_112 = arith.constant 0 : index
    %c0_113 = arith.constant 0 : index
    %184 = vector.load %arg15[%c0_112, %c0_113] : memref<1x64xf32, #tpu.memory_space<vmem>>, vector<1x64xf32>
    %185 = vector.broadcast %184 : vector<1x64xf32> to vector<16x64xf32>
    %186 = arith.addf %183, %185 : vector<16x64xf32>
    %cst_114 = arith.constant 0.000000e+00 : f32
    %187 = vector.broadcast %cst_114 : f32 to vector<16x36xf32>
    %188 = tpu.concatenate %187, %186, %187 in 1 : vector<16x36xf32>, vector<16x64xf32>, vector<16x36xf32> -> vector<16x136xf32>
    %cst_115 = arith.constant 0.000000e+00 : f32
    %189 = vector.broadcast %cst_115 : f32 to vector<9x136xf32>
    %190 = tpu.concatenate %189, %188, %189 in 0 : vector<9x136xf32>, vector<16x136xf32>, vector<9x136xf32> -> vector<34x136xf32>
    %191 = vector.extract_strided_slice %190 {offsets = [0, 0], sizes = [16, 136], strides = [1, 1]} : vector<34x136xf32> to vector<16x136xf32>
    %192 = arith.truncf %191 : vector<16x136xf32> to vector<16x136xbf16>
    %c0_116 = arith.constant 0 : index
    %c0_117 = arith.constant 0 : index
    %c0_118 = arith.constant 0 : index
    %193 = vector.load %arg16[%c0_116, %c0_117, %c0_118] : memref<7x136x64xbf16, #tpu.memory_space<vmem>>, vector<1x136x64xbf16>
    %194 = vector.shape_cast %193 : vector<1x136x64xbf16> to vector<136x64xbf16>
    %cst_119 = arith.constant dense<0.000000e+00> : vector<16x64xf32>
    %195 = tpu.matmul %192, %194, %cst_119 {dimension_numbers = #tpu.dot_dimension_numbers<[1], [0], [0], [1], [0, 0, 1, 1], [], []>} : vector<16x136xbf16>, vector<136x64xbf16>, vector<16x64xf32> -> vector<16x64xf32>
    %196 = vector.extract_strided_slice %190 {offsets = [3, 0], sizes = [16, 136], strides = [1, 1]} : vector<34x136xf32> to vector<16x136xf32>
    %197 = arith.truncf %196 : vector<16x136xf32> to vector<16x136xbf16>
    %c1_120 = arith.constant 1 : index
    %c0_121 = arith.constant 0 : index
    %c0_122 = arith.constant 0 : index
    %198 = vector.load %arg16[%c1_120, %c0_121, %c0_122] : memref<7x136x64xbf16, #tpu.memory_space<vmem>>, vector<1x136x64xbf16>
    %199 = vector.shape_cast %198 : vector<1x136x64xbf16> to vector<136x64xbf16>
    %cst_123 = arith.constant dense<0.000000e+00> : vector<16x64xf32>
    %200 = tpu.matmul %197, %199, %cst_123 {dimension_numbers = #tpu.dot_dimension_numbers<[1], [0], [0], [1], [0, 0, 1, 1], [], []>} : vector<16x136xbf16>, vector<136x64xbf16>, vector<16x64xf32> -> vector<16x64xf32>
    %201 = arith.addf %195, %200 : vector<16x64xf32>
    %202 = vector.extract_strided_slice %190 {offsets = [6, 0], sizes = [16, 136], strides = [1, 1]} : vector<34x136xf32> to vector<16x136xf32>
    %203 = arith.truncf %202 : vector<16x136xf32> to vector<16x136xbf16>
    %c2_124 = arith.constant 2 : index
    %c0_125 = arith.constant 0 : index
    %c0_126 = arith.constant 0 : index
    %204 = vector.load %arg16[%c2_124, %c0_125, %c0_126] : memref<7x136x64xbf16, #tpu.memory_space<vmem>>, vector<1x136x64xbf16>
    %205 = vector.shape_cast %204 : vector<1x136x64xbf16> to vector<136x64xbf16>
    %cst_127 = arith.constant dense<0.000000e+00> : vector<16x64xf32>
    %206 = tpu.matmul %203, %205, %cst_127 {dimension_numbers = #tpu.dot_dimension_numbers<[1], [0], [0], [1], [0, 0, 1, 1], [], []>} : vector<16x136xbf16>, vector<136x64xbf16>, vector<16x64xf32> -> vector<16x64xf32>
    %207 = arith.addf %201, %206 : vector<16x64xf32>
    %208 = vector.extract_strided_slice %190 {offsets = [9, 0], sizes = [16, 136], strides = [1, 1]} : vector<34x136xf32> to vector<16x136xf32>
    %209 = arith.truncf %208 : vector<16x136xf32> to vector<16x136xbf16>
    %c3_128 = arith.constant 3 : index
    %c0_129 = arith.constant 0 : index
    %c0_130 = arith.constant 0 : index
    %210 = vector.load %arg16[%c3_128, %c0_129, %c0_130] : memref<7x136x64xbf16, #tpu.memory_space<vmem>>, vector<1x136x64xbf16>
    %211 = vector.shape_cast %210 : vector<1x136x64xbf16> to vector<136x64xbf16>
    %cst_131 = arith.constant dense<0.000000e+00> : vector<16x64xf32>
    %212 = tpu.matmul %209, %211, %cst_131 {dimension_numbers = #tpu.dot_dimension_numbers<[1], [0], [0], [1], [0, 0, 1, 1], [], []>} : vector<16x136xbf16>, vector<136x64xbf16>, vector<16x64xf32> -> vector<16x64xf32>
    %213 = arith.addf %207, %212 : vector<16x64xf32>
    %214 = vector.extract_strided_slice %190 {offsets = [12, 0], sizes = [16, 136], strides = [1, 1]} : vector<34x136xf32> to vector<16x136xf32>
    %215 = arith.truncf %214 : vector<16x136xf32> to vector<16x136xbf16>
    %c4_132 = arith.constant 4 : index
    %c0_133 = arith.constant 0 : index
    %c0_134 = arith.constant 0 : index
    %216 = vector.load %arg16[%c4_132, %c0_133, %c0_134] : memref<7x136x64xbf16, #tpu.memory_space<vmem>>, vector<1x136x64xbf16>
    %217 = vector.shape_cast %216 : vector<1x136x64xbf16> to vector<136x64xbf16>
    %cst_135 = arith.constant dense<0.000000e+00> : vector<16x64xf32>
    %218 = tpu.matmul %215, %217, %cst_135 {dimension_numbers = #tpu.dot_dimension_numbers<[1], [0], [0], [1], [0, 0, 1, 1], [], []>} : vector<16x136xbf16>, vector<136x64xbf16>, vector<16x64xf32> -> vector<16x64xf32>
    %219 = arith.addf %213, %218 : vector<16x64xf32>
    %220 = vector.extract_strided_slice %190 {offsets = [15, 0], sizes = [16, 136], strides = [1, 1]} : vector<34x136xf32> to vector<16x136xf32>
    %221 = arith.truncf %220 : vector<16x136xf32> to vector<16x136xbf16>
    %c5_136 = arith.constant 5 : index
    %c0_137 = arith.constant 0 : index
    %c0_138 = arith.constant 0 : index
    %222 = vector.load %arg16[%c5_136, %c0_137, %c0_138] : memref<7x136x64xbf16, #tpu.memory_space<vmem>>, vector<1x136x64xbf16>
    %223 = vector.shape_cast %222 : vector<1x136x64xbf16> to vector<136x64xbf16>
    %cst_139 = arith.constant dense<0.000000e+00> : vector<16x64xf32>
    %224 = tpu.matmul %221, %223, %cst_139 {dimension_numbers = #tpu.dot_dimension_numbers<[1], [0], [0], [1], [0, 0, 1, 1], [], []>} : vector<16x136xbf16>, vector<136x64xbf16>, vector<16x64xf32> -> vector<16x64xf32>
    %225 = arith.addf %219, %224 : vector<16x64xf32>
    %226 = vector.extract_strided_slice %190 {offsets = [18, 0], sizes = [16, 136], strides = [1, 1]} : vector<34x136xf32> to vector<16x136xf32>
    %227 = arith.truncf %226 : vector<16x136xf32> to vector<16x136xbf16>
    %c6_140 = arith.constant 6 : index
    %c0_141 = arith.constant 0 : index
    %c0_142 = arith.constant 0 : index
    %228 = vector.load %arg16[%c6_140, %c0_141, %c0_142] : memref<7x136x64xbf16, #tpu.memory_space<vmem>>, vector<1x136x64xbf16>
    %229 = vector.shape_cast %228 : vector<1x136x64xbf16> to vector<136x64xbf16>
    %cst_143 = arith.constant dense<0.000000e+00> : vector<16x64xf32>
    %230 = tpu.matmul %227, %229, %cst_143 {dimension_numbers = #tpu.dot_dimension_numbers<[1], [0], [0], [1], [0, 0, 1, 1], [], []>} : vector<16x136xbf16>, vector<136x64xbf16>, vector<16x64xf32> -> vector<16x64xf32>
    %231 = arith.addf %225, %230 : vector<16x64xf32>
    %c0_144 = arith.constant 0 : index
    %c0_145 = arith.constant 0 : index
    %232 = vector.load %arg17[%c0_144, %c0_145] : memref<1x64xf32, #tpu.memory_space<vmem>>, vector<1x64xf32>
    %233 = vector.broadcast %232 : vector<1x64xf32> to vector<16x64xf32>
    %234 = arith.addf %231, %233 : vector<16x64xf32>
    %235 = arith.truncf %234 : vector<16x64xf32> to vector<16x64xbf16>
    %c0_146 = arith.constant 0 : index
    %c0_147 = arith.constant 0 : index
    %236 = vector.load %arg18[%c0_146, %c0_147] : memref<64x64xbf16, #tpu.memory_space<vmem>>, vector<64x64xbf16>
    %cst_148 = arith.constant dense<0.000000e+00> : vector<16x64xf32>
    %237 = tpu.matmul %235, %236, %cst_148 {dimension_numbers = #tpu.dot_dimension_numbers<[1], [0], [0], [1], [0, 0, 1, 1], [], []>} : vector<16x64xbf16>, vector<64x64xbf16>, vector<16x64xf32> -> vector<16x64xf32>
    %c0_149 = arith.constant 0 : index
    %c0_150 = arith.constant 0 : index
    %238 = vector.load %arg19[%c0_149, %c0_150] : memref<1x64xf32, #tpu.memory_space<vmem>>, vector<1x64xf32>
    %239 = vector.broadcast %238 : vector<1x64xf32> to vector<16x64xf32>
    %240 = arith.addf %237, %239 : vector<16x64xf32>
    %241 = arith.mulf %240, %34 : vector<16x64xf32>
    %242 = tpu.concatenate %67, %142, %241 in 1 : vector<16x128xf32>, vector<16x64xf32>, vector<16x64xf32> -> vector<16x256xf32>
    %243 = arith.truncf %242 : vector<16x256xf32> to vector<16x256xbf16>
    %c0_151 = arith.constant 0 : index
    %c0_152 = arith.constant 0 : index
    %244 = vector.load %arg20[%c0_151, %c0_152] : memref<256x128xbf16, #tpu.memory_space<vmem>>, vector<256x128xbf16>
    %cst_153 = arith.constant dense<0.000000e+00> : vector<16x128xf32>
    %245 = tpu.matmul %243, %244, %cst_153 {dimension_numbers = #tpu.dot_dimension_numbers<[1], [0], [0], [1], [0, 0, 1, 1], [], []>} : vector<16x256xbf16>, vector<256x128xbf16>, vector<16x128xf32> -> vector<16x128xf32>
    %c0_154 = arith.constant 0 : index
    %c0_155 = arith.constant 0 : index
    %246 = vector.load %arg21[%c0_154, %c0_155] : memref<1x128xf32, #tpu.memory_space<vmem>>, vector<1x128xf32>
    %247 = vector.broadcast %246 : vector<1x128xf32> to vector<16x128xf32>
    %248 = arith.mulf %245, %247 : vector<16x128xf32>
    %c0_156 = arith.constant 0 : index
    %c0_157 = arith.constant 0 : index
    %249 = vector.load %arg22[%c0_156, %c0_157] : memref<1x128xf32, #tpu.memory_space<vmem>>, vector<1x128xf32>
    %250 = vector.broadcast %249 : vector<1x128xf32> to vector<16x128xf32>
    %251 = arith.addf %248, %250 : vector<16x128xf32>
    %252 = arith.negf %251 : vector<16x128xf32>
    %253 = math.exp %252 : vector<16x128xf32>
    %cst_158 = arith.constant 1.000000e+00 : f32
    %254 = vector.broadcast %cst_158 : f32 to vector<16x128xf32>
    %255 = arith.addf %254, %253 : vector<16x128xf32>
    %256 = arith.divf %254, %255 : vector<16x128xf32>
    %257 = arith.mulf %251, %256 : vector<16x128xf32>
    %258 = arith.addf %257, %1 : vector<16x128xf32>
    %c0_159 = arith.constant 0 : index
    %c0_160 = arith.constant 0 : index
    %c0_161 = arith.constant 0 : index
    %259 = vector.load %arg23[%c0_159, %c0_160, %c0_161] : memref<1x16x128xf32, #tpu.memory_space<vmem>>, vector<1x16x128xf32>
    %260 = vector.shape_cast %259 : vector<1x16x128xf32> to vector<16x128xf32>
    %261 = vector.shape_cast %258 : vector<16x128xf32> to vector<1x16x128xf32>
    tpu.vector_store %arg23[%c0_159, %c0_160, %c0_161], %261 {strides = array<i32>} : memref<1x16x128xf32, #tpu.memory_space<vmem>>, vector<1x16x128xf32>,
    return
  }
  func.func @transform_0(%arg0: i32) -> (i32, i32, i32) {
    %c0_i32 = arith.constant 0 : i32
    %c0_i32_0 = arith.constant 0 : i32
    %c0_i32_1 = arith.constant 0 : i32
    return %arg0, %c0_i32, %c0_i32_0 : i32, i32, i32
  }
  func.func @transform_1(%arg0: i32) -> (i32, i32, i32) {
    %c0_i32 = arith.constant 0 : i32
    %c0_i32_0 = arith.constant 0 : i32
    %c0_i32_1 = arith.constant 0 : i32
    %c0_i32_2 = arith.constant 0 : i32
    return %c0_i32, %c0_i32_0, %c0_i32_1 : i32, i32, i32
  }
  func.func @transform_2(%arg0: i32) -> (i32, i32) {
    %c0_i32 = arith.constant 0 : i32
    %c0_i32_0 = arith.constant 0 : i32
    %c0_i32_1 = arith.constant 0 : i32
    return %c0_i32, %c0_i32_0 : i32, i32
  }
  func.func @transform_3(%arg0: i32) -> (i32, i32) {
    %c0_i32 = arith.constant 0 : i32
    %c0_i32_0 = arith.constant 0 : i32
    %c0_i32_1 = arith.constant 0 : i32
    return %c0_i32, %c0_i32_0 : i32, i32
  }
  func.func @transform_4(%arg0: i32) -> (i32, i32, i32) {
    %c0_i32 = arith.constant 0 : i32
    %c0_i32_0 = arith.constant 0 : i32
    %c0_i32_1 = arith.constant 0 : i32
    %c0_i32_2 = arith.constant 0 : i32
    return %c0_i32, %c0_i32_0, %c0_i32_1 : i32, i32, i32
  }
  func.func @transform_5(%arg0: i32) -> (i32, i32) {
    %c0_i32 = arith.constant 0 : i32
    %c0_i32_0 = arith.constant 0 : i32
    %c0_i32_1 = arith.constant 0 : i32
    return %c0_i32, %c0_i32_0 : i32, i32
  }
  func.func @transform_6(%arg0: i32) -> (i32, i32) {
    %c0_i32 = arith.constant 0 : i32
    %c0_i32_0 = arith.constant 0 : i32
    %c0_i32_1 = arith.constant 0 : i32
    return %c0_i32, %c0_i32_0 : i32, i32
  }
  func.func @transform_7(%arg0: i32) -> (i32, i32, i32) {
    %c0_i32 = arith.constant 0 : i32
    %c0_i32_0 = arith.constant 0 : i32
    %c0_i32_1 = arith.constant 0 : i32
    %c0_i32_2 = arith.constant 0 : i32
    return %c0_i32, %c0_i32_0, %c0_i32_1 : i32, i32, i32
  }
  func.func @transform_8(%arg0: i32) -> (i32, i32) {
    %c0_i32 = arith.constant 0 : i32
    %c0_i32_0 = arith.constant 0 : i32
    %c0_i32_1 = arith.constant 0 : i32
    return %c0_i32, %c0_i32_0 : i32, i32
  }
  func.func @transform_9(%arg0: i32) -> (i32, i32, i32) {
    %c0_i32 = arith.constant 0 : i32
    %c0_i32_0 = arith.constant 0 : i32
    %c0_i32_1 = arith.constant 0 : i32
    %c0_i32_2 = arith.constant 0 : i32
    return %c0_i32, %c0_i32_0, %c0_i32_1 : i32, i32, i32
  }
  func.func @transform_10(%arg0: i32) -> (i32, i32) {
    %c0_i32 = arith.constant 0 : i32
    %c0_i32_0 = arith.constant 0 : i32
    %c0_i32_1 = arith.constant 0 : i32
    return %c0_i32, %c0_i32_0 : i32, i32
  }
  func.func @transform_11(%arg0: i32) -> (i32, i32) {
    %c0_i32 = arith.constant 0 : i32
    %c0_i32_0 = arith.constant 0 : i32
    %c0_i32_1 = arith.constant 0 : i32
    return %c0_i32, %c0_i32_0 : i32, i32
  }
  func.func @transform_12(%arg0: i32) -> (i32, i32) {
    %c0_i32 = arith.constant 0 : i32
    %c0_i32_0 = arith.constant 0 : i32
    %c0_i32_1 = arith.constant 0 : i32
    return %c0_i32, %c0_i32_0 : i32, i32
  }
  func.func @transform_13(%arg0: i32) -> (i32, i32, i32) {
    %c0_i32 = arith.constant 0 : i32
    %c0_i32_0 = arith.constant 0 : i32
    %c0_i32_1 = arith.constant 0 : i32
    %c0_i32_2 = arith.constant 0 : i32
    return %c0_i32, %c0_i32_0, %c0_i32_1 : i32, i32, i32
  }
  func.func @transform_14(%arg0: i32) -> (i32, i32) {
    %c0_i32 = arith.constant 0 : i32
    %c0_i32_0 = arith.constant 0 : i32
    %c0_i32_1 = arith.constant 0 : i32
    return %c0_i32, %c0_i32_0 : i32, i32
  }
  func.func @transform_15(%arg0: i32) -> (i32, i32, i32) {
    %c0_i32 = arith.constant 0 : i32
    %c0_i32_0 = arith.constant 0 : i32
    %c0_i32_1 = arith.constant 0 : i32
    %c0_i32_2 = arith.constant 0 : i32
    return %c0_i32, %c0_i32_0, %c0_i32_1 : i32, i32, i32
  }
  func.func @transform_16(%arg0: i32) -> (i32, i32) {
    %c0_i32 = arith.constant 0 : i32
    %c0_i32_0 = arith.constant 0 : i32
    %c0_i32_1 = arith.constant 0 : i32
    return %c0_i32, %c0_i32_0 : i32, i32
  }
  func.func @transform_17(%arg0: i32) -> (i32, i32) {
    %c0_i32 = arith.constant 0 : i32
    %c0_i32_0 = arith.constant 0 : i32
    %c0_i32_1 = arith.constant 0 : i32
    return %c0_i32, %c0_i32_0 : i32, i32
  }
  func.func @transform_18(%arg0: i32) -> (i32, i32) {
    %c0_i32 = arith.constant 0 : i32
    %c0_i32_0 = arith.constant 0 : i32
    %c0_i32_1 = arith.constant 0 : i32
    return %c0_i32, %c0_i32_0 : i32, i32
  }
  func.func @transform_19(%arg0: i32) -> (i32, i32) {
    %c0_i32 = arith.constant 0 : i32
    %c0_i32_0 = arith.constant 0 : i32
    %c0_i32_1 = arith.constant 0 : i32
    return %c0_i32, %c0_i32_0 : i32, i32
  }
  func.func @transform_20(%arg0: i32) -> (i32, i32) {
    %c0_i32 = arith.constant 0 : i32
    %c0_i32_0 = arith.constant 0 : i32
    %c0_i32_1 = arith.constant 0 : i32
    return %c0_i32, %c0_i32_0 : i32, i32
  }
  func.func @transform_21(%arg0: i32) -> (i32, i32) {
    %c0_i32 = arith.constant 0 : i32
    %c0_i32_0 = arith.constant 0 : i32
    %c0_i32_1 = arith.constant 0 : i32
    return %c0_i32, %c0_i32_0 : i32, i32
  }
  func.func @transform_22(%arg0: i32) -> (i32, i32, i32) {
    %c0_i32 = arith.constant 0 : i32
    %c0_i32_0 = arith.constant 0 : i32
    %c0_i32_1 = arith.constant 0 : i32
    return %arg0, %c0_i32, %c0_i32_0 : i32, i32, i32
  }
}

</mosaic_0001>

<llo_original>
// kernel: tpu_custom_call.1
$region0: #{tpu_custom_call.1}
  #allocation0 [shape = 'u32[]', space=smem, size = 0x4, offset = 0x4, fixed_abs, tag = 'smem constant byte address 0x4 - core index']
  #allocation1 [shape = 'u32[144,128]{1,0:T(1,128)}', space=vmem, size = 0x12000, scoped, tag = 'internal scratch']
  %s0 = inlined_call_operand.vmem [shape: f32[2,16,128], index: 0, kind: input, shape index: {}]
  %s1 = inlined_call_operand.vmem [shape: bf16[3,144,64], index: 1, kind: input, shape index: {}]
  %s2 = inlined_call_operand.vmem [shape: f32[1,64], index: 2, kind: input, shape index: {}]
  %s3 = inlined_call_operand.vmem [shape: f32[1,64], index: 3, kind: input, shape index: {}]
  %s4 = inlined_call_operand.vmem [shape: bf16[3,88,128], index: 4, kind: input, shape index: {}]
  %s5 = inlined_call_operand.vmem [shape: f32[1,128], index: 5, kind: input, shape index: {}]
  %s6 = inlined_call_operand.vmem [shape: f32[1,128], index: 6, kind: input, shape index: {}]
  %s7 = inlined_call_operand.vmem [shape: bf16[5,88,64], index: 7, kind: input, shape index: {}]
  %s8 = inlined_call_operand.vmem [shape: f32[1,64], index: 8, kind: input, shape index: {}]
  %s9 = inlined_call_operand.vmem [shape: bf16[5,112,64], index: 9, kind: input, shape index: {}]
  %s10 = inlined_call_operand.vmem [shape: f32[1,64], index: 10, kind: input, shape index: {}]
  %s11 = inlined_call_operand.vmem [shape: bf16[64,64], index: 11, kind: input, shape index: {}]
  %s12 = inlined_call_operand.vmem [shape: f32[1,64], index: 12, kind: input, shape index: {}]
  %s13 = inlined_call_operand.vmem [shape: bf16[7,88,64], index: 13, kind: input, shape index: {}]
  %s14 = inlined_call_operand.vmem [shape: f32[1,64], index: 14, kind: input, shape index: {}]
  %s15 = inlined_call_operand.vmem [shape: bf16[7,136,64], index: 15, kind: input, shape index: {}]
  %s16 = inlined_call_operand.vmem [shape: f32[1,64], index: 16, kind: input, shape index: {}]
  %s17 = inlined_call_operand.vmem [shape: bf16[64,64], index: 17, kind: input, shape index: {}]
  %s18 = inlined_call_operand.vmem [shape: f32[1,64], index: 18, kind: input, shape index: {}]
  %s19 = inlined_call_operand.vmem [shape: bf16[256,128], index: 19, kind: input, shape index: {}]
  %s20 = inlined_call_operand.vmem [shape: f32[1,128], index: 20, kind: input, shape index: {}]
  %s21 = inlined_call_operand.vmem [shape: f32[1,128], index: 21, kind: input, shape index: {}]
  %s22 = inlined_call_operand.hbm [shape: f32[2,16,128], index: 22, kind: output, shape index: {}]
  %s23 = sld [smem:[#allocation0]]
  $region121: #{tpu_custom_call.1} parent=0
    _
  %s25 = ssub.s32 1, %s23
  %s26 = scalar_select 0, %s25, %s23
  $region1: #{tpu_custom_call.1} parent=0
    #allocation2 [shape = 'u8[16384]{0}', space=vmem, size = 0x4000, scoped, tag = 'output window, operand 0']
    #allocation3 [shape = 's32[2]{0}', space=sflag, size = 0x8, scoped, tag = 'scoped memory for tpu_custom_call.1']
    %27 = vsyncpa [#allocation3], 0
    %s28 = scalar_lea.sflag [#allocation3], 1
    %29 = vsyncpa %s28, 0
    loop: start=0, step=1, limit=4
    $region2: #{tpu_custom_call.1} parent=1 // loop_pre_header
      _
    $region3: #{tpu_custom_call.1} parent=1 // loop_header
      %s31 = sphi 0, %s35
      %p32 = scmp.ge.s32.totalorder %s31, 4
      %s41 = sphi 0, %s43
      %s44 = sphi 0, %s41
      %s45 = sphi 0, %s44
      %s61 = sphi 0, %s45
      %s65 = sphi 0, %s65
      %s67 = sphi 0, %s65
      %s68 = sphi 0, %s67
      %s82 = sphi 0, %s68
      %s86 = sphi 0, %s86
      %s88 = sphi 0, %s86
      %s89 = sphi 0, %s88
      %s103 = sphi 0, %s89
      %s107 = sphi 0, %s107
      %s109 = sphi 0, %s107
      %s110 = sphi 0, %s109
      %s124 = sphi 0, %s110
      %s128 = sphi 0, %s128
      %s130 = sphi 0, %s128
      %s131 = sphi 0, %s130
      %s145 = sphi 0, %s131
      %s149 = sphi 0, %s149
      %s151 = sphi 0, %s149
      %s152 = sphi 0, %s151
      %s166 = sphi 0, %s152
      %s170 = sphi 0, %s170
      %s172 = sphi 0, %s170
      %s173 = sphi 0, %s172
      %s187 = sphi 0, %s173
      %s191 = sphi 0, %s191
      %s193 = sphi 0, %s191
      %s194 = sphi 0, %s193
      %s208 = sphi 0, %s194
      %s212 = sphi 0, %s212
      %s214 = sphi 0, %s212
      %s215 = sphi 0, %s214
      %s229 = sphi 0, %s215
      %s233 = sphi 0, %s233
      %s235 = sphi 0, %s233
      %s236 = sphi 0, %s235
      %s250 = sphi 0, %s236
      %s254 = sphi 0, %s254
      %s256 = sphi 0, %s254
      %s257 = sphi 0, %s256
      %s271 = sphi 0, %s257
      %s275 = sphi 0, %s275
      %s277 = sphi 0, %s275
      %s278 = sphi 0, %s277
      %s292 = sphi 0, %s278
      %s296 = sphi 0, %s296
      %s298 = sphi 0, %s296
      %s299 = sphi 0, %s298
      %s313 = sphi 0, %s299
      %s317 = sphi 0, %s317
      %s319 = sphi 0, %s317
      %s320 = sphi 0, %s319
      %s334 = sphi 0, %s320
      %s338 = sphi 0, %s338
      %s340 = sphi 0, %s338
      %s341 = sphi 0, %s340
      %s355 = sphi 0, %s341
      %s359 = sphi 0, %s359
      %s361 = sphi 0, %s359
      %s362 = sphi 0, %s361
      %s376 = sphi 0, %s362
      %s380 = sphi 0, %s380
      %s382 = sphi 0, %s380
      %s383 = sphi 0, %s382
      %s397 = sphi 0, %s383
      %s401 = sphi 0, %s401
      %s403 = sphi 0, %s401
      %s404 = sphi 0, %s403
      %s418 = sphi 0, %s404
      %s422 = sphi 0, %s422
      %s424 = sphi 0, %s422
      %s425 = sphi 0, %s424
      %s439 = sphi 0, %s425
      %s443 = sphi 0, %s443
      %s445 = sphi 0, %s443
      %s446 = sphi 0, %s445
      %s460 = sphi 0, %s446
      %s464 = sphi 0, %s464
      %s466 = sphi 0, %s464
      %s467 = sphi 0, %s466
      %s481 = sphi 0, %s467
      %s485 = sphi 0, %s485
      %s487 = sphi 0, %s485
      %s488 = sphi 0, %s487
      %s502 = sphi 0, %s488
      %s508 = sphi 0, %s510
      %s511 = sphi 0, %s508
      %s512 = sphi 0, %s511
      %s528 = sphi 0, %s512
    $region4: #{tpu_custom_call.1} parent=1 // loop_header_branch
      %34 = sbr.rel (%p32) target = $region8
    $region5: #{tpu_custom_call.1} parent=1 // loop_body
      %s36 = ssub.s32 %s31, 1
      %s37 = ssub.s32 %s31, 2
      %s38 = sadd.s32 %s31, 1
      %s39 = ssub.s32 %s31, %s38
      %p40 = scmp.eq.s32.totalorder %s39, 0
      %s42 = sadd.s32 %s41, 1
      %s43 = scalar_select %p40, %s41, %s42
      %p46 = pneg %p40
      %p47 = scmp.eq.s32.totalorder %s31, 1
      %p48 = por %p46, %p47
      %p49 = scmp.ne.s32.totalorder %s41, %s44
      %p50 = scmp.eq.s32.totalorder %s31, 0
      %p51 = por %p49, %p50
      %p52 = scmp.ne.s32.totalorder %s41, %s44
      %p53 = scmp.eq.s32.totalorder %s36, 1
      %p54 = por %p52, %p53
      %p55 = scmp.ne.s32.totalorder %s44, %s45
      %p56 = scmp.eq.s32.totalorder %s36, 0
      %p57 = por %p55, %p56
      %p58 = scmp.ne.s32.totalorder %s44, %s45
      %p59 = scmp.eq.s32.totalorder %s37, 1
      %p60 = por %p58, %p59
      %p62 = scmp.ne.s32.totalorder %s45, %s61
      %p63 = scmp.eq.s32.totalorder %s37, 0
      %p64 = por %p62, %p63
      %s66 = sadd.s32 %s65, 1
      %p69 = scmp.eq.s32.totalorder %s31, 1
      %p70 = scmp.ne.s32.totalorder %s65, %s67
      %p71 = scmp.eq.s32.totalorder %s31, 0
      %p72 = por %p70, %p71
      %p73 = scmp.ne.s32.totalorder %s65, %s67
      %p74 = scmp.eq.s32.totalorder %s36, 1
      %p75 = por %p73, %p74
      %p76 = scmp.ne.s32.totalorder %s67, %s68
      %p77 = scmp.eq.s32.totalorder %s36, 0
      %p78 = por %p76, %p77
      %p79 = scmp.ne.s32.totalorder %s67, %s68
      %p80 = scmp.eq.s32.totalorder %s37, 1
      %p81 = por %p79, %p80
      %p83 = scmp.ne.s32.totalorder %s68, %s82
      %p84 = scmp.eq.s32.totalorder %s37, 0
      %p85 = por %p83, %p84
      %s87 = sadd.s32 %s86, 1
      %p90 = scmp.eq.s32.totalorder %s31, 1
      %p91 = scmp.ne.s32.totalorder %s86, %s88
      %p92 = scmp.eq.s32.totalorder %s31, 0
      %p93 = por %p91, %p92
      %p94 = scmp.ne.s32.totalorder %s86, %s88
      %p95 = scmp.eq.s32.totalorder %s36, 1
      %p96 = por %p94, %p95
      %p97 = scmp.ne.s32.totalorder %s88, %s89
      %p98 = scmp.eq.s32.totalorder %s36, 0
      %p99 = por %p97, %p98
      %p100 = scmp.ne.s32.totalorder %s88, %s89
      %p101 = scmp.eq.s32.totalorder %s37, 1
      %p102 = por %p100, %p101
      %p104 = scmp.ne.s32.totalorder %s89, %s103
      %p105 = scmp.eq.s32.totalorder %s37, 0
      %p106 = por %p104, %p105
      %s108 = sadd.s32 %s107, 1
      %p111 = scmp.eq.s32.totalorder %s31, 1
      %p112 = scmp.ne.s32.totalorder %s107, %s109
      %p113 = scmp.eq.s32.totalorder %s31, 0
      %p114 = por %p112, %p113
      %p115 = scmp.ne.s32.totalorder %s107, %s109
      %p116 = scmp.eq.s32.totalorder %s36, 1
      %p117 = por %p115, %p116
      %p118 = scmp.ne.s32.totalorder %s109, %s110
      %p119 = scmp.eq.s32.totalorder %s36, 0
      %p120 = por %p118, %p119
      %p121 = scmp.ne.s32.totalorder %s109, %s110
      %p122 = scmp.eq.s32.totalorder %s37, 1
      %p123 = por %p121, %p122
      %p125 = scmp.ne.s32.totalorder %s110, %s124
      %p126 = scmp.eq.s32.totalorder %s37, 0
      %p127 = por %p125, %p126
      %s129 = sadd.s32 %s128, 1
      %p132 = scmp.eq.s32.totalorder %s31, 1
      %p133 = scmp.ne.s32.totalorder %s128, %s130
      %p134 = scmp.eq.s32.totalorder %s31, 0
      %p135 = por %p133, %p134
      %p136 = scmp.ne.s32.totalorder %s128, %s130
      %p137 = scmp.eq.s32.totalorder %s36, 1
      %p138 = por %p136, %p137
      %p139 = scmp.ne.s32.totalorder %s130, %s131
      %p140 = scmp.eq.s32.totalorder %s36, 0
      %p141 = por %p139, %p140
      %p142 = scmp.ne.s32.totalorder %s130, %s131
      %p143 = scmp.eq.s32.totalorder %s37, 1
      %p144 = por %p142, %p143
      %p146 = scmp.ne.s32.totalorder %s131, %s145
      %p147 = scmp.eq.s32.totalorder %s37, 0
      %p148 = por %p146, %p147
      %s150 = sadd.s32 %s149, 1
      %p153 = scmp.eq.s32.totalorder %s31, 1
      %p154 = scmp.ne.s32.totalorder %s149, %s151
      %p155 = scmp.eq.s32.totalorder %s31, 0
      %p156 = por %p154, %p155
      %p157 = scmp.ne.s32.totalorder %s149, %s151
      %p158 = scmp.eq.s32.totalorder %s36, 1
      %p159 = por %p157, %p158
      %p160 = scmp.ne.s32.totalorder %s151, %s152
      %p161 = scmp.eq.s32.totalorder %s36, 0
      %p162 = por %p160, %p161
      %p163 = scmp.ne.s32.totalorder %s151, %s152
      %p164 = scmp.eq.s32.totalorder %s37, 1
      %p165 = por %p163, %p164
      %p167 = scmp.ne.s32.totalorder %s152, %s166
      %p168 = scmp.eq.s32.totalorder %s37, 0
      %p169 = por %p167, %p168
      %s171 = sadd.s32 %s170, 1
      %p174 = scmp.eq.s32.totalorder %s31, 1
      %p175 = scmp.ne.s32.totalorder %s170, %s172
      %p176 = scmp.eq.s32.totalorder %s31, 0
      %p177 = por %p175, %p176
      %p178 = scmp.ne.s32.totalorder %s170, %s172
      %p179 = scmp.eq.s32.totalorder %s36, 1
      %p180 = por %p178, %p179
      %p181 = scmp.ne.s32.totalorder %s172, %s173
      %p182 = scmp.eq.s32.totalorder %s36, 0
      %p183 = por %p181, %p182
      %p184 = scmp.ne.s32.totalorder %s172, %s173
      %p185 = scmp.eq.s32.totalorder %s37, 1
      %p186 = por %p184, %p185
      %p188 = scmp.ne.s32.totalorder %s173, %s187
      %p189 = scmp.eq.s32.totalorder %s37, 0
      %p190 = por %p188, %p189
      %s192 = sadd.s32 %s191, 1
      %p195 = scmp.eq.s32.totalorder %s31, 1
      %p196 = scmp.ne.s32.totalorder %s191, %s193
      %p197 = scmp.eq.s32.totalorder %s31, 0
      %p198 = por %p196, %p197
      %p199 = scmp.ne.s32.totalorder %s191, %s193
      %p200 = scmp.eq.s32.totalorder %s36, 1
      %p201 = por %p199, %p200
      %p202 = scmp.ne.s32.totalorder %s193, %s194
      %p203 = scmp.eq.s32.totalorder %s36, 0
      %p204 = por %p202, %p203
      %p205 = scmp.ne.s32.totalorder %s193, %s194
      %p206 = scmp.eq.s32.totalorder %s37, 1
      %p207 = por %p205, %p206
      %p209 = scmp.ne.s32.totalorder %s194, %s208
      %p210 = scmp.eq.s32.totalorder %s37, 0
      %p211 = por %p209, %p210
      %s213 = sadd.s32 %s212, 1
      %p216 = scmp.eq.s32.totalorder %s31, 1
      %p217 = scmp.ne.s32.totalorder %s212, %s214
      %p218 = scmp.eq.s32.totalorder %s31, 0
      %p219 = por %p217, %p218
      %p220 = scmp.ne.s32.totalorder %s212, %s214
      %p221 = scmp.eq.s32.totalorder %s36, 1
      %p222 = por %p220, %p221
      %p223 = scmp.ne.s32.totalorder %s214, %s215
      %p224 = scmp.eq.s32.totalorder %s36, 0
      %p225 = por %p223, %p224
      %p226 = scmp.ne.s32.totalorder %s214, %s215
      %p227 = scmp.eq.s32.totalorder %s37, 1
      %p228 = por %p226, %p227
      %p230 = scmp.ne.s32.totalorder %s215, %s229
      %p231 = scmp.eq.s32.totalorder %s37, 0
      %p232 = por %p230, %p231
      %s234 = sadd.s32 %s233, 1
      %p237 = scmp.eq.s32.totalorder %s31, 1
      %p238 = scmp.ne.s32.totalorder %s233, %s235
      %p239 = scmp.eq.s32.totalorder %s31, 0
      %p240 = por %p238, %p239
      %p241 = scmp.ne.s32.totalorder %s233, %s235
      %p242 = scmp.eq.s32.totalorder %s36, 1
      %p243 = por %p241, %p242
      %p244 = scmp.ne.s32.totalorder %s235, %s236
      %p245 = scmp.eq.s32.totalorder %s36, 0
      %p246 = por %p244, %p245
      %p247 = scmp.ne.s32.totalorder %s235, %s236
      %p248 = scmp.eq.s32.totalorder %s37, 1
      %p249 = por %p247, %p248
      %p251 = scmp.ne.s32.totalorder %s236, %s250
      %p252 = scmp.eq.s32.totalorder %s37, 0
      %p253 = por %p251, %p252
      %s255 = sadd.s32 %s254, 1
      %p258 = scmp.eq.s32.totalorder %s31, 1
      %p259 = scmp.ne.s32.totalorder %s254, %s256
      %p260 = scmp.eq.s32.totalorder %s31, 0
      %p261 = por %p259, %p260
      %p262 = scmp.ne.s32.totalorder %s254, %s256
      %p263 = scmp.eq.s32.totalorder %s36, 1
      %p264 = por %p262, %p263
      %p265 = scmp.ne.s32.totalorder %s256, %s257
      %p266 = scmp.eq.s32.totalorder %s36, 0
      %p267 = por %p265, %p266
      %p268 = scmp.ne.s32.totalorder %s256, %s257
      %p269 = scmp.eq.s32.totalorder %s37, 1
      %p270 = por %p268, %p269
      %p272 = scmp.ne.s32.totalorder %s257, %s271
      %p273 = scmp.eq.s32.totalorder %s37, 0
      %p274 = por %p272, %p273
      %s276 = sadd.s32 %s275, 1
      %p279 = scmp.eq.s32.totalorder %s31, 1
      %p280 = scmp.ne.s32.totalorder %s275, %s277
      %p281 = scmp.eq.s32.totalorder %s31, 0
      %p282 = por %p280, %p281
      %p283 = scmp.ne.s32.totalorder %s275, %s277
      %p284 = scmp.eq.s32.totalorder %s36, 1
      %p285 = por %p283, %p284
      %p286 = scmp.ne.s32.totalorder %s277, %s278
      %p287 = scmp.eq.s32.totalorder %s36, 0
      %p288 = por %p286, %p287
      %p289 = scmp.ne.s32.totalorder %s277, %s278
      %p290 = scmp.eq.s32.totalorder %s37, 1
      %p291 = por %p289, %p290
      %p293 = scmp.ne.s32.totalorder %s278, %s292
      %p294 = scmp.eq.s32.totalorder %s37, 0
      %p295 = por %p293, %p294
      %s297 = sadd.s32 %s296, 1
      %p300 = scmp.eq.s32.totalorder %s31, 1
      %p301 = scmp.ne.s32.totalorder %s296, %s298
      %p302 = scmp.eq.s32.totalorder %s31, 0
      %p303 = por %p301, %p302
      %p304 = scmp.ne.s32.totalorder %s296, %s298
      %p305 = scmp.eq.s32.totalorder %s36, 1
      %p306 = por %p304, %p305
      %p307 = scmp.ne.s32.totalorder %s298, %s299
      %p308 = scmp.eq.s32.totalorder %s36, 0
      %p309 = por %p307, %p308
      %p310 = scmp.ne.s32.totalorder %s298, %s299
      %p311 = scmp.eq.s32.totalorder %s37, 1
      %p312 = por %p310, %p311
      %p314 = scmp.ne.s32.totalorder %s299, %s313
      %p315 = scmp.eq.s32.totalorder %s37, 0
      %p316 = por %p314, %p315
      %s318 = sadd.s32 %s317, 1
      %p321 = scmp.eq.s32.totalorder %s31, 1
      %p322 = scmp.ne.s32.totalorder %s317, %s319
      %p323 = scmp.eq.s32.totalorder %s31, 0
      %p324 = por %p322, %p323
      %p325 = scmp.ne.s32.totalorder %s317, %s319
      %p326 = scmp.eq.s32.totalorder %s36, 1
      %p327 = por %p325, %p326
      %p328 = scmp.ne.s32.totalorder %s319, %s320
      %p329 = scmp.eq.s32.totalorder %s36, 0
      %p330 = por %p328, %p329
      %p331 = scmp.ne.s32.totalorder %s319, %s320
      %p332 = scmp.eq.s32.totalorder %s37, 1
      %p333 = por %p331, %p332
      %p335 = scmp.ne.s32.totalorder %s320, %s334
      %p336 = scmp.eq.s32.totalorder %s37, 0
      %p337 = por %p335, %p336
      %s339 = sadd.s32 %s338, 1
      %p342 = scmp.eq.s32.totalorder %s31, 1
      %p343 = scmp.ne.s32.totalorder %s338, %s340
      %p344 = scmp.eq.s32.totalorder %s31, 0
      %p345 = por %p343, %p344
      %p346 = scmp.ne.s32.totalorder %s338, %s340
      %p347 = scmp.eq.s32.totalorder %s36, 1
      %p348 = por %p346, %p347
      %p349 = scmp.ne.s32.totalorder %s340, %s341
      %p350 = scmp.eq.s32.totalorder %s36, 0
      %p351 = por %p349, %p350
      %p352 = scmp.ne.s32.totalorder %s340, %s341
      %p353 = scmp.eq.s32.totalorder %s37, 1
      %p354 = por %p352, %p353
      %p356 = scmp.ne.s32.totalorder %s341, %s355
      %p357 = scmp.eq.s32.totalorder %s37, 0
      %p358 = por %p356, %p357
      %s360 = sadd.s32 %s359, 1
      %p363 = scmp.eq.s32.totalorder %s31, 1
      %p364 = scmp.ne.s32.totalorder %s359, %s361
      %p365 = scmp.eq.s32.totalorder %s31, 0
      %p366 = por %p364, %p365
      %p367 = scmp.ne.s32.totalorder %s359, %s361
      %p368 = scmp.eq.s32.totalorder %s36, 1
      %p369 = por %p367, %p368
      %p370 = scmp.ne.s32.totalorder %s361, %s362
      %p371 = scmp.eq.s32.totalorder %s36, 0
      %p372 = por %p370, %p371
      %p373 = scmp.ne.s32.totalorder %s361, %s362
      %p374 = scmp.eq.s32.totalorder %s37, 1
      %p375 = por %p373, %p374
      %p377 = scmp.ne.s32.totalorder %s362, %s376
      %p378 = scmp.eq.s32.totalorder %s37, 0
      %p379 = por %p377, %p378
      %s381 = sadd.s32 %s380, 1
      %p384 = scmp.eq.s32.totalorder %s31, 1
      %p385 = scmp.ne.s32.totalorder %s380, %s382
      %p386 = scmp.eq.s32.totalorder %s31, 0
      %p387 = por %p385, %p386
      %p388 = scmp.ne.s32.totalorder %s380, %s382
      %p389 = scmp.eq.s32.totalorder %s36, 1
      %p390 = por %p388, %p389
      %p391 = scmp.ne.s32.totalorder %s382, %s383
      %p392 = scmp.eq.s32.totalorder %s36, 0
      %p393 = por %p391, %p392
      %p394 = scmp.ne.s32.totalorder %s382, %s383
      %p395 = scmp.eq.s32.totalorder %s37, 1
      %p396 = por %p394, %p395
      %p398 = scmp.ne.s32.totalorder %s383, %s397
      %p399 = scmp.eq.s32.totalorder %s37, 0
      %p400 = por %p398, %p399
      %s402 = sadd.s32 %s401, 1
      %p405 = scmp.eq.s32.totalorder %s31, 1
      %p406 = scmp.ne.s32.totalorder %s401, %s403
      %p407 = scmp.eq.s32.totalorder %s31, 0
      %p408 = por %p406, %p407
      %p409 = scmp.ne.s32.totalorder %s401, %s403
      %p410 = scmp.eq.s32.totalorder %s36, 1
      %p411 = por %p409, %p410
      %p412 = scmp.ne.s32.totalorder %s403, %s404
      %p413 = scmp.eq.s32.totalorder %s36, 0
      %p414 = por %p412, %p413
      %p415 = scmp.ne.s32.totalorder %s403, %s404
      %p416 = scmp.eq.s32.totalorder %s37, 1
      %p417 = por %p415, %p416
      %p419 = scmp.ne.s32.totalorder %s404, %s418
      %p420 = scmp.eq.s32.totalorder %s37, 0
      %p421 = por %p419, %p420
      %s423 = sadd.s32 %s422, 1
      %p426 = scmp.eq.s32.totalorder %s31, 1
      %p427 = scmp.ne.s32.totalorder %s422, %s424
      %p428 = scmp.eq.s32.totalorder %s31, 0
      %p429 = por %p427, %p428
      %p430 = scmp.ne.s32.totalorder %s422, %s424
      %p431 = scmp.eq.s32.totalorder %s36, 1
      %p432 = por %p430, %p431
      %p433 = scmp.ne.s32.totalorder %s424, %s425
      %p434 = scmp.eq.s32.totalorder %s36, 0
      %p435 = por %p433, %p434
      %p436 = scmp.ne.s32.totalorder %s424, %s425
      %p437 = scmp.eq.s32.totalorder %s37, 1
      %p438 = por %p436, %p437
      %p440 = scmp.ne.s32.totalorder %s425, %s439
      %p441 = scmp.eq.s32.totalorder %s37, 0
      %p442 = por %p440, %p441
      %s444 = sadd.s32 %s443, 1
      %p447 = scmp.eq.s32.totalorder %s31, 1
      %p448 = scmp.ne.s32.totalorder %s443, %s445
      %p449 = scmp.eq.s32.totalorder %s31, 0
      %p450 = por %p448, %p449
      %p451 = scmp.ne.s32.totalorder %s443, %s445
      %p452 = scmp.eq.s32.totalorder %s36, 1
      %p453 = por %p451, %p452
      %p454 = scmp.ne.s32.totalorder %s445, %s446
      %p455 = scmp.eq.s32.totalorder %s36, 0
      %p456 = por %p454, %p455
      %p457 = scmp.ne.s32.totalorder %s445, %s446
      %p458 = scmp.eq.s32.totalorder %s37, 1
      %p459 = por %p457, %p458
      %p461 = scmp.ne.s32.totalorder %s446, %s460
      %p462 = scmp.eq.s32.totalorder %s37, 0
      %p463 = por %p461, %p462
      %s465 = sadd.s32 %s464, 1
      %p468 = scmp.eq.s32.totalorder %s31, 1
      %p469 = scmp.ne.s32.totalorder %s464, %s466
      %p470 = scmp.eq.s32.totalorder %s31, 0
      %p471 = por %p469, %p470
      %p472 = scmp.ne.s32.totalorder %s464, %s466
      %p473 = scmp.eq.s32.totalorder %s36, 1
      %p474 = por %p472, %p473
      %p475 = scmp.ne.s32.totalorder %s466, %s467
      %p476 = scmp.eq.s32.totalorder %s36, 0
      %p477 = por %p475, %p476
      %p478 = scmp.ne.s32.totalorder %s466, %s467
      %p479 = scmp.eq.s32.totalorder %s37, 1
      %p480 = por %p478, %p479
      %p482 = scmp.ne.s32.totalorder %s467, %s481
      %p483 = scmp.eq.s32.totalorder %s37, 0
      %p484 = por %p482, %p483
      %s486 = sadd.s32 %s485, 1
      %p489 = scmp.eq.s32.totalorder %s31, 1
      %p490 = scmp.ne.s32.totalorder %s485, %s487
      %p491 = scmp.eq.s32.totalorder %s31, 0
      %p492 = por %p490, %p491
      %p493 = scmp.ne.s32.totalorder %s485, %s487
      %p494 = scmp.eq.s32.totalorder %s36, 1
      %p495 = por %p493, %p494
      %p496 = scmp.ne.s32.totalorder %s487, %s488
      %p497 = scmp.eq.s32.totalorder %s36, 0
      %p498 = por %p496, %p497
      %p499 = scmp.ne.s32.totalorder %s487, %s488
      %p500 = scmp.eq.s32.totalorder %s37, 1
      %p501 = por %p499, %p500
      %p503 = scmp.ne.s32.totalorder %s488, %s502
      %p504 = scmp.eq.s32.totalorder %s37, 0
      %p505 = por %p503, %p504
      %s506 = ssub.s32 %s31, %s38
      %p507 = scmp.eq.s32.totalorder %s506, 0
      %s509 = sadd.s32 %s508, 1
      %s510 = scalar_select %p507, %s508, %s509
      %p513 = pneg %p507
      %p514 = scmp.eq.s32.totalorder %s31, 1
      %p515 = por %p513, %p514
      %p516 = scmp.ne.s32.totalorder %s508, %s511
      %p517 = scmp.eq.s32.totalorder %s31, 0
      %p518 = por %p516, %p517
      %p519 = scmp.ne.s32.totalorder %s508, %s511
      %p520 = scmp.eq.s32.totalorder %s36, 1
      %p521 = por %p519, %p520
      %p522 = scmp.ne.s32.totalorder %s511, %s512
      %p523 = scmp.eq.s32.totalorder %s36, 0
      %p524 = por %p522, %p523
      %p525 = scmp.ne.s32.totalorder %s511, %s512
      %p526 = scmp.eq.s32.totalorder %s37, 1
      %p527 = por %p525, %p526
      %p529 = scmp.ne.s32.totalorder %s512, %s528
      %p530 = scmp.eq.s32.totalorder %s37, 0
      %p531 = por %p529, %p530
      %p532 = scmp.le.s32.totalorder 1, %s31
      %p533 = scmp.lt.s32.totalorder %s31, 3
      %p534 = pnand %p532, %p533
      %p535 = pneg %p534
      // Predicated region
      $region9: #{tpu_custom_call.1} parent=5 // pred_check
        _
      $region10: #{tpu_custom_call.1} parent=5 // pred_check_branch
        %537 = sbr.rel (%p534) target = $region12
      $region11: #{tpu_custom_call.1} parent=5 // pred_region
        %s538 = ssub.s32 %s31, 1
        // Predicated region
        $region13: #{tpu_custom_call.1} parent=11 // pred_check
          %p539 = pneg %p78
        $region14: #{tpu_custom_call.1} parent=11 // pred_check_branch
          %541 = sbr.rel (%p539) target = $region16
        $region15: #{tpu_custom_call.1} parent=11 // pred_region
          _
        $region16: #{tpu_custom_call.1} parent=11 // pred_fallthru
          _
        // Predicated region
        $region17: #{tpu_custom_call.1} parent=11 // pred_check
          %p542 = pneg %p99
        $region18: #{tpu_custom_call.1} parent=11 // pred_check_branch
          %544 = sbr.rel (%p542) target = $region20
        $region19: #{tpu_custom_call.1} parent=11 // pred_region
          _
        $region20: #{tpu_custom_call.1} parent=11 // pred_fallthru
          _
        // Predicated region
        $region21: #{tpu_custom_call.1} parent=11 // pred_check
          %p545 = pneg %p120
        $region22: #{tpu_custom_call.1} parent=11 // pred_check_branch
          %547 = sbr.rel (%p545) target = $region24
        $region23: #{tpu_custom_call.1} parent=11 // pred_region
          _
        $region24: #{tpu_custom_call.1} parent=11 // pred_fallthru
          _
        // Predicated region
        $region25: #{tpu_custom_call.1} parent=11 // pred_check
          %p548 = pneg %p141
        $region26: #{tpu_custom_call.1} parent=11 // pred_check_branch
          %550 = sbr.rel (%p548) target = $region28
        $region27: #{tpu_custom_call.1} parent=11 // pred_region
          _
        $region28: #{tpu_custom_call.1} parent=11 // pred_fallthru
          _
        // Predicated region
        $region29: #{tpu_custom_call.1} parent=11 // pred_check
          %p551 = pneg %p162
        $region30: #{tpu_custom_call.1} parent=11 // pred_check_branch
          %553 = sbr.rel (%p551) target = $region32
        $region31: #{tpu_custom_call.1} parent=11 // pred_region
          _
        $region32: #{tpu_custom_call.1} parent=11 // pred_fallthru
          _
        // Predicated region
        $region33: #{tpu_custom_call.1} parent=11 // pred_check
          %p554 = pneg %p183
        $region34: #{tpu_custom_call.1} parent=11 // pred_check_branch
          %556 = sbr.rel (%p554) target = $region36
        $region35: #{tpu_custom_call.1} parent=11 // pred_region
          _
        $region36: #{tpu_custom_call.1} parent=11 // pred_fallthru
          _
        // Predicated region
        $region37: #{tpu_custom_call.1} parent=11 // pred_check
          %p557 = pneg %p204
        $region38: #{tpu_custom_call.1} parent=11 // pred_check_branch
          %559 = sbr.rel (%p557) target = $region40
        $region39: #{tpu_custom_call.1} parent=11 // pred_region
          _
        $region40: #{tpu_custom_call.1} parent=11 // pred_fallthru
          _
        // Predicated region
        $region41: #{tpu_custom_call.1} parent=11 // pred_check
          %p560 = pneg %p225
        $region42: #{tpu_custom_call.1} parent=11 // pred_check_branch
          %562 = sbr.rel (%p560) target = $region44
        $region43: #{tpu_custom_call.1} parent=11 // pred_region
          _
        $region44: #{tpu_custom_call.1} parent=11 // pred_fallthru
          _
        // Predicated region
        $region45: #{tpu_custom_call.1} parent=11 // pred_check
          %p563 = pneg %p246
        $region46: #{tpu_custom_call.1} parent=11 // pred_check_branch
          %565 = sbr.rel (%p563) target = $region48
        $region47: #{tpu_custom_call.1} parent=11 // pred_region
          _
        $region48: #{tpu_custom_call.1} parent=11 // pred_fallthru
          _
        // Predicated region
        $region49: #{tpu_custom_call.1} parent=11 // pred_check
          %p566 = pneg %p267
        $region50: #{tpu_custom_call.1} parent=11 // pred_check_branch
          %568 = sbr.rel (%p566) target = $region52
        $region51: #{tpu_custom_call.1} parent=11 // pred_region
          _
        $region52: #{tpu_custom_call.1} parent=11 // pred_fallthru
          _
        // Predicated region
        $region53: #{tpu_custom_call.1} parent=11 // pred_check
          %p569 = pneg %p288
        $region54: #{tpu_custom_call.1} parent=11 // pred_check_branch
          %571 = sbr.rel (%p569) target = $region56
        $region55: #{tpu_custom_call.1} parent=11 // pred_region
          _
        $region56: #{tpu_custom_call.1} parent=11 // pred_fallthru
          _
        // Predicated region
        $region57: #{tpu_custom_call.1} parent=11 // pred_check
          %p572 = pneg %p309
        $region58: #{tpu_custom_call.1} parent=11 // pred_check_branch
          %574 = sbr.rel (%p572) target = $region60
        $region59: #{tpu_custom_call.1} parent=11 // pred_region
          _
        $region60: #{tpu_custom_call.1} parent=11 // pred_fallthru
          _
        // Predicated region
        $region61: #{tpu_custom_call.1} parent=11 // pred_check
          %p575 = pneg %p330
        $region62: #{tpu_custom_call.1} parent=11 // pred_check_branch
          %577 = sbr.rel (%p575) target = $region64
        $region63: #{tpu_custom_call.1} parent=11 // pred_region
          _
        $region64: #{tpu_custom_call.1} parent=11 // pred_fallthru
          _
        // Predicated region
        $region65: #{tpu_custom_call.1} parent=11 // pred_check
          %p578 = pneg %p351
        $region66: #{tpu_custom_call.1} parent=11 // pred_check_branch
          %580 = sbr.rel (%p578) target = $region68
        $region67: #{tpu_custom_call.1} parent=11 // pred_region
          _
        $region68: #{tpu_custom_call.1} parent=11 // pred_fallthru
          _
        // Predicated region
        $region69: #{tpu_custom_call.1} parent=11 // pred_check
          %p581 = pneg %p372
        $region70: #{tpu_custom_call.1} parent=11 // pred_check_branch
          %583 = sbr.rel (%p581) target = $region72
        $region71: #{tpu_custom_call.1} parent=11 // pred_region
          _
        $region72: #{tpu_custom_call.1} parent=11 // pred_fallthru
          _
        // Predicated region
        $region73: #{tpu_custom_call.1} parent=11 // pred_check
          %p584 = pneg %p393
        $region74: #{tpu_custom_call.1} parent=11 // pred_check_branch
          %586 = sbr.rel (%p584) target = $region76
        $region75: #{tpu_custom_call.1} parent=11 // pred_region
          _
        $region76: #{tpu_custom_call.1} parent=11 // pred_fallthru
          _
        // Predicated region
        $region77: #{tpu_custom_call.1} parent=11 // pred_check
          %p587 = pneg %p414
        $region78: #{tpu_custom_call.1} parent=11 // pred_check_branch
          %589 = sbr.rel (%p587) target = $region80
        $region79: #{tpu_custom_call.1} parent=11 // pred_region
          _
        $region80: #{tpu_custom_call.1} parent=11 // pred_fallthru
          _
        // Predicated region
        $region81: #{tpu_custom_call.1} parent=11 // pred_check
          %p590 = pneg %p435
        $region82: #{tpu_custom_call.1} parent=11 // pred_check_branch
          %592 = sbr.rel (%p590) target = $region84
        $region83: #{tpu_custom_call.1} parent=11 // pred_region
          _
        $region84: #{tpu_custom_call.1} parent=11 // pred_fallthru
          _
        // Predicated region
        $region85: #{tpu_custom_call.1} parent=11 // pred_check
          %p593 = pneg %p456
        $region86: #{tpu_custom_call.1} parent=11 // pred_check_branch
          %595 = sbr.rel (%p593) target = $region88
        $region87: #{tpu_custom_call.1} parent=11 // pred_region
          _
        $region88: #{tpu_custom_call.1} parent=11 // pred_fallthru
          _
        // Predicated region
        $region89: #{tpu_custom_call.1} parent=11 // pred_check
          %p596 = pneg %p477
        $region90: #{tpu_custom_call.1} parent=11 // pred_check_branch
          %598 = sbr.rel (%p596) target = $region92
        $region91: #{tpu_custom_call.1} parent=11 // pred_region
          _
        $region92: #{tpu_custom_call.1} parent=11 // pred_fallthru
          _
        // Predicated region
        $region93: #{tpu_custom_call.1} parent=11 // pred_check
          %p599 = pneg %p498
        $region94: #{tpu_custom_call.1} parent=11 // pred_check_branch
          %601 = sbr.rel (%p599) target = $region96
        $region95: #{tpu_custom_call.1} parent=11 // pred_region
          _
        $region96: #{tpu_custom_call.1} parent=11 // pred_fallthru
          _
      $region12: #{tpu_custom_call.1} parent=5 // pred_fallthru
        _
      %p602 = scmp.lt.s32.totalorder %s31, 2
      // Predicated region
      $region97: #{tpu_custom_call.1} parent=5 // pred_check
        %p603 = pneg %p602
      $region98: #{tpu_custom_call.1} parent=5 // pred_check_branch
        %605 = sbr.rel (%p603) target = $region100
      $region99: #{tpu_custom_call.1} parent=5 // pred_region
        // Predicated region
        $region101: #{tpu_custom_call.1} parent=99 // pred_check
          %p606 = pneg %p51
        $region102: #{tpu_custom_call.1} parent=99 // pred_check_branch
          %608 = sbr.rel (%p606) target = $region104
        $region103: #{tpu_custom_call.1} parent=99 // pred_region
          %p609 = scmp.lt.s32.totalorder %s31, 1
          %s610 = scalar_select %p609, %s31, 1
          %s611 = smul.addr %s610, 2
          %s612 = smul.addr %s611, 8
          %s613 = scalar_lea.vmem %s0, %s612
        $region104: #{tpu_custom_call.1} parent=99 // pred_fallthru
          _
      $region100: #{tpu_custom_call.1} parent=5 // pred_fallthru
        _
      %p614 = scmp.le.s32.totalorder 1, %s31
      %p615 = scmp.lt.s32.totalorder %s31, 3
      %p616 = pnand %p614, %p615
      %p617 = pneg %p616
      // Predicated region
      $region105: #{tpu_custom_call.1} parent=5 // pred_check
        _
      $region106: #{tpu_custom_call.1} parent=5 // pred_check_branch
        %619 = sbr.rel (%p616) target = $region108
      $region107: #{tpu_custom_call.1} parent=5 // pred_region
        %s620 = ssub.s32 %s31, 1
        %p621 = scmp.lt.s32.totalorder %s36, 1
        %s622 = scalar_select %p621, %s36, 1
        %s623 = smul.addr %s622, 2
        %s624 = smul.addr %s623, 8
        %s625 = scalar_lea.vmem %s0, %s624
        %p626 = pneg %p57
        %p627 = pneg %p54
        %p628 = pneg %p78
        %p629 = pneg %p75
        %p630 = pneg %p99
        %p631 = pneg %p96
        %p632 = pneg %p120
        %p633 = pneg %p117
        %p634 = pneg %p141
        %p635 = pneg %p138
        %p636 = pneg %p162
        %p637 = pneg %p159
        %p638 = pneg %p183
        %p639 = pneg %p180
        %p640 = pneg %p204
        %p641 = pneg %p201
        %p642 = pneg %p225
        %p643 = pneg %p222
        %p644 = pneg %p246
        %p645 = pneg %p243
        %p646 = pneg %p267
        %p647 = pneg %p264
        %p648 = pneg %p288
        %p649 = pneg %p285
        %p650 = pneg %p309
        %p651 = pneg %p306
        %p652 = pneg %p330
        %p653 = pneg %p327
        %p654 = pneg %p351
        %p655 = pneg %p348
        %p656 = pneg %p372
        %p657 = pneg %p369
        %p658 = pneg %p393
        %p659 = pneg %p390
        %p660 = pneg %p414
        %p661 = pneg %p411
        %p662 = pneg %p435
        %p663 = pneg %p432
        %p664 = pneg %p456
        %p665 = pneg %p453
        %p666 = pneg %p477
        %p667 = pneg %p474
        %p668 = pneg %p498
        %p669 = pneg %p495
        %p670 = pneg %p524
        %p671 = pneg %p521
        %s672 = sand.u32 %s511, 1
        %s673 = scalar_lea.sflag [#allocation3], %s672
        %s674 = sand.u32 %s511, 1
        %s675 = smul.addr %s674, 16
        %s676 = scalar_lea.vmem [#allocation2], %s675
        %p677 = scmp.lt.s32.totalorder %s36, 1
        %s678 = scalar_select %p677, %s36, 1
        %s679 = smul.addr %s678, 2
        %s680 = smul.addr %s679, 8
        %s681 = scalar_lea.vmem %s0, %s680
        %v683 = vld [vmem:[%s681] sm:$0xff]
        %v684 = vld [vmem:[%s681 + $0x8] sm:$0xff]
        %687 = vrot.lane.b32.xlu0 %v683, 8
        %v688 = vpop.permute.xlu0 %687
        %689 = vrot.lane.b32.xlu0 %v684, 8
        %v690 = vpop.permute.xlu0 %689
        %vm693 = vcmask 64512
        %v694 = vsel %vm693, 0.0, %v688
        %v695 = vsel %vm693, 0.0, %v690
        %v696 = vsel %vm693, %v688, 0.0
        %v697 = vsel %vm693, %v690, 0.0
        %vm702 = vcmask 1040384
        %v703 = vrot.slane %v694, 7
        %v704 = vrot.slane %v696, 7
        %v705 = vrot.slane %v695, 7
        %v706 = vsel %vm702, %v703, %v705
        %v707 = vrot.slane %v697, 7
        %v708 = vsel %vm702, %v704, %v707
        %v715 = vsel %vm702, 0.0, %v703
        %v716 = vsel %vm702, 0.0, %v704
        %v717 = vsel %vm702, %v705, 0.0
        %v718 = vsel %vm702, %v707, 0.0
        %v719 = vpack.c.bf16 %v706, %v715
        %v720 = vpack.c.bf16 %v708, %v716
        %v721 = vld [vmem:[%s1] sm:$0xf]
        %v722 = vld [vmem:[%s1 + $0x4] sm:$0xf]
        %v723 = vld [vmem:[%s1 + $0x8] sm:$0xf]
        %v724 = vld [vmem:[%s1 + $0xc] sm:$0xf]
        %v725 = vld [vmem:[%s1 + $0x10] sm:$0xf]
        %v726 = vld [vmem:[%s1 + $0x14] sm:$0xf]
        %v727 = vld [vmem:[%s1 + $0x18] sm:$0xf]
        %v728 = vld [vmem:[%s1 + $0x1c] sm:$0xf]
        %v729 = vld [vmem:[%s1 + $0x20] sm:$0xf]
        %v730 = vld [vmem:[%s1 + $0x24] sm:$0xf]
        %v731 = vld [vmem:[%s1 + $0x28] sm:$0xf]
        %v732 = vld [vmem:[%s1 + $0x2c] sm:$0xf]
        %v733 = vld [vmem:[%s1 + $0x30] sm:$0xf]
        %v734 = vld [vmem:[%s1 + $0x34] sm:$0xf]
        %v735 = vld [vmem:[%s1 + $0x38] sm:$0xf]
        %v736 = vld [vmem:[%s1 + $0x3c] sm:$0xf]
        %v737 = vld [vmem:[%s1 + $0x40] sm:$0xf]
        %v738 = vld [vmem:[%s1 + $0x44] sm:$0xf]
        %v739 = vpack.c.bf16 %v717, %v717
        %v740 = vpack.c.bf16 %v718, %v718
        %s741 = scalar_lea.vmem %s1, 72
        %v742 = vld [vmem:[%s741] sm:$0xf]
        %v743 = vld [vmem:[%s741 + $0x4] sm:$0xf]
        %v744 = vld [vmem:[%s741 + $0x8] sm:$0xf]
        %v745 = vld [vmem:[%s741 + $0xc] sm:$0xf]
        %v746 = vld [vmem:[%s741 + $0x10] sm:$0xf]
        %v747 = vld [vmem:[%s741 + $0x14] sm:$0xf]
        %v748 = vld [vmem:[%s741 + $0x18] sm:$0xf]
        %v749 = vld [vmem:[%s741 + $0x1c] sm:$0xf]
        %v750 = vld [vmem:[%s741 + $0x20] sm:$0xf]
        %v751 = vld [vmem:[%s741 + $0x24] sm:$0xf]
        %v752 = vld [vmem:[%s741 + $0x28] sm:$0xf]
        %v753 = vld [vmem:[%s741 + $0x2c] sm:$0xf]
        %v754 = vld [vmem:[%s741 + $0x30] sm:$0xf]
        %v755 = vld [vmem:[%s741 + $0x34] sm:$0xf]
        %v756 = vld [vmem:[%s741 + $0x38] sm:$0xf]
        %v757 = vld [vmem:[%s741 + $0x3c] sm:$0xf]
        %v758 = vld [vmem:[%s741 + $0x40] sm:$0xf]
        %v759 = vld [vmem:[%s741 + $0x44] sm:$0xf]
        %vm760 = vsmask.f32 7424
        %v762 = vshrl.u32 %v719, 16
        %v764 = vshll.u32 %v719, 16
        %v766 = vrot.slane %v764, 1
        %v767 = vor.u32 %v762, %v766
        %v769 = vshll.u32 %v739, 16
        %v771 = vrot.slane %v769, 1
        %v772 = vsel %vm760, %v767, %v771
        %v774 = vshrl.u32 %v720, 16
        %v776 = vshll.u32 %v720, 16
        %v778 = vrot.slane %v776, 1
        %v779 = vor.u32 %v774, %v778
        %v781 = vshll.u32 %v740, 16
        %v783 = vrot.slane %v781, 1
        %v784 = vsel %vm760, %v779, %v783
        %v804 = vunpack.c.l.b16 %v742
        %v805 = vunpack.c.l.b16 %v743
        %v806 = vunpack.c.l.b16 %v744
        %v807 = vunpack.c.l.b16 %v745
        %v808 = vunpack.c.l.b16 %v746
        %v809 = vunpack.c.l.b16 %v747
        %v810 = vunpack.c.l.b16 %v748
        %v811 = vunpack.c.l.b16 %v749
        %v812 = vunpack.c.l.b16 %v750
        %v813 = vunpack.c.l.b16 %v751
        %v814 = vunpack.c.l.b16 %v752
        %v815 = vunpack.c.l.b16 %v753
        %v816 = vunpack.c.l.b16 %v754
        %v817 = vunpack.c.l.b16 %v755
        %v818 = vunpack.c.l.b16 %v756
        %v819 = vunpack.c.l.b16 %v757
        %v820 = vunpack.c.l.b16 %v758
        %v821 = vunpack.c.l.b16 %v759
        %v822 = vpack.c.b16 %v805, %v804
        %v823 = vpack.c.b16 %v807, %v806
        %v824 = vpack.c.b16 %v809, %v808
        %v825 = vpack.c.b16 %v811, %v810
        %v826 = vpack.c.b16 %v813, %v812
        %v827 = vpack.c.b16 %v815, %v814
        %v828 = vpack.c.b16 %v817, %v816
        %v829 = vpack.c.b16 %v819, %v818
        %v830 = vpack.c.b16 %v821, %v820
        %vm840 = vcmask 130048
        %v842 = vsel %vm840, %v784, 0
        %844 = vmatprep.subr.bf16.mxu0 0
        %845 = vmatpush1.bf16.msra.mxu0 %v822
        %846 = vmatprep.subr.bf16.mxu0 0
        %847 = vmatpush1.bf16.msra.mxu0 %v823
        %848 = vmatprep.subr.bf16.mxu0 0
        %849 = vmatpush1.bf16.msra.mxu0 %v824
        %850 = vmatprep.subr.bf16.mxu0 0
        %851 = vmatpush1.bf16.msra.mxu0 %v825
        %852 = vmatprep.subr.bf16.mxu0 0
        %853 = vmatpush1.bf16.msra.mxu0 %v826
        %854 = vmatprep.subr.bf16.mxu0 0
        %855 = vmatpush1.bf16.msra.mxu0 %v827
        %856 = vmatprep.subr.bf16.mxu0 0
        %857 = vmatpush1.bf16.msra.mxu0 %v828
        %858 = vmatprep.subr.bf16.mxu0 0
        %859 = vmatpush1.bf16.msra.mxu0 %v829
        %860 = vmatprep.subr.bf16.mxu0 0
        %861 = vmatpush1.bf16.msra.mxu0 %v830
        %862 = vmatprep.subr.bf16.mxu0 0
        %863 = vmatpush1.bf16.msra.mxu0 0
        %864 = vmatprep.subr.bf16.mxu0 0
        %865 = vmatpush1.bf16.msra.mxu0 0
        %866 = vmatprep.subr.bf16.mxu0 0
        %867 = vmatpush1.bf16.msra.mxu0 0
        %868 = vmatprep.subr.bf16.mxu0 0
        %869 = vmatpush1.bf16.msra.mxu0 0
        %870 = vmatprep.subr.bf16.mxu0 0
        %871 = vmatpush1.bf16.msra.mxu0 0
        %872 = vmatprep.subr.bf16.mxu0 0
        %873 = vmatpush1.bf16.msra.mxu0 0
        %874 = vmatprep.subr.bf16.mxu0 0
        %875 = vmatpush1.bf16.msra.mxu0 0
        %876 = vmatprep.mubr.bf16.mxu0 %v842
        %877 = vmatmul.mubr.bf16.gmra.mrb[0].mxu0 %v772
        %v878 = vpop.f32.mrb[0].mxu0
        %v879 = vadd.f32 0.0, %v878
        %v880 = vpop.f32.mrb[0].mxu0
        %v881 = vpop.f32.mrb[0].mxu0
        %v882 = vadd.f32 0.0, %v881
        %v883 = vpop.f32.mrb[0].mxu0
        %884 = vdwg.mxu0
        %v903 = vunpack.c.l.b16 %v721
        %v904 = vunpack.c.l.b16 %v722
        %v905 = vunpack.c.l.b16 %v723
        %v906 = vunpack.c.l.b16 %v724
        %v907 = vunpack.c.l.b16 %v725
        %v908 = vunpack.c.l.b16 %v726
        %v909 = vunpack.c.l.b16 %v727
        %v910 = vunpack.c.l.b16 %v728
        %v911 = vunpack.c.l.b16 %v729
        %v912 = vunpack.c.l.b16 %v730
        %v913 = vunpack.c.l.b16 %v731
        %v914 = vunpack.c.l.b16 %v732
        %v915 = vunpack.c.l.b16 %v733
        %v916 = vunpack.c.l.b16 %v734
        %v917 = vunpack.c.l.b16 %v735
        %v918 = vunpack.c.l.b16 %v736
        %v919 = vunpack.c.l.b16 %v737
        %v920 = vunpack.c.l.b16 %v738
        %v921 = vpack.c.b16 %v904, %v903
        %v922 = vpack.c.b16 %v906, %v905
        %v923 = vpack.c.b16 %v908, %v907
        %v924 = vpack.c.b16 %v910, %v909
        %v925 = vpack.c.b16 %v912, %v911
        %v926 = vpack.c.b16 %v914, %v913
        %v927 = vpack.c.b16 %v916, %v915
        %v928 = vpack.c.b16 %v918, %v917
        %v929 = vpack.c.b16 %v920, %v919
        %v939 = vsel %vm840, %v720, 0
        %941 = vmatprep.subr.bf16.mxu0 0
        %942 = vmatpush1.bf16.msra.mxu0 %v921
        %943 = vmatprep.subr.bf16.mxu0 0
        %944 = vmatpush1.bf16.msra.mxu0 %v922
        %945 = vmatprep.subr.bf16.mxu0 0
        %946 = vmatpush1.bf16.msra.mxu0 %v923
        %947 = vmatprep.subr.bf16.mxu0 0
        %948 = vmatpush1.bf16.msra.mxu0 %v924
        %949 = vmatprep.subr.bf16.mxu0 0
        %950 = vmatpush1.bf16.msra.mxu0 %v925
        %951 = vmatprep.subr.bf16.mxu0 0
        %952 = vmatpush1.bf16.msra.mxu0 %v926
        %953 = vmatprep.subr.bf16.mxu0 0
        %954 = vmatpush1.bf16.msra.mxu0 %v927
        %955 = vmatprep.subr.bf16.mxu0 0
        %956 = vmatpush1.bf16.msra.mxu0 %v928
        %957 = vmatprep.subr.bf16.mxu0 0
        %958 = vmatpush1.bf16.msra.mxu0 %v929
        %959 = vmatprep.subr.bf16.mxu0 0
        %960 = vmatpush1.bf16.msra.mxu0 0
        %961 = vmatprep.subr.bf16.mxu0 0
        %962 = vmatpush1.bf16.msra.mxu0 0
        %963 = vmatprep.subr.bf16.mxu0 0
        %964 = vmatpush1.bf16.msra.mxu0 0
        %965 = vmatprep.subr.bf16.mxu0 0
        %966 = vmatpush1.bf16.msra.mxu0 0
        %967 = vmatprep.subr.bf16.mxu0 0
        %968 = vmatpush1.bf16.msra.mxu0 0
        %969 = vmatprep.subr.bf16.mxu0 0
        %970 = vmatpush1.bf16.msra.mxu0 0
        %971 = vmatprep.subr.bf16.mxu0 0
        %972 = vmatpush1.bf16.msra.mxu0 0
        %973 = vmatprep.mubr.bf16.mxu0 %v939
        %974 = vmatmul.mubr.bf16.gmra.mrb[0].mxu0 %v719
        %v975 = vpop.f32.mrb[0].mxu0
        %v976 = vadd.f32 %v879, %v975
        %v977 = vpop.f32.mrb[0].mxu0
        %v978 = vpop.f32.mrb[0].mxu0
        %v979 = vadd.f32 %v882, %v978
        %v980 = vpop.f32.mrb[0].mxu0
        %981 = vdwg.mxu0
        %s982 = scalar_lea.vmem %s1, 144
        %v983 = vld [vmem:[%s982] sm:$0xf]
        %v984 = vld [vmem:[%s982 + $0x4] sm:$0xf]
        %v985 = vld [vmem:[%s982 + $0x8] sm:$0xf]
        %v986 = vld [vmem:[%s982 + $0xc] sm:$0xf]
        %v987 = vld [vmem:[%s982 + $0x10] sm:$0xf]
        %v988 = vld [vmem:[%s982 + $0x14] sm:$0xf]
        %v989 = vld [vmem:[%s982 + $0x18] sm:$0xf]
        %v990 = vld [vmem:[%s982 + $0x1c] sm:$0xf]
        %v991 = vld [vmem:[%s982 + $0x20] sm:$0xf]
        %v992 = vld [vmem:[%s982 + $0x24] sm:$0xf]
        %v993 = vld [vmem:[%s982 + $0x28] sm:$0xf]
        %v994 = vld [vmem:[%s982 + $0x2c] sm:$0xf]
        %v995 = vld [vmem:[%s982 + $0x30] sm:$0xf]
        %v996 = vld [vmem:[%s982 + $0x34] sm:$0xf]
        %v997 = vld [vmem:[%s982 + $0x38] sm:$0xf]
        %v998 = vld [vmem:[%s982 + $0x3c] sm:$0xf]
        %v999 = vld [vmem:[%s982 + $0x40] sm:$0xf]
        %v1000 = vld [vmem:[%s982 + $0x44] sm:$0xf]
        %vm1005 = vcmask 1046528
        %v1006 = vrot.slane %v719, 1
        %v1007 = vrot.slane %v739, 1
        %v1008 = vsel %vm1005, %v1006, %v1007
        %v1009 = vrot.slane %v720, 1
        %v1010 = vrot.slane %v740, 1
        %v1011 = vsel %vm1005, %v1009, %v1010
        %v1031 = vunpack.c.l.b16 %v983
        %v1032 = vunpack.c.l.b16 %v984
        %v1033 = vunpack.c.l.b16 %v985
        %v1034 = vunpack.c.l.b16 %v986
        %v1035 = vunpack.c.l.b16 %v987
        %v1036 = vunpack.c.l.b16 %v988
        %v1037 = vunpack.c.l.b16 %v989
        %v1038 = vunpack.c.l.b16 %v990
        %v1039 = vunpack.c.l.b16 %v991
        %v1040 = vunpack.c.l.b16 %v992
        %v1041 = vunpack.c.l.b16 %v993
        %v1042 = vunpack.c.l.b16 %v994
        %v1043 = vunpack.c.l.b16 %v995
        %v1044 = vunpack.c.l.b16 %v996
        %v1045 = vunpack.c.l.b16 %v997
        %v1046 = vunpack.c.l.b16 %v998
        %v1047 = vunpack.c.l.b16 %v999
        %v1048 = vunpack.c.l.b16 %v1000
        %v1049 = vpack.c.b16 %v1032, %v1031
        %v1050 = vpack.c.b16 %v1034, %v1033
        %v1051 = vpack.c.b16 %v1036, %v1035
        %v1052 = vpack.c.b16 %v1038, %v1037
        %v1053 = vpack.c.b16 %v1040, %v1039
        %v1054 = vpack.c.b16 %v1042, %v1041
        %v1055 = vpack.c.b16 %v1044, %v1043
        %v1056 = vpack.c.b16 %v1046, %v1045
        %v1057 = vpack.c.b16 %v1048, %v1047
        %v1068 = vsel %vm840, %v1011, 0
        %1070 = vmatprep.subr.bf16.mxu0 0
        %1071 = vmatpush1.bf16.msra.mxu0 %v1049
        %1072 = vmatprep.subr.bf16.mxu0 0
        %1073 = vmatpush1.bf16.msra.mxu0 %v1050
        %1074 = vmatprep.subr.bf16.mxu0 0
        %1075 = vmatpush1.bf16.msra.mxu0 %v1051
        %1076 = vmatprep.subr.bf16.mxu0 0
        %1077 = vmatpush1.bf16.msra.mxu0 %v1052
        %1078 = vmatprep.subr.bf16.mxu0 0
        %1079 = vmatpush1.bf16.msra.mxu0 %v1053
        %1080 = vmatprep.subr.bf16.mxu0 0
        %1081 = vmatpush1.bf16.msra.mxu0 %v1054
        %1082 = vmatprep.subr.bf16.mxu0 0
        %1083 = vmatpush1.bf16.msra.mxu0 %v1055
        %1084 = vmatprep.subr.bf16.mxu0 0
        %1085 = vmatpush1.bf16.msra.mxu0 %v1056
        %1086 = vmatprep.subr.bf16.mxu0 0
        %1087 = vmatpush1.bf16.msra.mxu0 %v1057
        %1088 = vmatprep.subr.bf16.mxu0 0
        %1089 = vmatpush1.bf16.msra.mxu0 0
        %1090 = vmatprep.subr.bf16.mxu0 0
        %1091 = vmatpush1.bf16.msra.mxu0 0
        %1092 = vmatprep.subr.bf16.mxu0 0
        %1093 = vmatpush1.bf16.msra.mxu0 0
        %1094 = vmatprep.subr.bf16.mxu0 0
        %1095 = vmatpush1.bf16.msra.mxu0 0
        %1096 = vmatprep.subr.bf16.mxu0 0
        %1097 = vmatpush1.bf16.msra.mxu0 0
        %1098 = vmatprep.subr.bf16.mxu0 0
        %1099 = vmatpush1.bf16.msra.mxu0 0
        %1100 = vmatprep.subr.bf16.mxu0 0
        %1101 = vmatpush1.bf16.msra.mxu0 0
        %1102 = vmatprep.mubr.bf16.mxu0 %v1068
        %1103 = vmatmul.mubr.bf16.gmra.mrb[0].mxu0 %v1008
        %v1104 = vpop.f32.mrb[0].mxu0
        %v1105 = vadd.f32 0.0, %v1104
        %v1106 = vpop.f32.mrb[0].mxu0
        %v1107 = vpop.f32.mrb[0].mxu0
        %v1108 = vadd.f32 0.0, %v1107
        %v1109 = vpop.f32.mrb[0].mxu0
        %1110 = vdwg.mxu0
        %v1111 = vadd.f32 %v976, %v1105
        %v1112 = vadd.f32 %v979, %v1108
        %v1113 = vld [vmem:[%s2] sm:$0x1]
        %v1115 = vlaneseq
        %v1116 = vshrl.u32 %v1115, 7
        %v1117 = vsub.s32 0, %v1116
        %v1118 = vrot.slane %v1113, %v1117
        %v1120 = vmul.f32 %v1111, %v1118
        %v1121 = vmul.f32 %v1112, %v1118
        %v1122 = vld [vmem:[%s3] sm:$0x1]
        %v1124 = vlaneseq
        %v1125 = vshrl.u32 %v1124, 7
        %v1126 = vsub.s32 0, %v1125
        %v1127 = vrot.slane %v1122, %v1126
        %v1129 = vadd.f32 %v1120, %v1127
        %v1130 = vadd.f32 %v1121, %v1127
        %v1131 = vxor.u32 %v1129, 2147483648
        %v1132 = vxor.u32 %v1130, 2147483648
        %v1133 = vmul.f32 %v1131, 1.442695
        %v1134 = vpow.pop %v1133
        %v1135 = vmul.f32 %v1132, 1.442695
        %v1136 = vpow.pop %v1135
        %v1137 = vadd.f32 %v1134, 1.0
        %v1138 = vadd.f32 %v1136, 1.0
        %v1139 = vrcp.pop %v1137
        %v1140 = vmul.f32 1.0, %v1139
        %v1141 = vrcp.pop %v1138
        %v1142 = vmul.f32 1.0, %v1141
        %v1143 = vmul.f32 %v1129, %v1140
        %v1144 = vmul.f32 %v1130, %v1142
        %1147 = vrot.lane.b32.xlu0 %v1143, 12
        %v1148 = vpop.permute.xlu0 %1147
        %1149 = vrot.lane.b32.xlu0 %v1144, 12
        %v1150 = vpop.permute.xlu0 %1149
        %vm1153 = vcmask 97280
        %v1154 = vsel %vm1153, 0.0, %v1148
        %v1155 = vsel %vm1153, 0.0, %v1150
        %vm1156 = vcmask 621568
        %v1157 = vsel %vm1156, %v1154, 0.0
        %v1158 = vsel %vm1156, %v1155, 0.0
        %vm1161 = vcmask 1042432
        %v1162 = vrot.slane %v1157, 5
        %v1163 = vrot.slane %v1158, 5
        %v1164 = vsel %vm1161, %v1162, %v1163
        %v1168 = vsel %vm1161, 0.0, %v1162
        %v1169 = vsel %vm1161, %v1163, 0.0
        %v1170 = vpack.c.bf16 %v1164, %v1168
        %v1171 = vpack.c.bf16 %v1169, %v1169
        %v1172 = vld [vmem:[%s4] sm:$0xf]
        %v1173 = vld [vmem:[%s4 + $0x4] sm:$0xf]
        %v1174 = vld [vmem:[%s4 + $0x8] sm:$0xf]
        %v1175 = vld [vmem:[%s4 + $0xc] sm:$0xf]
        %v1176 = vld [vmem:[%s4 + $0x10] sm:$0xf]
        %v1177 = vld [vmem:[%s4 + $0x14] sm:$0xf]
        %v1178 = vld [vmem:[%s4 + $0x18] sm:$0xf]
        %v1179 = vld [vmem:[%s4 + $0x1c] sm:$0xf]
        %v1180 = vld [vmem:[%s4 + $0x20] sm:$0xf]
        %v1181 = vld [vmem:[%s4 + $0x24] sm:$0xf]
        %v1182 = vld [vmem:[%s4 + $0x28] sm:$0xf]
        %s1183 = scalar_lea.vmem %s4, 44
        %v1184 = vld [vmem:[%s1183] sm:$0xf]
        %v1185 = vld [vmem:[%s1183 + $0x4] sm:$0xf]
        %v1186 = vld [vmem:[%s1183 + $0x8] sm:$0xf]
        %v1187 = vld [vmem:[%s1183 + $0xc] sm:$0xf]
        %v1188 = vld [vmem:[%s1183 + $0x10] sm:$0xf]
        %v1189 = vld [vmem:[%s1183 + $0x14] sm:$0xf]
        %v1190 = vld [vmem:[%s1183 + $0x18] sm:$0xf]
        %v1191 = vld [vmem:[%s1183 + $0x1c] sm:$0xf]
        %v1192 = vld [vmem:[%s1183 + $0x20] sm:$0xf]
        %v1193 = vld [vmem:[%s1183 + $0x24] sm:$0xf]
        %v1194 = vld [vmem:[%s1183 + $0x28] sm:$0xf]
        %vm1195 = vsmask.f32 6400
        %v1197 = vshrl.u32 %v1170, 16
        %v1199 = vrot.slane %v1197, 1
        %v1200 = vshll.u32 %v1170, 16
        %v1202 = vrot.slane %v1200, 2
        %v1203 = vor.u32 %v1199, %v1202
        %v1205 = vshrl.u32 %v1171, 16
        %v1207 = vrot.slane %v1205, 1
        %v1208 = vshll.u32 %v1171, 16
        %v1210 = vrot.slane %v1208, 2
        %v1211 = vor.u32 %v1207, %v1210
        %v1212 = vsel %vm1195, %v1203, %v1211
        %v1224 = vunpack.c.l.b16 %v1184
        %v1225 = vunpack.c.l.b16 %v1185
        %v1226 = vunpack.c.l.b16 %v1186
        %v1227 = vunpack.c.l.b16 %v1187
        %v1228 = vunpack.c.l.b16 %v1188
        %v1229 = vunpack.c.l.b16 %v1189
        %v1230 = vunpack.c.l.b16 %v1190
        %v1231 = vunpack.c.l.b16 %v1191
        %v1232 = vunpack.c.l.b16 %v1192
        %v1233 = vunpack.c.l.b16 %v1193
        %v1234 = vunpack.c.l.b16 %v1194
        %v1235 = vpack.c.b16 %v1225, %v1224
        %v1236 = vpack.c.b16 %v1227, %v1226
        %v1237 = vpack.c.b16 %v1229, %v1228
        %v1238 = vpack.c.b16 %v1231, %v1230
        %v1239 = vpack.c.b16 %v1233, %v1232
        %v1240 = vpack.c.b16 %v1234, %v1234
        %vm1246 = vcmask 719872
        %v1248 = vsel %vm1246, %v1212, 0
        %vm1250 = vcmask 1043456
        %v1252 = vsel %vm1250, %v1240, 0
        %1254 = vmatprep.subr.bf16.mxu0 0
        %1255 = vmatpush1.bf16.msra.mxu0 %v1235
        %1256 = vmatprep.subr.bf16.mxu0 0
        %1257 = vmatpush1.bf16.msra.mxu0 %v1236
        %1258 = vmatprep.subr.bf16.mxu0 0
        %1259 = vmatpush1.bf16.msra.mxu0 %v1237
        %1260 = vmatprep.subr.bf16.mxu0 0
        %1261 = vmatpush1.bf16.msra.mxu0 %v1238
        %1262 = vmatprep.subr.bf16.mxu0 0
        %1263 = vmatpush1.bf16.msra.mxu0 %v1239
        %1264 = vmatprep.subr.bf16.mxu0 0
        %1265 = vmatpush1.bf16.msra.mxu0 %v1252
        %1266 = vmatprep.subr.bf16.mxu0 0
        %1267 = vmatpush1.bf16.msra.mxu0 0
        %1268 = vmatprep.subr.bf16.mxu0 0
        %1269 = vmatpush1.bf16.msra.mxu0 0
        %1270 = vmatprep.subr.bf16.mxu0 0
        %1271 = vmatpush1.bf16.msra.mxu0 0
        %1272 = vmatprep.subr.bf16.mxu0 0
        %1273 = vmatpush1.bf16.msra.mxu0 0
        %1274 = vmatprep.subr.bf16.mxu0 0
        %1275 = vmatpush1.bf16.msra.mxu0 0
        %1276 = vmatprep.subr.bf16.mxu0 0
        %1277 = vmatpush1.bf16.msra.mxu0 0
        %1278 = vmatprep.subr.bf16.mxu0 0
        %1279 = vmatpush1.bf16.msra.mxu0 0
        %1280 = vmatprep.subr.bf16.mxu0 0
        %1281 = vmatpush1.bf16.msra.mxu0 0
        %1282 = vmatprep.subr.bf16.mxu0 0
        %1283 = vmatpush1.bf16.msra.mxu0 0
        %1284 = vmatprep.subr.bf16.mxu0 0
        %1285 = vmatpush1.bf16.msra.mxu0 0
        %1286 = vmatprep.mubr.bf16.mxu0 0
        %1287 = vmatmul.mubr.bf16.gmra.mrb[0].mxu0 %v1248
        %v1288 = vpop.f32.mrb[0].mxu0
        %v1289 = vadd.f32 0.0, %v1288
        %v1290 = vpop.f32.mrb[0].mxu0
        %v1291 = vpop.f32.mrb[0].mxu0
        %v1292 = vadd.f32 0.0, %v1291
        %v1293 = vpop.f32.mrb[0].mxu0
        %1294 = vdwg.mxu0
        %v1297 = vrot.slane %v1170, 1
        %v1298 = vrot.slane %v1171, 1
        %v1299 = vsel %vm1005, %v1297, %v1298
        %v1311 = vunpack.c.l.b16 %v1172
        %v1312 = vunpack.c.l.b16 %v1173
        %v1313 = vunpack.c.l.b16 %v1174
        %v1314 = vunpack.c.l.b16 %v1175
        %v1315 = vunpack.c.l.b16 %v1176
        %v1316 = vunpack.c.l.b16 %v1177
        %v1317 = vunpack.c.l.b16 %v1178
        %v1318 = vunpack.c.l.b16 %v1179
        %v1319 = vunpack.c.l.b16 %v1180
        %v1320 = vunpack.c.l.b16 %v1181
        %v1321 = vunpack.c.l.b16 %v1182
        %v1322 = vpack.c.b16 %v1312, %v1311
        %v1323 = vpack.c.b16 %v1314, %v1313
        %v1324 = vpack.c.b16 %v1316, %v1315
        %v1325 = vpack.c.b16 %v1318, %v1317
        %v1326 = vpack.c.b16 %v1320, %v1319
        %v1327 = vpack.c.b16 %v1321, %v1321
        %v1334 = vsel %vm1246, %v1299, 0
        %v1337 = vsel %vm1250, %v1327, 0
        %1339 = vmatprep.subr.bf16.mxu0 0
        %1340 = vmatpush1.bf16.msra.mxu0 %v1322
        %1341 = vmatprep.subr.bf16.mxu0 0
        %1342 = vmatpush1.bf16.msra.mxu0 %v1323
        %1343 = vmatprep.subr.bf16.mxu0 0
        %1344 = vmatpush1.bf16.msra.mxu0 %v1324
        %1345 = vmatprep.subr.bf16.mxu0 0
        %1346 = vmatpush1.bf16.msra.mxu0 %v1325
        %1347 = vmatprep.subr.bf16.mxu0 0
        %1348 = vmatpush1.bf16.msra.mxu0 %v1326
        %1349 = vmatprep.subr.bf16.mxu0 0
        %1350 = vmatpush1.bf16.msra.mxu0 %v1337
        %1351 = vmatprep.subr.bf16.mxu0 0
        %1352 = vmatpush1.bf16.msra.mxu0 0
        %1353 = vmatprep.subr.bf16.mxu0 0
        %1354 = vmatpush1.bf16.msra.mxu0 0
        %1355 = vmatprep.subr.bf16.mxu0 0
        %1356 = vmatpush1.bf16.msra.mxu0 0
        %1357 = vmatprep.subr.bf16.mxu0 0
        %1358 = vmatpush1.bf16.msra.mxu0 0
        %1359 = vmatprep.subr.bf16.mxu0 0
        %1360 = vmatpush1.bf16.msra.mxu0 0
        %1361 = vmatprep.subr.bf16.mxu0 0
        %1362 = vmatpush1.bf16.msra.mxu0 0
        %1363 = vmatprep.subr.bf16.mxu0 0
        %1364 = vmatpush1.bf16.msra.mxu0 0
        %1365 = vmatprep.subr.bf16.mxu0 0
        %1366 = vmatpush1.bf16.msra.mxu0 0
        %1367 = vmatprep.subr.bf16.mxu0 0
        %1368 = vmatpush1.bf16.msra.mxu0 0
        %1369 = vmatprep.subr.bf16.mxu0 0
        %1370 = vmatpush1.bf16.msra.mxu0 0
        %1371 = vmatprep.mubr.bf16.mxu0 0
        %1372 = vmatmul.mubr.bf16.gmra.mrb[0].mxu0 %v1334
        %v1373 = vpop.f32.mrb[0].mxu0
        %v1374 = vadd.f32 %v1289, %v1373
        %v1375 = vpop.f32.mrb[0].mxu0
        %v1376 = vpop.f32.mrb[0].mxu0
        %v1377 = vadd.f32 %v1292, %v1376
        %v1378 = vpop.f32.mrb[0].mxu0
        %1379 = vdwg.mxu0
        %s1380 = scalar_lea.vmem %s4, 88
        %v1381 = vld [vmem:[%s1380] sm:$0xf]
        %v1382 = vld [vmem:[%s1380 + $0x4] sm:$0xf]
        %v1383 = vld [vmem:[%s1380 + $0x8] sm:$0xf]
        %v1384 = vld [vmem:[%s1380 + $0xc] sm:$0xf]
        %v1385 = vld [vmem:[%s1380 + $0x10] sm:$0xf]
        %v1386 = vld [vmem:[%s1380 + $0x14] sm:$0xf]
        %v1387 = vld [vmem:[%s1380 + $0x18] sm:$0xf]
        %v1388 = vld [vmem:[%s1380 + $0x1c] sm:$0xf]
        %v1389 = vld [vmem:[%s1380 + $0x20] sm:$0xf]
        %v1390 = vld [vmem:[%s1380 + $0x24] sm:$0xf]
        %v1391 = vld [vmem:[%s1380 + $0x28] sm:$0xf]
        %vm1392 = vcmask 1045504
        %v1393 = vrot.slane %v1170, 2
        %v1394 = vrot.slane %v1171, 2
        %v1395 = vsel %vm1392, %v1393, %v1394
        %v1407 = vunpack.c.l.b16 %v1381
        %v1408 = vunpack.c.l.b16 %v1382
        %v1409 = vunpack.c.l.b16 %v1383
        %v1410 = vunpack.c.l.b16 %v1384
        %v1411 = vunpack.c.l.b16 %v1385
        %v1412 = vunpack.c.l.b16 %v1386
        %v1413 = vunpack.c.l.b16 %v1387
        %v1414 = vunpack.c.l.b16 %v1388
        %v1415 = vunpack.c.l.b16 %v1389
        %v1416 = vunpack.c.l.b16 %v1390
        %v1417 = vunpack.c.l.b16 %v1391
        %v1418 = vpack.c.b16 %v1408, %v1407
        %v1419 = vpack.c.b16 %v1410, %v1409
        %v1420 = vpack.c.b16 %v1412, %v1411
        %v1421 = vpack.c.b16 %v1414, %v1413
        %v1422 = vpack.c.b16 %v1416, %v1415
        %v1423 = vpack.c.b16 %v1417, %v1417
        %v1430 = vsel %vm1246, %v1395, 0
        %v1433 = vsel %vm1250, %v1423, 0
        %1435 = vmatprep.subr.bf16.mxu0 0
        %1436 = vmatpush1.bf16.msra.mxu0 %v1418
        %1437 = vmatprep.subr.bf16.mxu0 0
        %1438 = vmatpush1.bf16.msra.mxu0 %v1419
        %1439 = vmatprep.subr.bf16.mxu0 0
        %1440 = vmatpush1.bf16.msra.mxu0 %v1420
        %1441 = vmatprep.subr.bf16.mxu0 0
        %1442 = vmatpush1.bf16.msra.mxu0 %v1421
        %1443 = vmatprep.subr.bf16.mxu0 0
        %1444 = vmatpush1.bf16.msra.mxu0 %v1422
        %1445 = vmatprep.subr.bf16.mxu0 0
        %1446 = vmatpush1.bf16.msra.mxu0 %v1433
        %1447 = vmatprep.subr.bf16.mxu0 0
        %1448 = vmatpush1.bf16.msra.mxu0 0
        %1449 = vmatprep.subr.bf16.mxu0 0
        %1450 = vmatpush1.bf16.msra.mxu0 0
        %1451 = vmatprep.subr.bf16.mxu0 0
        %1452 = vmatpush1.bf16.msra.mxu0 0
        %1453 = vmatprep.subr.bf16.mxu0 0
        %1454 = vmatpush1.bf16.msra.mxu0 0
        %1455 = vmatprep.subr.bf16.mxu0 0
        %1456 = vmatpush1.bf16.msra.mxu0 0
        %1457 = vmatprep.subr.bf16.mxu0 0
        %1458 = vmatpush1.bf16.msra.mxu0 0
        %1459 = vmatprep.subr.bf16.mxu0 0
        %1460 = vmatpush1.bf16.msra.mxu0 0
        %1461 = vmatprep.subr.bf16.mxu0 0
        %1462 = vmatpush1.bf16.msra.mxu0 0
        %1463 = vmatprep.subr.bf16.mxu0 0
        %1464 = vmatpush1.bf16.msra.mxu0 0
        %1465 = vmatprep.subr.bf16.mxu0 0
        %1466 = vmatpush1.bf16.msra.mxu0 0
        %1467 = vmatprep.mubr.bf16.mxu0 0
        %1468 = vmatmul.mubr.bf16.gmra.mrb[0].mxu0 %v1430
        %v1469 = vpop.f32.mrb[0].mxu0
        %v1470 = vadd.f32 0.0, %v1469
        %v1471 = vpop.f32.mrb[0].mxu0
        %v1472 = vpop.f32.mrb[0].mxu0
        %v1473 = vadd.f32 0.0, %v1472
        %v1474 = vpop.f32.mrb[0].mxu0
        %1475 = vdwg.mxu0
        %v1476 = vadd.f32 %v1374, %v1470
        %v1477 = vadd.f32 %v1377, %v1473
        %v1478 = vld [vmem:[%s5] sm:$0x1]
        %v1480 = vlaneseq
        %v1481 = vshrl.u32 %v1480, 7
        %v1482 = vsub.s32 0, %v1481
        %v1483 = vrot.slane %v1478, %v1482
        %v1485 = vmul.f32 %v1476, %v1483
        %v1486 = vmul.f32 %v1477, %v1483
        %v1487 = vld [vmem:[%s6] sm:$0x1]
        %v1489 = vlaneseq
        %v1490 = vshrl.u32 %v1489, 7
        %v1491 = vsub.s32 0, %v1490
        %v1492 = vrot.slane %v1487, %v1491
        %v1494 = vadd.f32 %v1485, %v1492
        %v1495 = vadd.f32 %v1486, %v1492
        %v1496 = vxor.u32 %v1494, 2147483648
        %v1497 = vxor.u32 %v1495, 2147483648
        %v1498 = vmul.f32 %v1496, 1.442695
        %v1499 = vpow.pop %v1498
        %v1500 = vmul.f32 %v1497, 1.442695
        %v1501 = vpow.pop %v1500
        %v1502 = vadd.f32 %v1499, 1.0
        %v1503 = vadd.f32 %v1501, 1.0
        %v1504 = vrcp.pop %v1502
        %v1505 = vmul.f32 1.0, %v1504
        %v1506 = vrcp.pop %v1503
        %v1507 = vmul.f32 1.0, %v1506
        %v1508 = vmul.f32 %v1494, %v1505
        %v1509 = vmul.f32 %v1495, %v1507
        %v1510 = vld [vmem:[%s7] sm:$0xf]
        %v1511 = vld [vmem:[%s7 + $0x4] sm:$0xf]
        %v1512 = vld [vmem:[%s7 + $0x8] sm:$0xf]
        %v1513 = vld [vmem:[%s7 + $0xc] sm:$0xf]
        %v1514 = vld [vmem:[%s7 + $0x10] sm:$0xf]
        %v1515 = vld [vmem:[%s7 + $0x14] sm:$0xf]
        %v1516 = vld [vmem:[%s7 + $0x18] sm:$0xf]
        %v1517 = vld [vmem:[%s7 + $0x1c] sm:$0xf]
        %v1518 = vld [vmem:[%s7 + $0x20] sm:$0xf]
        %v1519 = vld [vmem:[%s7 + $0x24] sm:$0xf]
        %v1520 = vld [vmem:[%s7 + $0x28] sm:$0xf]
        %s1521 = scalar_lea.vmem %s7, 44
        %v1522 = vld [vmem:[%s1521] sm:$0xf]
        %v1523 = vld [vmem:[%s1521 + $0x4] sm:$0xf]
        %v1524 = vld [vmem:[%s1521 + $0x8] sm:$0xf]
        %v1525 = vld [vmem:[%s1521 + $0xc] sm:$0xf]
        %v1526 = vld [vmem:[%s1521 + $0x10] sm:$0xf]
        %v1527 = vld [vmem:[%s1521 + $0x14] sm:$0xf]
        %v1528 = vld [vmem:[%s1521 + $0x18] sm:$0xf]
        %v1529 = vld [vmem:[%s1521 + $0x1c] sm:$0xf]
        %v1530 = vld [vmem:[%s1521 + $0x20] sm:$0xf]
        %v1531 = vld [vmem:[%s1521 + $0x24] sm:$0xf]
        %v1532 = vld [vmem:[%s1521 + $0x28] sm:$0xf]
        %v1544 = vunpack.c.l.b16 %v1522
        %v1545 = vunpack.c.l.b16 %v1523
        %v1546 = vunpack.c.l.b16 %v1524
        %v1547 = vunpack.c.l.b16 %v1525
        %v1548 = vunpack.c.l.b16 %v1526
        %v1549 = vunpack.c.l.b16 %v1527
        %v1550 = vunpack.c.l.b16 %v1528
        %v1551 = vunpack.c.l.b16 %v1529
        %v1552 = vunpack.c.l.b16 %v1530
        %v1553 = vunpack.c.l.b16 %v1531
        %v1554 = vunpack.c.l.b16 %v1532
        %v1555 = vpack.c.b16 %v1545, %v1544
        %v1556 = vpack.c.b16 %v1547, %v1546
        %v1557 = vpack.c.b16 %v1549, %v1548
        %v1558 = vpack.c.b16 %v1551, %v1550
        %v1559 = vpack.c.b16 %v1553, %v1552
        %v1560 = vpack.c.b16 %v1554, %v1554
        %v1567 = vsel %vm1250, %v1560, 0
        %1569 = vmatprep.subr.bf16.mxu0 0
        %1570 = vmatpush1.bf16.msra.mxu0 %v1555
        %1571 = vmatprep.subr.bf16.mxu0 0
        %1572 = vmatpush1.bf16.msra.mxu0 %v1556
        %1573 = vmatprep.subr.bf16.mxu0 0
        %1574 = vmatpush1.bf16.msra.mxu0 %v1557
        %1575 = vmatprep.subr.bf16.mxu0 0
        %1576 = vmatpush1.bf16.msra.mxu0 %v1558
        %1577 = vmatprep.subr.bf16.mxu0 0
        %1578 = vmatpush1.bf16.msra.mxu0 %v1559
        %1579 = vmatprep.subr.bf16.mxu0 0
        %1580 = vmatpush1.bf16.msra.mxu0 %v1567
        %1581 = vmatprep.subr.bf16.mxu0 0
        %1582 = vmatpush1.bf16.msra.mxu0 0
        %1583 = vmatprep.subr.bf16.mxu0 0
        %1584 = vmatpush1.bf16.msra.mxu0 0
        %1585 = vmatprep.subr.bf16.mxu0 0
        %1586 = vmatpush1.bf16.msra.mxu0 0
        %1587 = vmatprep.subr.bf16.mxu0 0
        %1588 = vmatpush1.bf16.msra.mxu0 0
        %1589 = vmatprep.subr.bf16.mxu0 0
        %1590 = vmatpush1.bf16.msra.mxu0 0
        %1591 = vmatprep.subr.bf16.mxu0 0
        %1592 = vmatpush1.bf16.msra.mxu0 0
        %1593 = vmatprep.subr.bf16.mxu0 0
        %1594 = vmatpush1.bf16.msra.mxu0 0
        %1595 = vmatprep.subr.bf16.mxu0 0
        %1596 = vmatpush1.bf16.msra.mxu0 0
        %1597 = vmatprep.subr.bf16.mxu0 0
        %1598 = vmatpush1.bf16.msra.mxu0 0
        %1599 = vmatprep.subr.bf16.mxu0 0
        %1600 = vmatpush1.bf16.msra.mxu0 0
        %1601 = vmatprep.mubr.bf16.mxu0 0
        %1602 = vmatmul.mubr.bf16.gmra.mrb[0].mxu0 %v1334
        %v1603 = vpop.f32.mrb[0].mxu0
        %v1604 = vadd.f32 0.0, %v1603
        %v1605 = vpop.f32.mrb[0].mxu0
        %v1606 = vpop.f32.mrb[0].mxu0
        %v1607 = vadd.f32 0.0, %v1606
        %v1608 = vpop.f32.mrb[0].mxu0
        %1609 = vdwg.mxu0
        %v1610 = vrot.slane %v1200, 1
        %v1611 = vor.u32 %v1197, %v1610
        %v1612 = vrot.slane %v1208, 1
        %v1613 = vsel %vm760, %v1611, %v1612
        %v1625 = vunpack.c.l.b16 %v1510
        %v1626 = vunpack.c.l.b16 %v1511
        %v1627 = vunpack.c.l.b16 %v1512
        %v1628 = vunpack.c.l.b16 %v1513
        %v1629 = vunpack.c.l.b16 %v1514
        %v1630 = vunpack.c.l.b16 %v1515
        %v1631 = vunpack.c.l.b16 %v1516
        %v1632 = vunpack.c.l.b16 %v1517
        %v1633 = vunpack.c.l.b16 %v1518
        %v1634 = vunpack.c.l.b16 %v1519
        %v1635 = vunpack.c.l.b16 %v1520
        %v1636 = vpack.c.b16 %v1626, %v1625
        %v1637 = vpack.c.b16 %v1628, %v1627
        %v1638 = vpack.c.b16 %v1630, %v1629
        %v1639 = vpack.c.b16 %v1632, %v1631
        %v1640 = vpack.c.b16 %v1634, %v1633
        %v1641 = vpack.c.b16 %v1635, %v1635
        %v1648 = vsel %vm1246, %v1613, 0
        %v1651 = vsel %vm1250, %v1641, 0
        %1653 = vmatprep.subr.bf16.mxu0 0
        %1654 = vmatpush1.bf16.msra.mxu0 %v1636
        %1655 = vmatprep.subr.bf16.mxu0 0
        %1656 = vmatpush1.bf16.msra.mxu0 %v1637
        %1657 = vmatprep.subr.bf16.mxu0 0
        %1658 = vmatpush1.bf16.msra.mxu0 %v1638
        %1659 = vmatprep.subr.bf16.mxu0 0
        %1660 = vmatpush1.bf16.msra.mxu0 %v1639
        %1661 = vmatprep.subr.bf16.mxu0 0
        %1662 = vmatpush1.bf16.msra.mxu0 %v1640
        %1663 = vmatprep.subr.bf16.mxu0 0
        %1664 = vmatpush1.bf16.msra.mxu0 %v1651
        %1665 = vmatprep.subr.bf16.mxu0 0
        %1666 = vmatpush1.bf16.msra.mxu0 0
        %1667 = vmatprep.subr.bf16.mxu0 0
        %1668 = vmatpush1.bf16.msra.mxu0 0
        %1669 = vmatprep.subr.bf16.mxu0 0
        %1670 = vmatpush1.bf16.msra.mxu0 0
        %1671 = vmatprep.subr.bf16.mxu0 0
        %1672 = vmatpush1.bf16.msra.mxu0 0
        %1673 = vmatprep.subr.bf16.mxu0 0
        %1674 = vmatpush1.bf16.msra.mxu0 0
        %1675 = vmatprep.subr.bf16.mxu0 0
        %1676 = vmatpush1.bf16.msra.mxu0 0
        %1677 = vmatprep.subr.bf16.mxu0 0
        %1678 = vmatpush1.bf16.msra.mxu0 0
        %1679 = vmatprep.subr.bf16.mxu0 0
        %1680 = vmatpush1.bf16.msra.mxu0 0
        %1681 = vmatprep.subr.bf16.mxu0 0
        %1682 = vmatpush1.bf16.msra.mxu0 0
        %1683 = vmatprep.subr.bf16.mxu0 0
        %1684 = vmatpush1.bf16.msra.mxu0 0
        %1685 = vmatprep.mubr.bf16.mxu0 0
        %1686 = vmatmul.mubr.bf16.gmra.mrb[0].mxu0 %v1648
        %v1687 = vpop.f32.mrb[0].mxu0
        %v1688 = vadd.f32 %v1604, %v1687
        %v1689 = vpop.f32.mrb[0].mxu0
        %v1690 = vpop.f32.mrb[0].mxu0
        %v1691 = vadd.f32 %v1607, %v1690
        %v1692 = vpop.f32.mrb[0].mxu0
        %1693 = vdwg.mxu0
        %s1694 = scalar_lea.vmem %s7, 88
        %v1695 = vld [vmem:[%s1694] sm:$0xf]
        %v1696 = vld [vmem:[%s1694 + $0x4] sm:$0xf]
        %v1697 = vld [vmem:[%s1694 + $0x8] sm:$0xf]
        %v1698 = vld [vmem:[%s1694 + $0xc] sm:$0xf]
        %v1699 = vld [vmem:[%s1694 + $0x10] sm:$0xf]
        %v1700 = vld [vmem:[%s1694 + $0x14] sm:$0xf]
        %v1701 = vld [vmem:[%s1694 + $0x18] sm:$0xf]
        %v1702 = vld [vmem:[%s1694 + $0x1c] sm:$0xf]
        %v1703 = vld [vmem:[%s1694 + $0x20] sm:$0xf]
        %v1704 = vld [vmem:[%s1694 + $0x24] sm:$0xf]
        %v1705 = vld [vmem:[%s1694 + $0x28] sm:$0xf]
        %v1717 = vunpack.c.l.b16 %v1695
        %v1718 = vunpack.c.l.b16 %v1696
        %v1719 = vunpack.c.l.b16 %v1697
        %v1720 = vunpack.c.l.b16 %v1698
        %v1721 = vunpack.c.l.b16 %v1699
        %v1722 = vunpack.c.l.b16 %v1700
        %v1723 = vunpack.c.l.b16 %v1701
        %v1724 = vunpack.c.l.b16 %v1702
        %v1725 = vunpack.c.l.b16 %v1703
        %v1726 = vunpack.c.l.b16 %v1704
        %v1727 = vunpack.c.l.b16 %v1705
        %v1728 = vpack.c.b16 %v1718, %v1717
        %v1729 = vpack.c.b16 %v1720, %v1719
        %v1730 = vpack.c.b16 %v1722, %v1721
        %v1731 = vpack.c.b16 %v1724, %v1723
        %v1732 = vpack.c.b16 %v1726, %v1725
        %v1733 = vpack.c.b16 %v1727, %v1727
        %v1740 = vsel %vm1250, %v1733, 0
        %1742 = vmatprep.subr.bf16.mxu0 0
        %1743 = vmatpush1.bf16.msra.mxu0 %v1728
        %1744 = vmatprep.subr.bf16.mxu0 0
        %1745 = vmatpush1.bf16.msra.mxu0 %v1729
        %1746 = vmatprep.subr.bf16.mxu0 0
        %1747 = vmatpush1.bf16.msra.mxu0 %v1730
        %1748 = vmatprep.subr.bf16.mxu0 0
        %1749 = vmatpush1.bf16.msra.mxu0 %v1731
        %1750 = vmatprep.subr.bf16.mxu0 0
        %1751 = vmatpush1.bf16.msra.mxu0 %v1732
        %1752 = vmatprep.subr.bf16.mxu0 0
        %1753 = vmatpush1.bf16.msra.mxu0 %v1740
        %1754 = vmatprep.subr.bf16.mxu0 0
        %1755 = vmatpush1.bf16.msra.mxu0 0
        %1756 = vmatprep.subr.bf16.mxu0 0
        %1757 = vmatpush1.bf16.msra.mxu0 0
        %1758 = vmatprep.subr.bf16.mxu0 0
        %1759 = vmatpush1.bf16.msra.mxu0 0
        %1760 = vmatprep.subr.bf16.mxu0 0
        %1761 = vmatpush1.bf16.msra.mxu0 0
        %1762 = vmatprep.subr.bf16.mxu0 0
        %1763 = vmatpush1.bf16.msra.mxu0 0
        %1764 = vmatprep.subr.bf16.mxu0 0
        %1765 = vmatpush1.bf16.msra.mxu0 0
        %1766 = vmatprep.subr.bf16.mxu0 0
        %1767 = vmatpush1.bf16.msra.mxu0 0
        %1768 = vmatprep.subr.bf16.mxu0 0
        %1769 = vmatpush1.bf16.msra.mxu0 0
        %1770 = vmatprep.subr.bf16.mxu0 0
        %1771 = vmatpush1.bf16.msra.mxu0 0
        %1772 = vmatprep.subr.bf16.mxu0 0
        %1773 = vmatpush1.bf16.msra.mxu0 0
        %1774 = vmatprep.mubr.bf16.mxu0 0
        %1775 = vmatmul.mubr.bf16.gmra.mrb[0].mxu0 %v1248
        %v1776 = vpop.f32.mrb[0].mxu0
        %v1777 = vadd.f32 0.0, %v1776
        %v1778 = vpop.f32.mrb[0].mxu0
        %v1779 = vpop.f32.mrb[0].mxu0
        %v1780 = vadd.f32 0.0, %v1779
        %v1781 = vpop.f32.mrb[0].mxu0
        %1782 = vdwg.mxu0
        %v1783 = vadd.f32 %v1688, %v1777
        %v1784 = vadd.f32 %v1691, %v1780
        %s1785 = scalar_lea.vmem %s7, 132
        %v1786 = vld [vmem:[%s1785] sm:$0xf]
        %v1787 = vld [vmem:[%s1785 + $0x4] sm:$0xf]
        %v1788 = vld [vmem:[%s1785 + $0x8] sm:$0xf]
        %v1789 = vld [vmem:[%s1785 + $0xc] sm:$0xf]
        %v1790 = vld [vmem:[%s1785 + $0x10] sm:$0xf]
        %v1791 = vld [vmem:[%s1785 + $0x14] sm:$0xf]
        %v1792 = vld [vmem:[%s1785 + $0x18] sm:$0xf]
        %v1793 = vld [vmem:[%s1785 + $0x1c] sm:$0xf]
        %v1794 = vld [vmem:[%s1785 + $0x20] sm:$0xf]
        %v1795 = vld [vmem:[%s1785 + $0x24] sm:$0xf]
        %v1796 = vld [vmem:[%s1785 + $0x28] sm:$0xf]
        %v1808 = vunpack.c.l.b16 %v1786
        %v1809 = vunpack.c.l.b16 %v1787
        %v1810 = vunpack.c.l.b16 %v1788
        %v1811 = vunpack.c.l.b16 %v1789
        %v1812 = vunpack.c.l.b16 %v1790
        %v1813 = vunpack.c.l.b16 %v1791
        %v1814 = vunpack.c.l.b16 %v1792
        %v1815 = vunpack.c.l.b16 %v1793
        %v1816 = vunpack.c.l.b16 %v1794
        %v1817 = vunpack.c.l.b16 %v1795
        %v1818 = vunpack.c.l.b16 %v1796
        %v1819 = vpack.c.b16 %v1809, %v1808
        %v1820 = vpack.c.b16 %v1811, %v1810
        %v1821 = vpack.c.b16 %v1813, %v1812
        %v1822 = vpack.c.b16 %v1815, %v1814
        %v1823 = vpack.c.b16 %v1817, %v1816
        %v1824 = vpack.c.b16 %v1818, %v1818
        %v1831 = vsel %vm1250, %v1824, 0
        %1833 = vmatprep.subr.bf16.mxu0 0
        %1834 = vmatpush1.bf16.msra.mxu0 %v1819
        %1835 = vmatprep.subr.bf16.mxu0 0
        %1836 = vmatpush1.bf16.msra.mxu0 %v1820
        %1837 = vmatprep.subr.bf16.mxu0 0
        %1838 = vmatpush1.bf16.msra.mxu0 %v1821
        %1839 = vmatprep.subr.bf16.mxu0 0
        %1840 = vmatpush1.bf16.msra.mxu0 %v1822
        %1841 = vmatprep.subr.bf16.mxu0 0
        %1842 = vmatpush1.bf16.msra.mxu0 %v1823
        %1843 = vmatprep.subr.bf16.mxu0 0
        %1844 = vmatpush1.bf16.msra.mxu0 %v1831
        %1845 = vmatprep.subr.bf16.mxu0 0
        %1846 = vmatpush1.bf16.msra.mxu0 0
        %1847 = vmatprep.subr.bf16.mxu0 0
        %1848 = vmatpush1.bf16.msra.mxu0 0
        %1849 = vmatprep.subr.bf16.mxu0 0
        %1850 = vmatpush1.bf16.msra.mxu0 0
        %1851 = vmatprep.subr.bf16.mxu0 0
        %1852 = vmatpush1.bf16.msra.mxu0 0
        %1853 = vmatprep.subr.bf16.mxu0 0
        %1854 = vmatpush1.bf16.msra.mxu0 0
        %1855 = vmatprep.subr.bf16.mxu0 0
        %1856 = vmatpush1.bf16.msra.mxu0 0
        %1857 = vmatprep.subr.bf16.mxu0 0
        %1858 = vmatpush1.bf16.msra.mxu0 0
        %1859 = vmatprep.subr.bf16.mxu0 0
        %1860 = vmatpush1.bf16.msra.mxu0 0
        %1861 = vmatprep.subr.bf16.mxu0 0
        %1862 = vmatpush1.bf16.msra.mxu0 0
        %1863 = vmatprep.subr.bf16.mxu0 0
        %1864 = vmatpush1.bf16.msra.mxu0 0
        %1865 = vmatprep.mubr.bf16.mxu0 0
        %1866 = vmatmul.mubr.bf16.gmra.mrb[0].mxu0 %v1430
        %v1867 = vpop.f32.mrb[0].mxu0
        %v1868 = vadd.f32 0.0, %v1867
        %v1869 = vpop.f32.mrb[0].mxu0
        %v1870 = vpop.f32.mrb[0].mxu0
        %v1871 = vadd.f32 0.0, %v1870
        %v1872 = vpop.f32.mrb[0].mxu0
        %1873 = vdwg.mxu0
        %v1874 = vadd.f32 %v1783, %v1868
        %v1875 = vadd.f32 %v1784, %v1871
        %s1876 = scalar_lea.vmem %s7, 176
        %v1877 = vld [vmem:[%s1876] sm:$0xf]
        %v1878 = vld [vmem:[%s1876 + $0x4] sm:$0xf]
        %v1879 = vld [vmem:[%s1876 + $0x8] sm:$0xf]
        %v1880 = vld [vmem:[%s1876 + $0xc] sm:$0xf]
        %v1881 = vld [vmem:[%s1876 + $0x10] sm:$0xf]
        %v1882 = vld [vmem:[%s1876 + $0x14] sm:$0xf]
        %v1883 = vld [vmem:[%s1876 + $0x18] sm:$0xf]
        %v1884 = vld [vmem:[%s1876 + $0x1c] sm:$0xf]
        %v1885 = vld [vmem:[%s1876 + $0x20] sm:$0xf]
        %v1886 = vld [vmem:[%s1876 + $0x24] sm:$0xf]
        %v1887 = vld [vmem:[%s1876 + $0x28] sm:$0xf]
        %vm1888 = vsmask.f32 5376
        %v1889 = vrot.slane %v1197, 2
        %v1890 = vrot.slane %v1200, 3
        %v1891 = vor.u32 %v1889, %v1890
        %v1892 = vrot.slane %v1205, 2
        %v1893 = vrot.slane %v1208, 3
        %v1894 = vor.u32 %v1892, %v1893
        %v1895 = vsel %vm1888, %v1891, %v1894
        %v1907 = vunpack.c.l.b16 %v1877
        %v1908 = vunpack.c.l.b16 %v1878
        %v1909 = vunpack.c.l.b16 %v1879
        %v1910 = vunpack.c.l.b16 %v1880
        %v1911 = vunpack.c.l.b16 %v1881
        %v1912 = vunpack.c.l.b16 %v1882
        %v1913 = vunpack.c.l.b16 %v1883
        %v1914 = vunpack.c.l.b16 %v1884
        %v1915 = vunpack.c.l.b16 %v1885
        %v1916 = vunpack.c.l.b16 %v1886
        %v1917 = vunpack.c.l.b16 %v1887
        %v1918 = vpack.c.b16 %v1908, %v1907
        %v1919 = vpack.c.b16 %v1910, %v1909
        %v1920 = vpack.c.b16 %v1912, %v1911
        %v1921 = vpack.c.b16 %v1914, %v1913
        %v1922 = vpack.c.b16 %v1916, %v1915
        %v1923 = vpack.c.b16 %v1917, %v1917
        %v1930 = vsel %vm1246, %v1895, 0
        %v1933 = vsel %vm1250, %v1923, 0
        %1935 = vmatprep.subr.bf16.mxu0 0
        %1936 = vmatpush1.bf16.msra.mxu0 %v1918
        %1937 = vmatprep.subr.bf16.mxu0 0
        %1938 = vmatpush1.bf16.msra.mxu0 %v1919
        %1939 = vmatprep.subr.bf16.mxu0 0
        %1940 = vmatpush1.bf16.msra.mxu0 %v1920
        %1941 = vmatprep.subr.bf16.mxu0 0
        %1942 = vmatpush1.bf16.msra.mxu0 %v1921
        %1943 = vmatprep.subr.bf16.mxu0 0
        %1944 = vmatpush1.bf16.msra.mxu0 %v1922
        %1945 = vmatprep.subr.bf16.mxu0 0
        %1946 = vmatpush1.bf16.msra.mxu0 %v1933
        %1947 = vmatprep.subr.bf16.mxu0 0
        %1948 = vmatpush1.bf16.msra.mxu0 0
        %1949 = vmatprep.subr.bf16.mxu0 0
        %1950 = vmatpush1.bf16.msra.mxu0 0
        %1951 = vmatprep.subr.bf16.mxu0 0
        %1952 = vmatpush1.bf16.msra.mxu0 0
        %1953 = vmatprep.subr.bf16.mxu0 0
        %1954 = vmatpush1.bf16.msra.mxu0 0
        %1955 = vmatprep.subr.bf16.mxu0 0
        %1956 = vmatpush1.bf16.msra.mxu0 0
        %1957 = vmatprep.subr.bf16.mxu0 0
        %1958 = vmatpush1.bf16.msra.mxu0 0
        %1959 = vmatprep.subr.bf16.mxu0 0
        %1960 = vmatpush1.bf16.msra.mxu0 0
        %1961 = vmatprep.subr.bf16.mxu0 0
        %1962 = vmatpush1.bf16.msra.mxu0 0
        %1963 = vmatprep.subr.bf16.mxu0 0
        %1964 = vmatpush1.bf16.msra.mxu0 0
        %1965 = vmatprep.subr.bf16.mxu0 0
        %1966 = vmatpush1.bf16.msra.mxu0 0
        %1967 = vmatprep.mubr.bf16.mxu0 0
        %1968 = vmatmul.mubr.bf16.gmra.mrb[0].mxu0 %v1930
        %v1969 = vpop.f32.mrb[0].mxu0
        %v1970 = vadd.f32 0.0, %v1969
        %v1971 = vpop.f32.mrb[0].mxu0
        %v1972 = vpop.f32.mrb[0].mxu0
        %v1973 = vadd.f32 0.0, %v1972
        %v1974 = vpop.f32.mrb[0].mxu0
        %1975 = vdwg.mxu0
        %v1976 = vadd.f32 %v1874, %v1970
        %v1977 = vadd.f32 %v1875, %v1973
        %v1978 = vld [vmem:[%s8] sm:$0x1]
        %v1980 = vlaneseq
        %v1981 = vshrl.u32 %v1980, 7
        %v1982 = vsub.s32 0, %v1981
        %v1983 = vrot.slane %v1978, %v1982
        %v1985 = vadd.f32 %v1976, %v1983
        %v1986 = vadd.f32 %v1977, %v1983
        %1989 = vrot.lane.b32.xlu0 %v1985, 24
        %v1990 = vpop.permute.xlu0 %1989
        %1991 = vrot.lane.b32.xlu0 %v1986, 24
        %v1992 = vpop.permute.xlu0 %1991
        %vm1995 = vcmask 195584
        %v1996 = vsel %vm1995, 0.0, %v1990
        %v1997 = vsel %vm1995, 0.0, %v1992
        %v1998 = vsel %vm1246, %v1996, 0.0
        %v1999 = vsel %vm1246, %v1997, 0.0
        %vm2002 = vcmask 1045504
        %v2003 = vrot.slane %v1998, 2
        %v2004 = vrot.slane %v1999, 2
        %v2005 = vsel %vm2002, %v2003, %v2004
        %v2009 = vsel %vm2002, 0.0, %v2003
        %v2010 = vsel %vm2002, %v2004, 0.0
        %v2011 = vpack.c.bf16 %v2005, %v2009
        %v2012 = vld [vmem:[%s9] sm:$0xf]
        %v2013 = vld [vmem:[%s9 + $0x4] sm:$0xf]
        %v2014 = vld [vmem:[%s9 + $0x8] sm:$0xf]
        %v2015 = vld [vmem:[%s9 + $0xc] sm:$0xf]
        %v2016 = vld [vmem:[%s9 + $0x10] sm:$0xf]
        %v2017 = vld [vmem:[%s9 + $0x14] sm:$0xf]
        %v2018 = vld [vmem:[%s9 + $0x18] sm:$0xf]
        %v2019 = vld [vmem:[%s9 + $0x1c] sm:$0xf]
        %v2020 = vld [vmem:[%s9 + $0x20] sm:$0xf]
        %v2021 = vld [vmem:[%s9 + $0x24] sm:$0xf]
        %v2022 = vld [vmem:[%s9 + $0x28] sm:$0xf]
        %v2023 = vld [vmem:[%s9 + $0x2c] sm:$0xf]
        %v2024 = vld [vmem:[%s9 + $0x30] sm:$0xf]
        %v2025 = vld [vmem:[%s9 + $0x34] sm:$0xf]
        %v2026 = vpack.c.bf16 %v2010, %v2010
        %s2027 = scalar_lea.vmem %s9, 56
        %v2028 = vld [vmem:[%s2027] sm:$0xf]
        %v2029 = vld [vmem:[%s2027 + $0x4] sm:$0xf]
        %v2030 = vld [vmem:[%s2027 + $0x8] sm:$0xf]
        %v2031 = vld [vmem:[%s2027 + $0xc] sm:$0xf]
        %v2032 = vld [vmem:[%s2027 + $0x10] sm:$0xf]
        %v2033 = vld [vmem:[%s2027 + $0x14] sm:$0xf]
        %v2034 = vld [vmem:[%s2027 + $0x18] sm:$0xf]
        %v2035 = vld [vmem:[%s2027 + $0x1c] sm:$0xf]
        %v2036 = vld [vmem:[%s2027 + $0x20] sm:$0xf]
        %v2037 = vld [vmem:[%s2027 + $0x24] sm:$0xf]
        %v2038 = vld [vmem:[%s2027 + $0x28] sm:$0xf]
        %v2039 = vld [vmem:[%s2027 + $0x2c] sm:$0xf]
        %v2040 = vld [vmem:[%s2027 + $0x30] sm:$0xf]
        %v2041 = vld [vmem:[%s2027 + $0x34] sm:$0xf]
        %v2043 = vshrl.u32 %v2011, 16
        %v2045 = vrot.slane %v2043, 1
        %v2046 = vshll.u32 %v2011, 16
        %v2048 = vrot.slane %v2046, 2
        %v2049 = vor.u32 %v2045, %v2048
        %v2051 = vshrl.u32 %v2026, 16
        %v2053 = vrot.slane %v2051, 1
        %v2054 = vshll.u32 %v2026, 16
        %v2056 = vrot.slane %v2054, 2
        %v2057 = vor.u32 %v2053, %v2056
        %v2058 = vsel %vm1195, %v2049, %v2057
        %v2073 = vunpack.c.l.b16 %v2028
        %v2074 = vunpack.c.l.b16 %v2029
        %v2075 = vunpack.c.l.b16 %v2030
        %v2076 = vunpack.c.l.b16 %v2031
        %v2077 = vunpack.c.l.b16 %v2032
        %v2078 = vunpack.c.l.b16 %v2033
        %v2079 = vunpack.c.l.b16 %v2034
        %v2080 = vunpack.c.l.b16 %v2035
        %v2081 = vunpack.c.l.b16 %v2036
        %v2082 = vunpack.c.l.b16 %v2037
        %v2083 = vunpack.c.l.b16 %v2038
        %v2084 = vunpack.c.l.b16 %v2039
        %v2085 = vunpack.c.l.b16 %v2040
        %v2086 = vunpack.c.l.b16 %v2041
        %v2087 = vpack.c.b16 %v2074, %v2073
        %v2088 = vpack.c.b16 %v2076, %v2075
        %v2089 = vpack.c.b16 %v2078, %v2077
        %v2090 = vpack.c.b16 %v2080, %v2079
        %v2091 = vpack.c.b16 %v2082, %v2081
        %v2092 = vpack.c.b16 %v2084, %v2083
        %v2093 = vpack.c.b16 %v2086, %v2085
        %vm2101 = vcmask 916480
        %v2103 = vsel %vm2101, %v2058, 0
        %2105 = vmatprep.subr.bf16.mxu0 0
        %2106 = vmatpush1.bf16.msra.mxu0 %v2087
        %2107 = vmatprep.subr.bf16.mxu0 0
        %2108 = vmatpush1.bf16.msra.mxu0 %v2088
        %2109 = vmatprep.subr.bf16.mxu0 0
        %2110 = vmatpush1.bf16.msra.mxu0 %v2089
        %2111 = vmatprep.subr.bf16.mxu0 0
        %2112 = vmatpush1.bf16.msra.mxu0 %v2090
        %2113 = vmatprep.subr.bf16.mxu0 0
        %2114 = vmatpush1.bf16.msra.mxu0 %v2091
        %2115 = vmatprep.subr.bf16.mxu0 0
        %2116 = vmatpush1.bf16.msra.mxu0 %v2092
        %2117 = vmatprep.subr.bf16.mxu0 0
        %2118 = vmatpush1.bf16.msra.mxu0 %v2093
        %2119 = vmatprep.subr.bf16.mxu0 0
        %2120 = vmatpush1.bf16.msra.mxu0 0
        %2121 = vmatprep.subr.bf16.mxu0 0
        %2122 = vmatpush1.bf16.msra.mxu0 0
        %2123 = vmatprep.subr.bf16.mxu0 0
        %2124 = vmatpush1.bf16.msra.mxu0 0
        %2125 = vmatprep.subr.bf16.mxu0 0
        %2126 = vmatpush1.bf16.msra.mxu0 0
        %2127 = vmatprep.subr.bf16.mxu0 0
        %2128 = vmatpush1.bf16.msra.mxu0 0
        %2129 = vmatprep.subr.bf16.mxu0 0
        %2130 = vmatpush1.bf16.msra.mxu0 0
        %2131 = vmatprep.subr.bf16.mxu0 0
        %2132 = vmatpush1.bf16.msra.mxu0 0
        %2133 = vmatprep.subr.bf16.mxu0 0
        %2134 = vmatpush1.bf16.msra.mxu0 0
        %2135 = vmatprep.subr.bf16.mxu0 0
        %2136 = vmatpush1.bf16.msra.mxu0 0
        %2137 = vmatprep.mubr.bf16.mxu0 0
        %2138 = vmatmul.mubr.bf16.gmra.mrb[0].mxu0 %v2103
        %v2139 = vpop.f32.mrb[0].mxu0
        %v2140 = vadd.f32 0.0, %v2139
        %v2141 = vpop.f32.mrb[0].mxu0
        %v2142 = vpop.f32.mrb[0].mxu0
        %v2143 = vadd.f32 0.0, %v2142
        %v2144 = vpop.f32.mrb[0].mxu0
        %2145 = vdwg.mxu0
        %v2160 = vunpack.c.l.b16 %v2012
        %v2161 = vunpack.c.l.b16 %v2013
        %v2162 = vunpack.c.l.b16 %v2014
        %v2163 = vunpack.c.l.b16 %v2015
        %v2164 = vunpack.c.l.b16 %v2016
        %v2165 = vunpack.c.l.b16 %v2017
        %v2166 = vunpack.c.l.b16 %v2018
        %v2167 = vunpack.c.l.b16 %v2019
        %v2168 = vunpack.c.l.b16 %v2020
        %v2169 = vunpack.c.l.b16 %v2021
        %v2170 = vunpack.c.l.b16 %v2022
        %v2171 = vunpack.c.l.b16 %v2023
        %v2172 = vunpack.c.l.b16 %v2024
        %v2173 = vunpack.c.l.b16 %v2025
        %v2174 = vpack.c.b16 %v2161, %v2160
        %v2175 = vpack.c.b16 %v2163, %v2162
        %v2176 = vpack.c.b16 %v2165, %v2164
        %v2177 = vpack.c.b16 %v2167, %v2166
        %v2178 = vpack.c.b16 %v2169, %v2168
        %v2179 = vpack.c.b16 %v2171, %v2170
        %v2180 = vpack.c.b16 %v2173, %v2172
        %v2188 = vsel %vm2101, %v2011, 0
        %2190 = vmatprep.subr.bf16.mxu0 0
        %2191 = vmatpush1.bf16.msra.mxu0 %v2174
        %2192 = vmatprep.subr.bf16.mxu0 0
        %2193 = vmatpush1.bf16.msra.mxu0 %v2175
        %2194 = vmatprep.subr.bf16.mxu0 0
        %2195 = vmatpush1.bf16.msra.mxu0 %v2176
        %2196 = vmatprep.subr.bf16.mxu0 0
        %2197 = vmatpush1.bf16.msra.mxu0 %v2177
        %2198 = vmatprep.subr.bf16.mxu0 0
        %2199 = vmatpush1.bf16.msra.mxu0 %v2178
        %2200 = vmatprep.subr.bf16.mxu0 0
        %2201 = vmatpush1.bf16.msra.mxu0 %v2179
        %2202 = vmatprep.subr.bf16.mxu0 0
        %2203 = vmatpush1.bf16.msra.mxu0 %v2180
        %2204 = vmatprep.subr.bf16.mxu0 0
        %2205 = vmatpush1.bf16.msra.mxu0 0
        %2206 = vmatprep.subr.bf16.mxu0 0
        %2207 = vmatpush1.bf16.msra.mxu0 0
        %2208 = vmatprep.subr.bf16.mxu0 0
        %2209 = vmatpush1.bf16.msra.mxu0 0
        %2210 = vmatprep.subr.bf16.mxu0 0
        %2211 = vmatpush1.bf16.msra.mxu0 0
        %2212 = vmatprep.subr.bf16.mxu0 0
        %2213 = vmatpush1.bf16.msra.mxu0 0
        %2214 = vmatprep.subr.bf16.mxu0 0
        %2215 = vmatpush1.bf16.msra.mxu0 0
        %2216 = vmatprep.subr.bf16.mxu0 0
        %2217 = vmatpush1.bf16.msra.mxu0 0
        %2218 = vmatprep.subr.bf16.mxu0 0
        %2219 = vmatpush1.bf16.msra.mxu0 0
        %2220 = vmatprep.subr.bf16.mxu0 0
        %2221 = vmatpush1.bf16.msra.mxu0 0
        %2222 = vmatprep.mubr.bf16.mxu0 0
        %2223 = vmatmul.mubr.bf16.gmra.mrb[0].mxu0 %v2188
        %v2224 = vpop.f32.mrb[0].mxu0
        %v2225 = vadd.f32 %v2140, %v2224
        %v2226 = vpop.f32.mrb[0].mxu0
        %v2227 = vpop.f32.mrb[0].mxu0
        %v2228 = vadd.f32 %v2143, %v2227
        %v2229 = vpop.f32.mrb[0].mxu0
        %2230 = vdwg.mxu0
        %s2231 = scalar_lea.vmem %s9, 112
        %v2232 = vld [vmem:[%s2231] sm:$0xf]
        %v2233 = vld [vmem:[%s2231 + $0x4] sm:$0xf]
        %v2234 = vld [vmem:[%s2231 + $0x8] sm:$0xf]
        %v2235 = vld [vmem:[%s2231 + $0xc] sm:$0xf]
        %v2236 = vld [vmem:[%s2231 + $0x10] sm:$0xf]
        %v2237 = vld [vmem:[%s2231 + $0x14] sm:$0xf]
        %v2238 = vld [vmem:[%s2231 + $0x18] sm:$0xf]
        %v2239 = vld [vmem:[%s2231 + $0x1c] sm:$0xf]
        %v2240 = vld [vmem:[%s2231 + $0x20] sm:$0xf]
        %v2241 = vld [vmem:[%s2231 + $0x24] sm:$0xf]
        %v2242 = vld [vmem:[%s2231 + $0x28] sm:$0xf]
        %v2243 = vld [vmem:[%s2231 + $0x2c] sm:$0xf]
        %v2244 = vld [vmem:[%s2231 + $0x30] sm:$0xf]
        %v2245 = vld [vmem:[%s2231 + $0x34] sm:$0xf]
        %vm2248 = vcmask 1044480
        %v2249 = vrot.slane %v2011, 3
        %v2250 = vrot.slane %v2026, 3
        %v2251 = vsel %vm2248, %v2249, %v2250
        %v2266 = vunpack.c.l.b16 %v2232
        %v2267 = vunpack.c.l.b16 %v2233
        %v2268 = vunpack.c.l.b16 %v2234
        %v2269 = vunpack.c.l.b16 %v2235
        %v2270 = vunpack.c.l.b16 %v2236
        %v2271 = vunpack.c.l.b16 %v2237
        %v2272 = vunpack.c.l.b16 %v2238
        %v2273 = vunpack.c.l.b16 %v2239
        %v2274 = vunpack.c.l.b16 %v2240
        %v2275 = vunpack.c.l.b16 %v2241
        %v2276 = vunpack.c.l.b16 %v2242
        %v2277 = vunpack.c.l.b16 %v2243
        %v2278 = vunpack.c.l.b16 %v2244
        %v2279 = vunpack.c.l.b16 %v2245
        %v2280 = vpack.c.b16 %v2267, %v2266
        %v2281 = vpack.c.b16 %v2269, %v2268
        %v2282 = vpack.c.b16 %v2271, %v2270
        %v2283 = vpack.c.b16 %v2273, %v2272
        %v2284 = vpack.c.b16 %v2275, %v2274
        %v2285 = vpack.c.b16 %v2277, %v2276
        %v2286 = vpack.c.b16 %v2279, %v2278
        %v2295 = vsel %vm2101, %v2251, 0
        %2297 = vmatprep.subr.bf16.mxu0 0
        %2298 = vmatpush1.bf16.msra.mxu0 %v2280
        %2299 = vmatprep.subr.bf16.mxu0 0
        %2300 = vmatpush1.bf16.msra.mxu0 %v2281
        %2301 = vmatprep.subr.bf16.mxu0 0
        %2302 = vmatpush1.bf16.msra.mxu0 %v2282
        %2303 = vmatprep.subr.bf16.mxu0 0
        %2304 = vmatpush1.bf16.msra.mxu0 %v2283
        %2305 = vmatprep.subr.bf16.mxu0 0
        %2306 = vmatpush1.bf16.msra.mxu0 %v2284
        %2307 = vmatprep.subr.bf16.mxu0 0
        %2308 = vmatpush1.bf16.msra.mxu0 %v2285
        %2309 = vmatprep.subr.bf16.mxu0 0
        %2310 = vmatpush1.bf16.msra.mxu0 %v2286
        %2311 = vmatprep.subr.bf16.mxu0 0
        %2312 = vmatpush1.bf16.msra.mxu0 0
        %2313 = vmatprep.subr.bf16.mxu0 0
        %2314 = vmatpush1.bf16.msra.mxu0 0
        %2315 = vmatprep.subr.bf16.mxu0 0
        %2316 = vmatpush1.bf16.msra.mxu0 0
        %2317 = vmatprep.subr.bf16.mxu0 0
        %2318 = vmatpush1.bf16.msra.mxu0 0
        %2319 = vmatprep.subr.bf16.mxu0 0
        %2320 = vmatpush1.bf16.msra.mxu0 0
        %2321 = vmatprep.subr.bf16.mxu0 0
        %2322 = vmatpush1.bf16.msra.mxu0 0
        %2323 = vmatprep.subr.bf16.mxu0 0
        %2324 = vmatpush1.bf16.msra.mxu0 0
        %2325 = vmatprep.subr.bf16.mxu0 0
        %2326 = vmatpush1.bf16.msra.mxu0 0
        %2327 = vmatprep.subr.bf16.mxu0 0
        %2328 = vmatpush1.bf16.msra.mxu0 0
        %2329 = vmatprep.mubr.bf16.mxu0 0
        %2330 = vmatmul.mubr.bf16.gmra.mrb[0].mxu0 %v2295
        %v2331 = vpop.f32.mrb[0].mxu0
        %v2332 = vadd.f32 0.0, %v2331
        %v2333 = vpop.f32.mrb[0].mxu0
        %v2334 = vpop.f32.mrb[0].mxu0
        %v2335 = vadd.f32 0.0, %v2334
        %v2336 = vpop.f32.mrb[0].mxu0
        %2337 = vdwg.mxu0
        %v2338 = vadd.f32 %v2225, %v2332
        %v2339 = vadd.f32 %v2228, %v2335
        %v2340 = vpack.c.bf16 %v2010, %v2005
        %v2341 = vpack.c.bf16 0.0, 0.0
        %s2342 = scalar_lea.vmem %s9, 168
        %v2343 = vld [vmem:[%s2342] sm:$0xf]
        %v2344 = vld [vmem:[%s2342 + $0x4] sm:$0xf]
        %v2345 = vld [vmem:[%s2342 + $0x8] sm:$0xf]
        %v2346 = vld [vmem:[%s2342 + $0xc] sm:$0xf]
        %v2347 = vld [vmem:[%s2342 + $0x10] sm:$0xf]
        %v2348 = vld [vmem:[%s2342 + $0x14] sm:$0xf]
        %v2349 = vld [vmem:[%s2342 + $0x18] sm:$0xf]
        %v2350 = vld [vmem:[%s2342 + $0x1c] sm:$0xf]
        %v2351 = vld [vmem:[%s2342 + $0x20] sm:$0xf]
        %v2352 = vld [vmem:[%s2342 + $0x24] sm:$0xf]
        %v2353 = vld [vmem:[%s2342 + $0x28] sm:$0xf]
        %v2354 = vld [vmem:[%s2342 + $0x2c] sm:$0xf]
        %v2355 = vld [vmem:[%s2342 + $0x30] sm:$0xf]
        %v2356 = vld [vmem:[%s2342 + $0x34] sm:$0xf]
        %v2358 = vshrl.u32 %v2340, 16
        %v2360 = vshll.u32 %v2340, 16
        %v2362 = vrot.slane %v2360, 1
        %v2363 = vor.u32 %v2358, %v2362
        %v2365 = vshll.u32 %v2341, 16
        %v2367 = vrot.slane %v2365, 1
        %v2368 = vsel %vm760, %v2363, %v2367
        %v2383 = vunpack.c.l.b16 %v2343
        %v2384 = vunpack.c.l.b16 %v2344
        %v2385 = vunpack.c.l.b16 %v2345
        %v2386 = vunpack.c.l.b16 %v2346
        %v2387 = vunpack.c.l.b16 %v2347
        %v2388 = vunpack.c.l.b16 %v2348
        %v2389 = vunpack.c.l.b16 %v2349
        %v2390 = vunpack.c.l.b16 %v2350
        %v2391 = vunpack.c.l.b16 %v2351
        %v2392 = vunpack.c.l.b16 %v2352
        %v2393 = vunpack.c.l.b16 %v2353
        %v2394 = vunpack.c.l.b16 %v2354
        %v2395 = vunpack.c.l.b16 %v2355
        %v2396 = vunpack.c.l.b16 %v2356
        %v2397 = vpack.c.b16 %v2384, %v2383
        %v2398 = vpack.c.b16 %v2386, %v2385
        %v2399 = vpack.c.b16 %v2388, %v2387
        %v2400 = vpack.c.b16 %v2390, %v2389
        %v2401 = vpack.c.b16 %v2392, %v2391
        %v2402 = vpack.c.b16 %v2394, %v2393
        %v2403 = vpack.c.b16 %v2396, %v2395
        %v2412 = vsel %vm2101, %v2368, 0
        %2414 = vmatprep.subr.bf16.mxu0 0
        %2415 = vmatpush1.bf16.msra.mxu0 %v2397
        %2416 = vmatprep.subr.bf16.mxu0 0
        %2417 = vmatpush1.bf16.msra.mxu0 %v2398
        %2418 = vmatprep.subr.bf16.mxu0 0
        %2419 = vmatpush1.bf16.msra.mxu0 %v2399
        %2420 = vmatprep.subr.bf16.mxu0 0
        %2421 = vmatpush1.bf16.msra.mxu0 %v2400
        %2422 = vmatprep.subr.bf16.mxu0 0
        %2423 = vmatpush1.bf16.msra.mxu0 %v2401
        %2424 = vmatprep.subr.bf16.mxu0 0
        %2425 = vmatpush1.bf16.msra.mxu0 %v2402
        %2426 = vmatprep.subr.bf16.mxu0 0
        %2427 = vmatpush1.bf16.msra.mxu0 %v2403
        %2428 = vmatprep.subr.bf16.mxu0 0
        %2429 = vmatpush1.bf16.msra.mxu0 0
        %2430 = vmatprep.subr.bf16.mxu0 0
        %2431 = vmatpush1.bf16.msra.mxu0 0
        %2432 = vmatprep.subr.bf16.mxu0 0
        %2433 = vmatpush1.bf16.msra.mxu0 0
        %2434 = vmatprep.subr.bf16.mxu0 0
        %2435 = vmatpush1.bf16.msra.mxu0 0
        %2436 = vmatprep.subr.bf16.mxu0 0
        %2437 = vmatpush1.bf16.msra.mxu0 0
        %2438 = vmatprep.subr.bf16.mxu0 0
        %2439 = vmatpush1.bf16.msra.mxu0 0
        %2440 = vmatprep.subr.bf16.mxu0 0
        %2441 = vmatpush1.bf16.msra.mxu0 0
        %2442 = vmatprep.subr.bf16.mxu0 0
        %2443 = vmatpush1.bf16.msra.mxu0 0
        %2444 = vmatprep.subr.bf16.mxu0 0
        %2445 = vmatpush1.bf16.msra.mxu0 0
        %2446 = vmatprep.mubr.bf16.mxu0 0
        %2447 = vmatmul.mubr.bf16.gmra.mrb[0].mxu0 %v2412
        %v2448 = vpop.f32.mrb[0].mxu0
        %v2449 = vadd.f32 0.0, %v2448
        %v2450 = vpop.f32.mrb[0].mxu0
        %v2451 = vpop.f32.mrb[0].mxu0
        %v2452 = vadd.f32 0.0, %v2451
        %v2453 = vpop.f32.mrb[0].mxu0
        %2454 = vdwg.mxu0
        %v2455 = vadd.f32 %v2338, %v2449
        %v2456 = vadd.f32 %v2339, %v2452
        %s2457 = scalar_lea.vmem %s9, 224
        %v2458 = vld [vmem:[%s2457] sm:$0xf]
        %v2459 = vld [vmem:[%s2457 + $0x4] sm:$0xf]
        %v2460 = vld [vmem:[%s2457 + $0x8] sm:$0xf]
        %v2461 = vld [vmem:[%s2457 + $0xc] sm:$0xf]
        %v2462 = vld [vmem:[%s2457 + $0x10] sm:$0xf]
        %v2463 = vld [vmem:[%s2457 + $0x14] sm:$0xf]
        %v2464 = vld [vmem:[%s2457 + $0x18] sm:$0xf]
        %v2465 = vld [vmem:[%s2457 + $0x1c] sm:$0xf]
        %v2466 = vld [vmem:[%s2457 + $0x20] sm:$0xf]
        %v2467 = vld [vmem:[%s2457 + $0x24] sm:$0xf]
        %v2468 = vld [vmem:[%s2457 + $0x28] sm:$0xf]
        %v2469 = vld [vmem:[%s2457 + $0x2c] sm:$0xf]
        %v2470 = vld [vmem:[%s2457 + $0x30] sm:$0xf]
        %v2471 = vld [vmem:[%s2457 + $0x34] sm:$0xf]
        %v2474 = vrot.slane %v2340, 2
        %v2475 = vrot.slane %v2341, 2
        %v2476 = vsel %vm1392, %v2474, %v2475
        %v2491 = vunpack.c.l.b16 %v2458
        %v2492 = vunpack.c.l.b16 %v2459
        %v2493 = vunpack.c.l.b16 %v2460
        %v2494 = vunpack.c.l.b16 %v2461
        %v2495 = vunpack.c.l.b16 %v2462
        %v2496 = vunpack.c.l.b16 %v2463
        %v2497 = vunpack.c.l.b16 %v2464
        %v2498 = vunpack.c.l.b16 %v2465
        %v2499 = vunpack.c.l.b16 %v2466
        %v2500 = vunpack.c.l.b16 %v2467
        %v2501 = vunpack.c.l.b16 %v2468
        %v2502 = vunpack.c.l.b16 %v2469
        %v2503 = vunpack.c.l.b16 %v2470
        %v2504 = vunpack.c.l.b16 %v2471
        %v2505 = vpack.c.b16 %v2492, %v2491
        %v2506 = vpack.c.b16 %v2494, %v2493
        %v2507 = vpack.c.b16 %v2496, %v2495
        %v2508 = vpack.c.b16 %v2498, %v2497
        %v2509 = vpack.c.b16 %v2500, %v2499
        %v2510 = vpack.c.b16 %v2502, %v2501
        %v2511 = vpack.c.b16 %v2504, %v2503
        %v2520 = vsel %vm2101, %v2476, 0
        %2522 = vmatprep.subr.bf16.mxu0 0
        %2523 = vmatpush1.bf16.msra.mxu0 %v2505
        %2524 = vmatprep.subr.bf16.mxu0 0
        %2525 = vmatpush1.bf16.msra.mxu0 %v2506
        %2526 = vmatprep.subr.bf16.mxu0 0
        %2527 = vmatpush1.bf16.msra.mxu0 %v2507
        %2528 = vmatprep.subr.bf16.mxu0 0
        %2529 = vmatpush1.bf16.msra.mxu0 %v2508
        %2530 = vmatprep.subr.bf16.mxu0 0
        %2531 = vmatpush1.bf16.msra.mxu0 %v2509
        %2532 = vmatprep.subr.bf16.mxu0 0
        %2533 = vmatpush1.bf16.msra.mxu0 %v2510
        %2534 = vmatprep.subr.bf16.mxu0 0
        %2535 = vmatpush1.bf16.msra.mxu0 %v2511
        %2536 = vmatprep.subr.bf16.mxu0 0
        %2537 = vmatpush1.bf16.msra.mxu0 0
        %2538 = vmatprep.subr.bf16.mxu0 0
        %2539 = vmatpush1.bf16.msra.mxu0 0
        %2540 = vmatprep.subr.bf16.mxu0 0
        %2541 = vmatpush1.bf16.msra.mxu0 0
        %2542 = vmatprep.subr.bf16.mxu0 0
        %2543 = vmatpush1.bf16.msra.mxu0 0
        %2544 = vmatprep.subr.bf16.mxu0 0
        %2545 = vmatpush1.bf16.msra.mxu0 0
        %2546 = vmatprep.subr.bf16.mxu0 0
        %2547 = vmatpush1.bf16.msra.mxu0 0
        %2548 = vmatprep.subr.bf16.mxu0 0
        %2549 = vmatpush1.bf16.msra.mxu0 0
        %2550 = vmatprep.subr.bf16.mxu0 0
        %2551 = vmatpush1.bf16.msra.mxu0 0
        %2552 = vmatprep.subr.bf16.mxu0 0
        %2553 = vmatpush1.bf16.msra.mxu0 0
        %2554 = vmatprep.mubr.bf16.mxu0 0
        %2555 = vmatmul.mubr.bf16.gmra.mrb[0].mxu0 %v2520
        %v2556 = vpop.f32.mrb[0].mxu0
        %v2557 = vadd.f32 0.0, %v2556
        %v2558 = vpop.f32.mrb[0].mxu0
        %v2559 = vpop.f32.mrb[0].mxu0
        %v2560 = vadd.f32 0.0, %v2559
        %v2561 = vpop.f32.mrb[0].mxu0
        %2562 = vdwg.mxu0
        %v2563 = vadd.f32 %v2455, %v2557
        %v2564 = vadd.f32 %v2456, %v2560
        %v2565 = vld [vmem:[%s10] sm:$0x1]
        %v2567 = vlaneseq
        %v2568 = vshrl.u32 %v2567, 7
        %v2569 = vsub.s32 0, %v2568
        %v2570 = vrot.slane %v2565, %v2569
        %v2572 = vadd.f32 %v2563, %v2570
        %v2573 = vadd.f32 %v2564, %v2570
        %v2574 = vpack.c.bf16 %v2573, %v2572
        %v2575 = vld [vmem:[%s11] sm:$0xf]
        %v2576 = vld [vmem:[%s11 + $0x4] sm:$0xf]
        %v2577 = vld [vmem:[%s11 + $0x8] sm:$0xf]
        %v2578 = vld [vmem:[%s11 + $0xc] sm:$0xf]
        %v2579 = vld [vmem:[%s11 + $0x10] sm:$0xf]
        %v2580 = vld [vmem:[%s11 + $0x14] sm:$0xf]
        %v2581 = vld [vmem:[%s11 + $0x18] sm:$0xf]
        %v2582 = vld [vmem:[%s11 + $0x1c] sm:$0xf]
        %v2583 = vld [vmem:[%s12] sm:$0x1]
        %v2585 = vlaneseq
        %v2586 = vshrl.u32 %v2585, 7
        %v2587 = vsub.s32 0, %v2586
        %v2588 = vrot.slane %v2583, %v2587
        %v2598 = vunpack.c.l.b16 %v2575
        %v2599 = vunpack.c.l.b16 %v2576
        %v2600 = vunpack.c.l.b16 %v2577
        %v2601 = vunpack.c.l.b16 %v2578
        %v2602 = vunpack.c.l.b16 %v2579
        %v2603 = vunpack.c.l.b16 %v2580
        %v2604 = vunpack.c.l.b16 %v2581
        %v2605 = vunpack.c.l.b16 %v2582
        %v2606 = vpack.c.b16 %v2599, %v2598
        %v2607 = vpack.c.b16 %v2601, %v2600
        %v2608 = vpack.c.b16 %v2603, %v2602
        %v2609 = vpack.c.b16 %v2605, %v2604
        %vm2614 = vcmask 523264
        %v2616 = vsel %vm2614, %v2574, 0
        %2618 = vmatprep.subr.bf16.mxu0 0
        %2619 = vmatpush1.bf16.msra.mxu0 %v2606
        %2620 = vmatprep.subr.bf16.mxu0 0
        %2621 = vmatpush1.bf16.msra.mxu0 %v2607
        %2622 = vmatprep.subr.bf16.mxu0 0
        %2623 = vmatpush1.bf16.msra.mxu0 %v2608
        %2624 = vmatprep.subr.bf16.mxu0 0
        %2625 = vmatpush1.bf16.msra.mxu0 %v2609
        %2626 = vmatprep.subr.bf16.mxu0 0
        %2627 = vmatpush1.bf16.msra.mxu0 0
        %2628 = vmatprep.subr.bf16.mxu0 0
        %2629 = vmatpush1.bf16.msra.mxu0 0
        %2630 = vmatprep.subr.bf16.mxu0 0
        %2631 = vmatpush1.bf16.msra.mxu0 0
        %2632 = vmatprep.subr.bf16.mxu0 0
        %2633 = vmatpush1.bf16.msra.mxu0 0
        %2634 = vmatprep.subr.bf16.mxu0 0
        %2635 = vmatpush1.bf16.msra.mxu0 0
        %2636 = vmatprep.subr.bf16.mxu0 0
        %2637 = vmatpush1.bf16.msra.mxu0 0
        %2638 = vmatprep.subr.bf16.mxu0 0
        %2639 = vmatpush1.bf16.msra.mxu0 0
        %2640 = vmatprep.subr.bf16.mxu0 0
        %2641 = vmatpush1.bf16.msra.mxu0 0
        %2642 = vmatprep.subr.bf16.mxu0 0
        %2643 = vmatpush1.bf16.msra.mxu0 0
        %2644 = vmatprep.subr.bf16.mxu0 0
        %2645 = vmatpush1.bf16.msra.mxu0 0
        %2646 = vmatprep.subr.bf16.mxu0 0
        %2647 = vmatpush1.bf16.msra.mxu0 0
        %2648 = vmatprep.subr.bf16.mxu0 0
        %2649 = vmatpush1.bf16.msra.mxu0 0
        %2650 = vmatprep.mubr.bf16.mxu0 0
        %2651 = vmatmul.mubr.bf16.gmra.mrb[0].mxu0 %v2616
        %v2652 = vpop.f32.mrb[0].mxu0
        %v2653 = vadd.f32 %v2588, %v2652
        %v2654 = vpop.f32.mrb[0].mxu0
        %v2655 = vpop.f32.mrb[0].mxu0
        %v2656 = vadd.f32 %v2588, %v2655
        %v2657 = vpop.f32.mrb[0].mxu0
        %2658 = vdwg.mxu0
        %v2659 = vmul.f32 %v2653, %v1143
        %v2660 = vmul.f32 %v2656, %v1144
        %v2661 = vld [vmem:[%s13] sm:$0xf]
        %v2662 = vld [vmem:[%s13 + $0x4] sm:$0xf]
        %v2663 = vld [vmem:[%s13 + $0x8] sm:$0xf]
        %v2664 = vld [vmem:[%s13 + $0xc] sm:$0xf]
        %v2665 = vld [vmem:[%s13 + $0x10] sm:$0xf]
        %v2666 = vld [vmem:[%s13 + $0x14] sm:$0xf]
        %v2667 = vld [vmem:[%s13 + $0x18] sm:$0xf]
        %v2668 = vld [vmem:[%s13 + $0x1c] sm:$0xf]
        %v2669 = vld [vmem:[%s13 + $0x20] sm:$0xf]
        %v2670 = vld [vmem:[%s13 + $0x24] sm:$0xf]
        %v2671 = vld [vmem:[%s13 + $0x28] sm:$0xf]
        %s2672 = scalar_lea.vmem %s13, 44
        %v2673 = vld [vmem:[%s2672] sm:$0xf]
        %v2674 = vld [vmem:[%s2672 + $0x4] sm:$0xf]
        %v2675 = vld [vmem:[%s2672 + $0x8] sm:$0xf]
        %v2676 = vld [vmem:[%s2672 + $0xc] sm:$0xf]
        %v2677 = vld [vmem:[%s2672 + $0x10] sm:$0xf]
        %v2678 = vld [vmem:[%s2672 + $0x14] sm:$0xf]
        %v2679 = vld [vmem:[%s2672 + $0x18] sm:$0xf]
        %v2680 = vld [vmem:[%s2672 + $0x1c] sm:$0xf]
        %v2681 = vld [vmem:[%s2672 + $0x20] sm:$0xf]
        %v2682 = vld [vmem:[%s2672 + $0x24] sm:$0xf]
        %v2683 = vld [vmem:[%s2672 + $0x28] sm:$0xf]
        %v2695 = vunpack.c.l.b16 %v2673
        %v2696 = vunpack.c.l.b16 %v2674
        %v2697 = vunpack.c.l.b16 %v2675
        %v2698 = vunpack.c.l.b16 %v2676
        %v2699 = vunpack.c.l.b16 %v2677
        %v2700 = vunpack.c.l.b16 %v2678
        %v2701 = vunpack.c.l.b16 %v2679
        %v2702 = vunpack.c.l.b16 %v2680
        %v2703 = vunpack.c.l.b16 %v2681
        %v2704 = vunpack.c.l.b16 %v2682
        %v2705 = vunpack.c.l.b16 %v2683
        %v2706 = vpack.c.b16 %v2696, %v2695
        %v2707 = vpack.c.b16 %v2698, %v2697
        %v2708 = vpack.c.b16 %v2700, %v2699
        %v2709 = vpack.c.b16 %v2702, %v2701
        %v2710 = vpack.c.b16 %v2704, %v2703
        %v2711 = vpack.c.b16 %v2705, %v2705
        %v2718 = vsel %vm1250, %v2711, 0
        %2720 = vmatprep.subr.bf16.mxu0 0
        %2721 = vmatpush1.bf16.msra.mxu0 %v2706
        %2722 = vmatprep.subr.bf16.mxu0 0
        %2723 = vmatpush1.bf16.msra.mxu0 %v2707
        %2724 = vmatprep.subr.bf16.mxu0 0
        %2725 = vmatpush1.bf16.msra.mxu0 %v2708
        %2726 = vmatprep.subr.bf16.mxu0 0
        %2727 = vmatpush1.bf16.msra.mxu0 %v2709
        %2728 = vmatprep.subr.bf16.mxu0 0
        %2729 = vmatpush1.bf16.msra.mxu0 %v2710
        %2730 = vmatprep.subr.bf16.mxu0 0
        %2731 = vmatpush1.bf16.msra.mxu0 %v2718
        %2732 = vmatprep.subr.bf16.mxu0 0
        %2733 = vmatpush1.bf16.msra.mxu0 0
        %2734 = vmatprep.subr.bf16.mxu0 0
        %2735 = vmatpush1.bf16.msra.mxu0 0
        %2736 = vmatprep.subr.bf16.mxu0 0
        %2737 = vmatpush1.bf16.msra.mxu0 0
        %2738 = vmatprep.subr.bf16.mxu0 0
        %2739 = vmatpush1.bf16.msra.mxu0 0
        %2740 = vmatprep.subr.bf16.mxu0 0
        %2741 = vmatpush1.bf16.msra.mxu0 0
        %2742 = vmatprep.subr.bf16.mxu0 0
        %2743 = vmatpush1.bf16.msra.mxu0 0
        %2744 = vmatprep.subr.bf16.mxu0 0
        %2745 = vmatpush1.bf16.msra.mxu0 0
        %2746 = vmatprep.subr.bf16.mxu0 0
        %2747 = vmatpush1.bf16.msra.mxu0 0
        %2748 = vmatprep.subr.bf16.mxu0 0
        %2749 = vmatpush1.bf16.msra.mxu0 0
        %2750 = vmatprep.subr.bf16.mxu0 0
        %2751 = vmatpush1.bf16.msra.mxu0 0
        %2752 = vmatprep.mubr.bf16.mxu0 0
        %2753 = vmatmul.mubr.bf16.gmra.mrb[0].mxu0 %v1648
        %v2754 = vpop.f32.mrb[0].mxu0
        %v2755 = vadd.f32 0.0, %v2754
        %v2756 = vpop.f32.mrb[0].mxu0
        %v2757 = vpop.f32.mrb[0].mxu0
        %v2758 = vadd.f32 0.0, %v2757
        %v2759 = vpop.f32.mrb[0].mxu0
        %2760 = vdwg.mxu0
        %v2772 = vunpack.c.l.b16 %v2661
        %v2773 = vunpack.c.l.b16 %v2662
        %v2774 = vunpack.c.l.b16 %v2663
        %v2775 = vunpack.c.l.b16 %v2664
        %v2776 = vunpack.c.l.b16 %v2665
        %v2777 = vunpack.c.l.b16 %v2666
        %v2778 = vunpack.c.l.b16 %v2667
        %v2779 = vunpack.c.l.b16 %v2668
        %v2780 = vunpack.c.l.b16 %v2669
        %v2781 = vunpack.c.l.b16 %v2670
        %v2782 = vunpack.c.l.b16 %v2671
        %v2783 = vpack.c.b16 %v2773, %v2772
        %v2784 = vpack.c.b16 %v2775, %v2774
        %v2785 = vpack.c.b16 %v2777, %v2776
        %v2786 = vpack.c.b16 %v2779, %v2778
        %v2787 = vpack.c.b16 %v2781, %v2780
        %v2788 = vpack.c.b16 %v2782, %v2782
        %v2794 = vsel %vm1246, %v1170, 0
        %v2797 = vsel %vm1250, %v2788, 0
        %2799 = vmatprep.subr.bf16.mxu0 0
        %2800 = vmatpush1.bf16.msra.mxu0 %v2783
        %2801 = vmatprep.subr.bf16.mxu0 0
        %2802 = vmatpush1.bf16.msra.mxu0 %v2784
        %2803 = vmatprep.subr.bf16.mxu0 0
        %2804 = vmatpush1.bf16.msra.mxu0 %v2785
        %2805 = vmatprep.subr.bf16.mxu0 0
        %2806 = vmatpush1.bf16.msra.mxu0 %v2786
        %2807 = vmatprep.subr.bf16.mxu0 0
        %2808 = vmatpush1.bf16.msra.mxu0 %v2787
        %2809 = vmatprep.subr.bf16.mxu0 0
        %2810 = vmatpush1.bf16.msra.mxu0 %v2797
        %2811 = vmatprep.subr.bf16.mxu0 0
        %2812 = vmatpush1.bf16.msra.mxu0 0
        %2813 = vmatprep.subr.bf16.mxu0 0
        %2814 = vmatpush1.bf16.msra.mxu0 0
        %2815 = vmatprep.subr.bf16.mxu0 0
        %2816 = vmatpush1.bf16.msra.mxu0 0
        %2817 = vmatprep.subr.bf16.mxu0 0
        %2818 = vmatpush1.bf16.msra.mxu0 0
        %2819 = vmatprep.subr.bf16.mxu0 0
        %2820 = vmatpush1.bf16.msra.mxu0 0
        %2821 = vmatprep.subr.bf16.mxu0 0
        %2822 = vmatpush1.bf16.msra.mxu0 0
        %2823 = vmatprep.subr.bf16.mxu0 0
        %2824 = vmatpush1.bf16.msra.mxu0 0
        %2825 = vmatprep.subr.bf16.mxu0 0
        %2826 = vmatpush1.bf16.msra.mxu0 0
        %2827 = vmatprep.subr.bf16.mxu0 0
        %2828 = vmatpush1.bf16.msra.mxu0 0
        %2829 = vmatprep.subr.bf16.mxu0 0
        %2830 = vmatpush1.bf16.msra.mxu0 0
        %2831 = vmatprep.mubr.bf16.mxu0 0
        %2832 = vmatmul.mubr.bf16.gmra.mrb[0].mxu0 %v2794
        %v2833 = vpop.f32.mrb[0].mxu0
        %v2834 = vadd.f32 %v2755, %v2833
        %v2835 = vpop.f32.mrb[0].mxu0
        %v2836 = vpop.f32.mrb[0].mxu0
        %v2837 = vadd.f32 %v2758, %v2836
        %v2838 = vpop.f32.mrb[0].mxu0
        %2839 = vdwg.mxu0
        %s2840 = scalar_lea.vmem %s13, 88
        %v2841 = vld [vmem:[%s2840] sm:$0xf]
        %v2842 = vld [vmem:[%s2840 + $0x4] sm:$0xf]
        %v2843 = vld [vmem:[%s2840 + $0x8] sm:$0xf]
        %v2844 = vld [vmem:[%s2840 + $0xc] sm:$0xf]
        %v2845 = vld [vmem:[%s2840 + $0x10] sm:$0xf]
        %v2846 = vld [vmem:[%s2840 + $0x14] sm:$0xf]
        %v2847 = vld [vmem:[%s2840 + $0x18] sm:$0xf]
        %v2848 = vld [vmem:[%s2840 + $0x1c] sm:$0xf]
        %v2849 = vld [vmem:[%s2840 + $0x20] sm:$0xf]
        %v2850 = vld [vmem:[%s2840 + $0x24] sm:$0xf]
        %v2851 = vld [vmem:[%s2840 + $0x28] sm:$0xf]
        %v2863 = vunpack.c.l.b16 %v2841
        %v2864 = vunpack.c.l.b16 %v2842
        %v2865 = vunpack.c.l.b16 %v2843
        %v2866 = vunpack.c.l.b16 %v2844
        %v2867 = vunpack.c.l.b16 %v2845
        %v2868 = vunpack.c.l.b16 %v2846
        %v2869 = vunpack.c.l.b16 %v2847
        %v2870 = vunpack.c.l.b16 %v2848
        %v2871 = vunpack.c.l.b16 %v2849
        %v2872 = vunpack.c.l.b16 %v2850
        %v2873 = vunpack.c.l.b16 %v2851
        %v2874 = vpack.c.b16 %v2864, %v2863
        %v2875 = vpack.c.b16 %v2866, %v2865
        %v2876 = vpack.c.b16 %v2868, %v2867
        %v2877 = vpack.c.b16 %v2870, %v2869
        %v2878 = vpack.c.b16 %v2872, %v2871
        %v2879 = vpack.c.b16 %v2873, %v2873
        %v2886 = vsel %vm1250, %v2879, 0
        %2888 = vmatprep.subr.bf16.mxu0 0
        %2889 = vmatpush1.bf16.msra.mxu0 %v2874
        %2890 = vmatprep.subr.bf16.mxu0 0
        %2891 = vmatpush1.bf16.msra.mxu0 %v2875
        %2892 = vmatprep.subr.bf16.mxu0 0
        %2893 = vmatpush1.bf16.msra.mxu0 %v2876
        %2894 = vmatprep.subr.bf16.mxu0 0
        %2895 = vmatpush1.bf16.msra.mxu0 %v2877
        %2896 = vmatprep.subr.bf16.mxu0 0
        %2897 = vmatpush1.bf16.msra.mxu0 %v2878
        %2898 = vmatprep.subr.bf16.mxu0 0
        %2899 = vmatpush1.bf16.msra.mxu0 %v2886
        %2900 = vmatprep.subr.bf16.mxu0 0
        %2901 = vmatpush1.bf16.msra.mxu0 0
        %2902 = vmatprep.subr.bf16.mxu0 0
        %2903 = vmatpush1.bf16.msra.mxu0 0
        %2904 = vmatprep.subr.bf16.mxu0 0
        %2905 = vmatpush1.bf16.msra.mxu0 0
        %2906 = vmatprep.subr.bf16.mxu0 0
        %2907 = vmatpush1.bf16.msra.mxu0 0
        %2908 = vmatprep.subr.bf16.mxu0 0
        %2909 = vmatpush1.bf16.msra.mxu0 0
        %2910 = vmatprep.subr.bf16.mxu0 0
        %2911 = vmatpush1.bf16.msra.mxu0 0
        %2912 = vmatprep.subr.bf16.mxu0 0
        %2913 = vmatpush1.bf16.msra.mxu0 0
        %2914 = vmatprep.subr.bf16.mxu0 0
        %2915 = vmatpush1.bf16.msra.mxu0 0
        %2916 = vmatprep.subr.bf16.mxu0 0
        %2917 = vmatpush1.bf16.msra.mxu0 0
        %2918 = vmatprep.subr.bf16.mxu0 0
        %2919 = vmatpush1.bf16.msra.mxu0 0
        %2920 = vmatprep.mubr.bf16.mxu0 0
        %2921 = vmatmul.mubr.bf16.gmra.mrb[0].mxu0 %v1334
        %v2922 = vpop.f32.mrb[0].mxu0
        %v2923 = vadd.f32 0.0, %v2922
        %v2924 = vpop.f32.mrb[0].mxu0
        %v2925 = vpop.f32.mrb[0].mxu0
        %v2926 = vadd.f32 0.0, %v2925
        %v2927 = vpop.f32.mrb[0].mxu0
        %2928 = vdwg.mxu0
        %v2929 = vadd.f32 %v2834, %v2923
        %v2930 = vadd.f32 %v2837, %v2926
        %s2931 = scalar_lea.vmem %s13, 132
        %v2932 = vld [vmem:[%s2931] sm:$0xf]
        %v2933 = vld [vmem:[%s2931 + $0x4] sm:$0xf]
        %v2934 = vld [vmem:[%s2931 + $0x8] sm:$0xf]
        %v2935 = vld [vmem:[%s2931 + $0xc] sm:$0xf]
        %v2936 = vld [vmem:[%s2931 + $0x10] sm:$0xf]
        %v2937 = vld [vmem:[%s2931 + $0x14] sm:$0xf]
        %v2938 = vld [vmem:[%s2931 + $0x18] sm:$0xf]
        %v2939 = vld [vmem:[%s2931 + $0x1c] sm:$0xf]
        %v2940 = vld [vmem:[%s2931 + $0x20] sm:$0xf]
        %v2941 = vld [vmem:[%s2931 + $0x24] sm:$0xf]
        %v2942 = vld [vmem:[%s2931 + $0x28] sm:$0xf]
        %v2954 = vunpack.c.l.b16 %v2932
        %v2955 = vunpack.c.l.b16 %v2933
        %v2956 = vunpack.c.l.b16 %v2934
        %v2957 = vunpack.c.l.b16 %v2935
        %v2958 = vunpack.c.l.b16 %v2936
        %v2959 = vunpack.c.l.b16 %v2937
        %v2960 = vunpack.c.l.b16 %v2938
        %v2961 = vunpack.c.l.b16 %v2939
        %v2962 = vunpack.c.l.b16 %v2940
        %v2963 = vunpack.c.l.b16 %v2941
        %v2964 = vunpack.c.l.b16 %v2942
        %v2965 = vpack.c.b16 %v2955, %v2954
        %v2966 = vpack.c.b16 %v2957, %v2956
        %v2967 = vpack.c.b16 %v2959, %v2958
        %v2968 = vpack.c.b16 %v2961, %v2960
        %v2969 = vpack.c.b16 %v2963, %v2962
        %v2970 = vpack.c.b16 %v2964, %v2964
        %v2977 = vsel %vm1250, %v2970, 0
        %2979 = vmatprep.subr.bf16.mxu0 0
        %2980 = vmatpush1.bf16.msra.mxu0 %v2965
        %2981 = vmatprep.subr.bf16.mxu0 0
        %2982 = vmatpush1.bf16.msra.mxu0 %v2966
        %2983 = vmatprep.subr.bf16.mxu0 0
        %2984 = vmatpush1.bf16.msra.mxu0 %v2967
        %2985 = vmatprep.subr.bf16.mxu0 0
        %2986 = vmatpush1.bf16.msra.mxu0 %v2968
        %2987 = vmatprep.subr.bf16.mxu0 0
        %2988 = vmatpush1.bf16.msra.mxu0 %v2969
        %2989 = vmatprep.subr.bf16.mxu0 0
        %2990 = vmatpush1.bf16.msra.mxu0 %v2977
        %2991 = vmatprep.subr.bf16.mxu0 0
        %2992 = vmatpush1.bf16.msra.mxu0 0
        %2993 = vmatprep.subr.bf16.mxu0 0
        %2994 = vmatpush1.bf16.msra.mxu0 0
        %2995 = vmatprep.subr.bf16.mxu0 0
        %2996 = vmatpush1.bf16.msra.mxu0 0
        %2997 = vmatprep.subr.bf16.mxu0 0
        %2998 = vmatpush1.bf16.msra.mxu0 0
        %2999 = vmatprep.subr.bf16.mxu0 0
        %3000 = vmatpush1.bf16.msra.mxu0 0
        %3001 = vmatprep.subr.bf16.mxu0 0
        %3002 = vmatpush1.bf16.msra.mxu0 0
        %3003 = vmatprep.subr.bf16.mxu0 0
        %3004 = vmatpush1.bf16.msra.mxu0 0
        %3005 = vmatprep.subr.bf16.mxu0 0
        %3006 = vmatpush1.bf16.msra.mxu0 0
        %3007 = vmatprep.subr.bf16.mxu0 0
        %3008 = vmatpush1.bf16.msra.mxu0 0
        %3009 = vmatprep.subr.bf16.mxu0 0
        %3010 = vmatpush1.bf16.msra.mxu0 0
        %3011 = vmatprep.mubr.bf16.mxu0 0
        %3012 = vmatmul.mubr.bf16.gmra.mrb[0].mxu0 %v1248
        %v3013 = vpop.f32.mrb[0].mxu0
        %v3014 = vadd.f32 0.0, %v3013
        %v3015 = vpop.f32.mrb[0].mxu0
        %v3016 = vpop.f32.mrb[0].mxu0
        %v3017 = vadd.f32 0.0, %v3016
        %v3018 = vpop.f32.mrb[0].mxu0
        %3019 = vdwg.mxu0
        %v3020 = vadd.f32 %v2929, %v3014
        %v3021 = vadd.f32 %v2930, %v3017
        %s3022 = scalar_lea.vmem %s13, 176
        %v3023 = vld [vmem:[%s3022] sm:$0xf]
        %v3024 = vld [vmem:[%s3022 + $0x4] sm:$0xf]
        %v3025 = vld [vmem:[%s3022 + $0x8] sm:$0xf]
        %v3026 = vld [vmem:[%s3022 + $0xc] sm:$0xf]
        %v3027 = vld [vmem:[%s3022 + $0x10] sm:$0xf]
        %v3028 = vld [vmem:[%s3022 + $0x14] sm:$0xf]
        %v3029 = vld [vmem:[%s3022 + $0x18] sm:$0xf]
        %v3030 = vld [vmem:[%s3022 + $0x1c] sm:$0xf]
        %v3031 = vld [vmem:[%s3022 + $0x20] sm:$0xf]
        %v3032 = vld [vmem:[%s3022 + $0x24] sm:$0xf]
        %v3033 = vld [vmem:[%s3022 + $0x28] sm:$0xf]
        %v3045 = vunpack.c.l.b16 %v3023
        %v3046 = vunpack.c.l.b16 %v3024
        %v3047 = vunpack.c.l.b16 %v3025
        %v3048 = vunpack.c.l.b16 %v3026
        %v3049 = vunpack.c.l.b16 %v3027
        %v3050 = vunpack.c.l.b16 %v3028
        %v3051 = vunpack.c.l.b16 %v3029
        %v3052 = vunpack.c.l.b16 %v3030
        %v3053 = vunpack.c.l.b16 %v3031
        %v3054 = vunpack.c.l.b16 %v3032
        %v3055 = vunpack.c.l.b16 %v3033
        %v3056 = vpack.c.b16 %v3046, %v3045
        %v3057 = vpack.c.b16 %v3048, %v3047
        %v3058 = vpack.c.b16 %v3050, %v3049
        %v3059 = vpack.c.b16 %v3052, %v3051
        %v3060 = vpack.c.b16 %v3054, %v3053
        %v3061 = vpack.c.b16 %v3055, %v3055
        %v3068 = vsel %vm1250, %v3061, 0
        %3070 = vmatprep.subr.bf16.mxu0 0
        %3071 = vmatpush1.bf16.msra.mxu0 %v3056
        %3072 = vmatprep.subr.bf16.mxu0 0
        %3073 = vmatpush1.bf16.msra.mxu0 %v3057
        %3074 = vmatprep.subr.bf16.mxu0 0
        %3075 = vmatpush1.bf16.msra.mxu0 %v3058
        %3076 = vmatprep.subr.bf16.mxu0 0
        %3077 = vmatpush1.bf16.msra.mxu0 %v3059
        %3078 = vmatprep.subr.bf16.mxu0 0
        %3079 = vmatpush1.bf16.msra.mxu0 %v3060
        %3080 = vmatprep.subr.bf16.mxu0 0
        %3081 = vmatpush1.bf16.msra.mxu0 %v3068
        %3082 = vmatprep.subr.bf16.mxu0 0
        %3083 = vmatpush1.bf16.msra.mxu0 0
        %3084 = vmatprep.subr.bf16.mxu0 0
        %3085 = vmatpush1.bf16.msra.mxu0 0
        %3086 = vmatprep.subr.bf16.mxu0 0
        %3087 = vmatpush1.bf16.msra.mxu0 0
        %3088 = vmatprep.subr.bf16.mxu0 0
        %3089 = vmatpush1.bf16.msra.mxu0 0
        %3090 = vmatprep.subr.bf16.mxu0 0
        %3091 = vmatpush1.bf16.msra.mxu0 0
        %3092 = vmatprep.subr.bf16.mxu0 0
        %3093 = vmatpush1.bf16.msra.mxu0 0
        %3094 = vmatprep.subr.bf16.mxu0 0
        %3095 = vmatpush1.bf16.msra.mxu0 0
        %3096 = vmatprep.subr.bf16.mxu0 0
        %3097 = vmatpush1.bf16.msra.mxu0 0
        %3098 = vmatprep.subr.bf16.mxu0 0
        %3099 = vmatpush1.bf16.msra.mxu0 0
        %3100 = vmatprep.subr.bf16.mxu0 0
        %3101 = vmatpush1.bf16.msra.mxu0 0
        %3102 = vmatprep.mubr.bf16.mxu0 0
        %3103 = vmatmul.mubr.bf16.gmra.mrb[0].mxu0 %v1430
        %v3104 = vpop.f32.mrb[0].mxu0
        %v3105 = vadd.f32 0.0, %v3104
        %v3106 = vpop.f32.mrb[0].mxu0
        %v3107 = vpop.f32.mrb[0].mxu0
        %v3108 = vadd.f32 0.0, %v3107
        %v3109 = vpop.f32.mrb[0].mxu0
        %3110 = vdwg.mxu0
        %v3111 = vadd.f32 %v3020, %v3105
        %v3112 = vadd.f32 %v3021, %v3108
        %s3113 = scalar_lea.vmem %s13, 220
        %v3114 = vld [vmem:[%s3113] sm:$0xf]
        %v3115 = vld [vmem:[%s3113 + $0x4] sm:$0xf]
        %v3116 = vld [vmem:[%s3113 + $0x8] sm:$0xf]
        %v3117 = vld [vmem:[%s3113 + $0xc] sm:$0xf]
        %v3118 = vld [vmem:[%s3113 + $0x10] sm:$0xf]
        %v3119 = vld [vmem:[%s3113 + $0x14] sm:$0xf]
        %v3120 = vld [vmem:[%s3113 + $0x18] sm:$0xf]
        %v3121 = vld [vmem:[%s3113 + $0x1c] sm:$0xf]
        %v3122 = vld [vmem:[%s3113 + $0x20] sm:$0xf]
        %v3123 = vld [vmem:[%s3113 + $0x24] sm:$0xf]
        %v3124 = vld [vmem:[%s3113 + $0x28] sm:$0xf]
        %v3136 = vunpack.c.l.b16 %v3114
        %v3137 = vunpack.c.l.b16 %v3115
        %v3138 = vunpack.c.l.b16 %v3116
        %v3139 = vunpack.c.l.b16 %v3117
        %v3140 = vunpack.c.l.b16 %v3118
        %v3141 = vunpack.c.l.b16 %v3119
        %v3142 = vunpack.c.l.b16 %v3120
        %v3143 = vunpack.c.l.b16 %v3121
        %v3144 = vunpack.c.l.b16 %v3122
        %v3145 = vunpack.c.l.b16 %v3123
        %v3146 = vunpack.c.l.b16 %v3124
        %v3147 = vpack.c.b16 %v3137, %v3136
        %v3148 = vpack.c.b16 %v3139, %v3138
        %v3149 = vpack.c.b16 %v3141, %v3140
        %v3150 = vpack.c.b16 %v3143, %v3142
        %v3151 = vpack.c.b16 %v3145, %v3144
        %v3152 = vpack.c.b16 %v3146, %v3146
        %v3159 = vsel %vm1250, %v3152, 0
        %3161 = vmatprep.subr.bf16.mxu0 0
        %3162 = vmatpush1.bf16.msra.mxu0 %v3147
        %3163 = vmatprep.subr.bf16.mxu0 0
        %3164 = vmatpush1.bf16.msra.mxu0 %v3148
        %3165 = vmatprep.subr.bf16.mxu0 0
        %3166 = vmatpush1.bf16.msra.mxu0 %v3149
        %3167 = vmatprep.subr.bf16.mxu0 0
        %3168 = vmatpush1.bf16.msra.mxu0 %v3150
        %3169 = vmatprep.subr.bf16.mxu0 0
        %3170 = vmatpush1.bf16.msra.mxu0 %v3151
        %3171 = vmatprep.subr.bf16.mxu0 0
        %3172 = vmatpush1.bf16.msra.mxu0 %v3159
        %3173 = vmatprep.subr.bf16.mxu0 0
        %3174 = vmatpush1.bf16.msra.mxu0 0
        %3175 = vmatprep.subr.bf16.mxu0 0
        %3176 = vmatpush1.bf16.msra.mxu0 0
        %3177 = vmatprep.subr.bf16.mxu0 0
        %3178 = vmatpush1.bf16.msra.mxu0 0
        %3179 = vmatprep.subr.bf16.mxu0 0
        %3180 = vmatpush1.bf16.msra.mxu0 0
        %3181 = vmatprep.subr.bf16.mxu0 0
        %3182 = vmatpush1.bf16.msra.mxu0 0
        %3183 = vmatprep.subr.bf16.mxu0 0
        %3184 = vmatpush1.bf16.msra.mxu0 0
        %3185 = vmatprep.subr.bf16.mxu0 0
        %3186 = vmatpush1.bf16.msra.mxu0 0
        %3187 = vmatprep.subr.bf16.mxu0 0
        %3188 = vmatpush1.bf16.msra.mxu0 0
        %3189 = vmatprep.subr.bf16.mxu0 0
        %3190 = vmatpush1.bf16.msra.mxu0 0
        %3191 = vmatprep.subr.bf16.mxu0 0
        %3192 = vmatpush1.bf16.msra.mxu0 0
        %3193 = vmatprep.mubr.bf16.mxu0 0
        %3194 = vmatmul.mubr.bf16.gmra.mrb[0].mxu0 %v1930
        %v3195 = vpop.f32.mrb[0].mxu0
        %v3196 = vadd.f32 0.0, %v3195
        %v3197 = vpop.f32.mrb[0].mxu0
        %v3198 = vpop.f32.mrb[0].mxu0
        %v3199 = vadd.f32 0.0, %v3198
        %v3200 = vpop.f32.mrb[0].mxu0
        %3201 = vdwg.mxu0
        %v3202 = vadd.f32 %v3111, %v3196
        %v3203 = vadd.f32 %v3112, %v3199
        %s3204 = scalar_lea.vmem %s13, 264
        %v3205 = vld [vmem:[%s3204] sm:$0xf]
        %v3206 = vld [vmem:[%s3204 + $0x4] sm:$0xf]
        %v3207 = vld [vmem:[%s3204 + $0x8] sm:$0xf]
        %v3208 = vld [vmem:[%s3204 + $0xc] sm:$0xf]
        %v3209 = vld [vmem:[%s3204 + $0x10] sm:$0xf]
        %v3210 = vld [vmem:[%s3204 + $0x14] sm:$0xf]
        %v3211 = vld [vmem:[%s3204 + $0x18] sm:$0xf]
        %v3212 = vld [vmem:[%s3204 + $0x1c] sm:$0xf]
        %v3213 = vld [vmem:[%s3204 + $0x20] sm:$0xf]
        %v3214 = vld [vmem:[%s3204 + $0x24] sm:$0xf]
        %v3215 = vld [vmem:[%s3204 + $0x28] sm:$0xf]
        %v3216 = vrot.slane %v1170, 3
        %v3217 = vrot.slane %v1171, 3
        %v3218 = vsel %vm2248, %v3216, %v3217
        %v3230 = vunpack.c.l.b16 %v3205
        %v3231 = vunpack.c.l.b16 %v3206
        %v3232 = vunpack.c.l.b16 %v3207
        %v3233 = vunpack.c.l.b16 %v3208
        %v3234 = vunpack.c.l.b16 %v3209
        %v3235 = vunpack.c.l.b16 %v3210
        %v3236 = vunpack.c.l.b16 %v3211
        %v3237 = vunpack.c.l.b16 %v3212
        %v3238 = vunpack.c.l.b16 %v3213
        %v3239 = vunpack.c.l.b16 %v3214
        %v3240 = vunpack.c.l.b16 %v3215
        %v3241 = vpack.c.b16 %v3231, %v3230
        %v3242 = vpack.c.b16 %v3233, %v3232
        %v3243 = vpack.c.b16 %v3235, %v3234
        %v3244 = vpack.c.b16 %v3237, %v3236
        %v3245 = vpack.c.b16 %v3239, %v3238
        %v3246 = vpack.c.b16 %v3240, %v3240
        %v3253 = vsel %vm1246, %v3218, 0
        %v3256 = vsel %vm1250, %v3246, 0
        %3258 = vmatprep.subr.bf16.mxu0 0
        %3259 = vmatpush1.bf16.msra.mxu0 %v3241
        %3260 = vmatprep.subr.bf16.mxu0 0
        %3261 = vmatpush1.bf16.msra.mxu0 %v3242
        %3262 = vmatprep.subr.bf16.mxu0 0
        %3263 = vmatpush1.bf16.msra.mxu0 %v3243
        %3264 = vmatprep.subr.bf16.mxu0 0
        %3265 = vmatpush1.bf16.msra.mxu0 %v3244
        %3266 = vmatprep.subr.bf16.mxu0 0
        %3267 = vmatpush1.bf16.msra.mxu0 %v3245
        %3268 = vmatprep.subr.bf16.mxu0 0
        %3269 = vmatpush1.bf16.msra.mxu0 %v3256
        %3270 = vmatprep.subr.bf16.mxu0 0
        %3271 = vmatpush1.bf16.msra.mxu0 0
        %3272 = vmatprep.subr.bf16.mxu0 0
        %3273 = vmatpush1.bf16.msra.mxu0 0
        %3274 = vmatprep.subr.bf16.mxu0 0
        %3275 = vmatpush1.bf16.msra.mxu0 0
        %3276 = vmatprep.subr.bf16.mxu0 0
        %3277 = vmatpush1.bf16.msra.mxu0 0
        %3278 = vmatprep.subr.bf16.mxu0 0
        %3279 = vmatpush1.bf16.msra.mxu0 0
        %3280 = vmatprep.subr.bf16.mxu0 0
        %3281 = vmatpush1.bf16.msra.mxu0 0
        %3282 = vmatprep.subr.bf16.mxu0 0
        %3283 = vmatpush1.bf16.msra.mxu0 0
        %3284 = vmatprep.subr.bf16.mxu0 0
        %3285 = vmatpush1.bf16.msra.mxu0 0
        %3286 = vmatprep.subr.bf16.mxu0 0
        %3287 = vmatpush1.bf16.msra.mxu0 0
        %3288 = vmatprep.subr.bf16.mxu0 0
        %3289 = vmatpush1.bf16.msra.mxu0 0
        %3290 = vmatprep.mubr.bf16.mxu0 0
        %3291 = vmatmul.mubr.bf16.gmra.mrb[0].mxu0 %v3253
        %v3292 = vpop.f32.mrb[0].mxu0
        %v3293 = vadd.f32 0.0, %v3292
        %v3294 = vpop.f32.mrb[0].mxu0
        %v3295 = vpop.f32.mrb[0].mxu0
        %v3296 = vadd.f32 0.0, %v3295
        %v3297 = vpop.f32.mrb[0].mxu0
        %3298 = vdwg.mxu0
        %v3299 = vadd.f32 %v3202, %v3293
        %v3300 = vadd.f32 %v3203, %v3296
        %v3301 = vld [vmem:[%s14] sm:$0x1]
        %v3303 = vlaneseq
        %v3304 = vshrl.u32 %v3303, 7
        %v3305 = vsub.s32 0, %v3304
        %v3306 = vrot.slane %v3301, %v3305
        %v3308 = vadd.f32 %v3299, %v3306
        %v3309 = vadd.f32 %v3300, %v3306
        %3312 = vrot.lane.b32.xlu0 %v3308, 36
        %v3313 = vpop.permute.xlu0 %3312
        %3314 = vrot.lane.b32.xlu0 %v3309, 36
        %v3315 = vpop.permute.xlu0 %3314
        %vm3318 = vcmask 293888
        %v3319 = vsel %vm3318, 0.0, %v3313
        %v3320 = vsel %vm3318, 0.0, %v3315
        %vm3321 = vcmask 818176
        %v3322 = vsel %vm3321, %v3319, 0.0
        %v3323 = vsel %vm3321, %v3320, 0.0
        %v3327 = vrot.slane %v3322, 7
        %v3328 = vrot.slane 0.0, 7
        %v3329 = vrot.slane %v3323, 7
        %v3330 = vsel %vm702, %v3327, %v3329
        %v3331 = vsel %vm702, %v3328, %v3328
        %v3337 = vsel %vm702, 0.0, %v3327
        %v3338 = vsel %vm702, 0.0, %v3328
        %v3339 = vsel %vm702, %v3329, 0.0
        %v3340 = vsel %vm702, %v3328, 0.0
        %v3341 = vpack.c.bf16 %v3337, 0.0
        %v3342 = vpack.c.bf16 %v3338, 0.0
        %v3343 = vld [vmem:[%s15] sm:$0xf]
        %v3344 = vld [vmem:[%s15 + $0x4] sm:$0xf]
        %v3345 = vld [vmem:[%s15 + $0x8] sm:$0xf]
        %v3346 = vld [vmem:[%s15 + $0xc] sm:$0xf]
        %v3347 = vld [vmem:[%s15 + $0x10] sm:$0xf]
        %v3348 = vld [vmem:[%s15 + $0x14] sm:$0xf]
        %v3349 = vld [vmem:[%s15 + $0x18] sm:$0xf]
        %v3350 = vld [vmem:[%s15 + $0x1c] sm:$0xf]
        %v3351 = vld [vmem:[%s15 + $0x20] sm:$0xf]
        %v3352 = vld [vmem:[%s15 + $0x24] sm:$0xf]
        %v3353 = vld [vmem:[%s15 + $0x28] sm:$0xf]
        %v3354 = vld [vmem:[%s15 + $0x2c] sm:$0xf]
        %v3355 = vld [vmem:[%s15 + $0x30] sm:$0xf]
        %v3356 = vld [vmem:[%s15 + $0x34] sm:$0xf]
        %v3357 = vld [vmem:[%s15 + $0x38] sm:$0xf]
        %v3358 = vld [vmem:[%s15 + $0x3c] sm:$0xf]
        %v3359 = vld [vmem:[%s15 + $0x40] sm:$0xf]
        %v3360 = vpack.c.bf16 %v3330, %v3330
        %v3361 = vpack.c.bf16 %v3331, %v3331
        %s3362 = scalar_lea.vmem %s15, 68
        %v3363 = vld [vmem:[%s3362] sm:$0xf]
        %v3364 = vld [vmem:[%s3362 + $0x4] sm:$0xf]
        %v3365 = vld [vmem:[%s3362 + $0x8] sm:$0xf]
        %v3366 = vld [vmem:[%s3362 + $0xc] sm:$0xf]
        %v3367 = vld [vmem:[%s3362 + $0x10] sm:$0xf]
        %v3368 = vld [vmem:[%s3362 + $0x14] sm:$0xf]
        %v3369 = vld [vmem:[%s3362 + $0x18] sm:$0xf]
        %v3370 = vld [vmem:[%s3362 + $0x1c] sm:$0xf]
        %v3371 = vld [vmem:[%s3362 + $0x20] sm:$0xf]
        %v3372 = vld [vmem:[%s3362 + $0x24] sm:$0xf]
        %v3373 = vld [vmem:[%s3362 + $0x28] sm:$0xf]
        %v3374 = vld [vmem:[%s3362 + $0x2c] sm:$0xf]
        %v3375 = vld [vmem:[%s3362 + $0x30] sm:$0xf]
        %v3376 = vld [vmem:[%s3362 + $0x34] sm:$0xf]
        %v3377 = vld [vmem:[%s3362 + $0x38] sm:$0xf]
        %v3378 = vld [vmem:[%s3362 + $0x3c] sm:$0xf]
        %v3379 = vld [vmem:[%s3362 + $0x40] sm:$0xf]
        %v3381 = vshrl.u32 %v3341, 16
        %v3383 = vrot.slane %v3381, 1
        %v3384 = vshll.u32 %v3341, 16
        %v3386 = vrot.slane %v3384, 2
        %v3387 = vor.u32 %v3383, %v3386
        %v3389 = vshrl.u32 %v3360, 16
        %v3391 = vrot.slane %v3389, 1
        %v3392 = vshll.u32 %v3360, 16
        %v3394 = vrot.slane %v3392, 2
        %v3395 = vor.u32 %v3391, %v3394
        %v3396 = vsel %vm1195, %v3387, %v3395
        %v3398 = vshrl.u32 %v3342, 16
        %v3400 = vrot.slane %v3398, 1
        %v3401 = vshll.u32 %v3342, 16
        %v3403 = vrot.slane %v3401, 2
        %v3404 = vor.u32 %v3400, %v3403
        %v3406 = vshrl.u32 %v3361, 16
        %v3408 = vrot.slane %v3406, 1
        %v3409 = vshll.u32 %v3361, 16
        %v3411 = vrot.slane %v3409, 2
        %v3412 = vor.u32 %v3408, %v3411
        %v3413 = vsel %vm1195, %v3404, %v3412
        %v3432 = vunpack.c.l.b16 %v3363
        %v3433 = vunpack.c.l.b16 %v3364
        %v3434 = vunpack.c.l.b16 %v3365
        %v3435 = vunpack.c.l.b16 %v3366
        %v3436 = vunpack.c.l.b16 %v3367
        %v3437 = vunpack.c.l.b16 %v3368
        %v3438 = vunpack.c.l.b16 %v3369
        %v3439 = vunpack.c.l.b16 %v3370
        %v3440 = vunpack.c.l.b16 %v3371
        %v3441 = vunpack.c.l.b16 %v3372
        %v3442 = vunpack.c.l.b16 %v3373
        %v3443 = vunpack.c.l.b16 %v3374
        %v3444 = vunpack.c.l.b16 %v3375
        %v3445 = vunpack.c.l.b16 %v3376
        %v3446 = vunpack.c.l.b16 %v3377
        %v3447 = vunpack.c.l.b16 %v3378
        %v3448 = vunpack.c.l.b16 %v3379
        %v3449 = vpack.c.b16 %v3433, %v3432
        %v3450 = vpack.c.b16 %v3435, %v3434
        %v3451 = vpack.c.b16 %v3437, %v3436
        %v3452 = vpack.c.b16 %v3439, %v3438
        %v3453 = vpack.c.b16 %v3441, %v3440
        %v3454 = vpack.c.b16 %v3443, %v3442
        %v3455 = vpack.c.b16 %v3445, %v3444
        %v3456 = vpack.c.b16 %v3447, %v3446
        %v3457 = vpack.c.b16 %v3448, %v3448
        %v3467 = vsel %vm693, %v3413, 0
        %v3470 = vsel %vm1250, %v3457, 0
        %3472 = vmatprep.subr.bf16.mxu0 0
        %3473 = vmatpush1.bf16.msra.mxu0 %v3449
        %3474 = vmatprep.subr.bf16.mxu0 0
        %3475 = vmatpush1.bf16.msra.mxu0 %v3450
        %3476 = vmatprep.subr.bf16.mxu0 0
        %3477 = vmatpush1.bf16.msra.mxu0 %v3451
        %3478 = vmatprep.subr.bf16.mxu0 0
        %3479 = vmatpush1.bf16.msra.mxu0 %v3452
        %3480 = vmatprep.subr.bf16.mxu0 0
        %3481 = vmatpush1.bf16.msra.mxu0 %v3453
        %3482 = vmatprep.subr.bf16.mxu0 0
        %3483 = vmatpush1.bf16.msra.mxu0 %v3454
        %3484 = vmatprep.subr.bf16.mxu0 0
        %3485 = vmatpush1.bf16.msra.mxu0 %v3455
        %3486 = vmatprep.subr.bf16.mxu0 0
        %3487 = vmatpush1.bf16.msra.mxu0 %v3456
        %3488 = vmatprep.subr.bf16.mxu0 0
        %3489 = vmatpush1.bf16.msra.mxu0 %v3470
        %3490 = vmatprep.subr.bf16.mxu0 0
        %3491 = vmatpush1.bf16.msra.mxu0 0
        %3492 = vmatprep.subr.bf16.mxu0 0
        %3493 = vmatpush1.bf16.msra.mxu0 0
        %3494 = vmatprep.subr.bf16.mxu0 0
        %3495 = vmatpush1.bf16.msra.mxu0 0
        %3496 = vmatprep.subr.bf16.mxu0 0
        %3497 = vmatpush1.bf16.msra.mxu0 0
        %3498 = vmatprep.subr.bf16.mxu0 0
        %3499 = vmatpush1.bf16.msra.mxu0 0
        %3500 = vmatprep.subr.bf16.mxu0 0
        %3501 = vmatpush1.bf16.msra.mxu0 0
        %3502 = vmatprep.subr.bf16.mxu0 0
        %3503 = vmatpush1.bf16.msra.mxu0 0
        %3504 = vmatprep.mubr.bf16.mxu0 %v3467
        %3505 = vmatmul.mubr.bf16.gmra.mrb[0].mxu0 %v3396
        %v3506 = vpop.f32.mrb[0].mxu0
        %v3507 = vadd.f32 0.0, %v3506
        %v3508 = vpop.f32.mrb[0].mxu0
        %v3509 = vpop.f32.mrb[0].mxu0
        %v3510 = vadd.f32 0.0, %v3509
        %v3511 = vpop.f32.mrb[0].mxu0
        %3512 = vdwg.mxu0
        %v3530 = vunpack.c.l.b16 %v3343
        %v3531 = vunpack.c.l.b16 %v3344
        %v3532 = vunpack.c.l.b16 %v3345
        %v3533 = vunpack.c.l.b16 %v3346
        %v3534 = vunpack.c.l.b16 %v3347
        %v3535 = vunpack.c.l.b16 %v3348
        %v3536 = vunpack.c.l.b16 %v3349
        %v3537 = vunpack.c.l.b16 %v3350
        %v3538 = vunpack.c.l.b16 %v3351
        %v3539 = vunpack.c.l.b16 %v3352
        %v3540 = vunpack.c.l.b16 %v3353
        %v3541 = vunpack.c.l.b16 %v3354
        %v3542 = vunpack.c.l.b16 %v3355
        %v3543 = vunpack.c.l.b16 %v3356
        %v3544 = vunpack.c.l.b16 %v3357
        %v3545 = vunpack.c.l.b16 %v3358
        %v3546 = vunpack.c.l.b16 %v3359
        %v3547 = vpack.c.b16 %v3531, %v3530
        %v3548 = vpack.c.b16 %v3533, %v3532
        %v3549 = vpack.c.b16 %v3535, %v3534
        %v3550 = vpack.c.b16 %v3537, %v3536
        %v3551 = vpack.c.b16 %v3539, %v3538
        %v3552 = vpack.c.b16 %v3541, %v3540
        %v3553 = vpack.c.b16 %v3543, %v3542
        %v3554 = vpack.c.b16 %v3545, %v3544
        %v3555 = vpack.c.b16 %v3546, %v3546
        %v3564 = vsel %vm693, %v3342, 0
        %v3567 = vsel %vm1250, %v3555, 0
        %3569 = vmatprep.subr.bf16.mxu0 0
        %3570 = vmatpush1.bf16.msra.mxu0 %v3547
        %3571 = vmatprep.subr.bf16.mxu0 0
        %3572 = vmatpush1.bf16.msra.mxu0 %v3548
        %3573 = vmatprep.subr.bf16.mxu0 0
        %3574 = vmatpush1.bf16.msra.mxu0 %v3549
        %3575 = vmatprep.subr.bf16.mxu0 0
        %3576 = vmatpush1.bf16.msra.mxu0 %v3550
        %3577 = vmatprep.subr.bf16.mxu0 0
        %3578 = vmatpush1.bf16.msra.mxu0 %v3551
        %3579 = vmatprep.subr.bf16.mxu0 0
        %3580 = vmatpush1.bf16.msra.mxu0 %v3552
        %3581 = vmatprep.subr.bf16.mxu0 0
        %3582 = vmatpush1.bf16.msra.mxu0 %v3553
        %3583 = vmatprep.subr.bf16.mxu0 0
        %3584 = vmatpush1.bf16.msra.mxu0 %v3554
        %3585 = vmatprep.subr.bf16.mxu0 0
        %3586 = vmatpush1.bf16.msra.mxu0 %v3567
        %3587 = vmatprep.subr.bf16.mxu0 0
        %3588 = vmatpush1.bf16.msra.mxu0 0
        %3589 = vmatprep.subr.bf16.mxu0 0
        %3590 = vmatpush1.bf16.msra.mxu0 0
        %3591 = vmatprep.subr.bf16.mxu0 0
        %3592 = vmatpush1.bf16.msra.mxu0 0
        %3593 = vmatprep.subr.bf16.mxu0 0
        %3594 = vmatpush1.bf16.msra.mxu0 0
        %3595 = vmatprep.subr.bf16.mxu0 0
        %3596 = vmatpush1.bf16.msra.mxu0 0
        %3597 = vmatprep.subr.bf16.mxu0 0
        %3598 = vmatpush1.bf16.msra.mxu0 0
        %3599 = vmatprep.subr.bf16.mxu0 0
        %3600 = vmatpush1.bf16.msra.mxu0 0
        %3601 = vmatprep.mubr.bf16.mxu0 %v3564
        %3602 = vmatmul.mubr.bf16.gmra.mrb[0].mxu0 %v3341
        %v3603 = vpop.f32.mrb[0].mxu0
        %v3604 = vadd.f32 %v3507, %v3603
        %v3605 = vpop.f32.mrb[0].mxu0
        %v3606 = vpop.f32.mrb[0].mxu0
        %v3607 = vadd.f32 %v3510, %v3606
        %v3608 = vpop.f32.mrb[0].mxu0
        %3609 = vdwg.mxu0
        %s3610 = scalar_lea.vmem %s15, 136
        %v3611 = vld [vmem:[%s3610] sm:$0xf]
        %v3612 = vld [vmem:[%s3610 + $0x4] sm:$0xf]
        %v3613 = vld [vmem:[%s3610 + $0x8] sm:$0xf]
        %v3614 = vld [vmem:[%s3610 + $0xc] sm:$0xf]
        %v3615 = vld [vmem:[%s3610 + $0x10] sm:$0xf]
        %v3616 = vld [vmem:[%s3610 + $0x14] sm:$0xf]
        %v3617 = vld [vmem:[%s3610 + $0x18] sm:$0xf]
        %v3618 = vld [vmem:[%s3610 + $0x1c] sm:$0xf]
        %v3619 = vld [vmem:[%s3610 + $0x20] sm:$0xf]
        %v3620 = vld [vmem:[%s3610 + $0x24] sm:$0xf]
        %v3621 = vld [vmem:[%s3610 + $0x28] sm:$0xf]
        %v3622 = vld [vmem:[%s3610 + $0x2c] sm:$0xf]
        %v3623 = vld [vmem:[%s3610 + $0x30] sm:$0xf]
        %v3624 = vld [vmem:[%s3610 + $0x34] sm:$0xf]
        %v3625 = vld [vmem:[%s3610 + $0x38] sm:$0xf]
        %v3626 = vld [vmem:[%s3610 + $0x3c] sm:$0xf]
        %v3627 = vld [vmem:[%s3610 + $0x40] sm:$0xf]
        %v3632 = vrot.slane %v3341, 3
        %v3633 = vrot.slane %v3360, 3
        %v3634 = vsel %vm2248, %v3632, %v3633
        %v3635 = vrot.slane %v3342, 3
        %v3636 = vrot.slane %v3361, 3
        %v3637 = vsel %vm2248, %v3635, %v3636
        %v3656 = vunpack.c.l.b16 %v3611
        %v3657 = vunpack.c.l.b16 %v3612
        %v3658 = vunpack.c.l.b16 %v3613
        %v3659 = vunpack.c.l.b16 %v3614
        %v3660 = vunpack.c.l.b16 %v3615
        %v3661 = vunpack.c.l.b16 %v3616
        %v3662 = vunpack.c.l.b16 %v3617
        %v3663 = vunpack.c.l.b16 %v3618
        %v3664 = vunpack.c.l.b16 %v3619
        %v3665 = vunpack.c.l.b16 %v3620
        %v3666 = vunpack.c.l.b16 %v3621
        %v3667 = vunpack.c.l.b16 %v3622
        %v3668 = vunpack.c.l.b16 %v3623
        %v3669 = vunpack.c.l.b16 %v3624
        %v3670 = vunpack.c.l.b16 %v3625
        %v3671 = vunpack.c.l.b16 %v3626
        %v3672 = vunpack.c.l.b16 %v3627
        %v3673 = vpack.c.b16 %v3657, %v3656
        %v3674 = vpack.c.b16 %v3659, %v3658
        %v3675 = vpack.c.b16 %v3661, %v3660
        %v3676 = vpack.c.b16 %v3663, %v3662
        %v3677 = vpack.c.b16 %v3665, %v3664
        %v3678 = vpack.c.b16 %v3667, %v3666
        %v3679 = vpack.c.b16 %v3669, %v3668
        %v3680 = vpack.c.b16 %v3671, %v3670
        %v3681 = vpack.c.b16 %v3672, %v3672
        %v3691 = vsel %vm693, %v3637, 0
        %v3694 = vsel %vm1250, %v3681, 0
        %3696 = vmatprep.subr.bf16.mxu0 0
        %3697 = vmatpush1.bf16.msra.mxu0 %v3673
        %3698 = vmatprep.subr.bf16.mxu0 0
        %3699 = vmatpush1.bf16.msra.mxu0 %v3674
        %3700 = vmatprep.subr.bf16.mxu0 0
        %3701 = vmatpush1.bf16.msra.mxu0 %v3675
        %3702 = vmatprep.subr.bf16.mxu0 0
        %3703 = vmatpush1.bf16.msra.mxu0 %v3676
        %3704 = vmatprep.subr.bf16.mxu0 0
        %3705 = vmatpush1.bf16.msra.mxu0 %v3677
        %3706 = vmatprep.subr.bf16.mxu0 0
        %3707 = vmatpush1.bf16.msra.mxu0 %v3678
        %3708 = vmatprep.subr.bf16.mxu0 0
        %3709 = vmatpush1.bf16.msra.mxu0 %v3679
        %3710 = vmatprep.subr.bf16.mxu0 0
        %3711 = vmatpush1.bf16.msra.mxu0 %v3680
        %3712 = vmatprep.subr.bf16.mxu0 0
        %3713 = vmatpush1.bf16.msra.mxu0 %v3694
        %3714 = vmatprep.subr.bf16.mxu0 0
        %3715 = vmatpush1.bf16.msra.mxu0 0
        %3716 = vmatprep.subr.bf16.mxu0 0
        %3717 = vmatpush1.bf16.msra.mxu0 0
        %3718 = vmatprep.subr.bf16.mxu0 0
        %3719 = vmatpush1.bf16.msra.mxu0 0
        %3720 = vmatprep.subr.bf16.mxu0 0
        %3721 = vmatpush1.bf16.msra.mxu0 0
        %3722 = vmatprep.subr.bf16.mxu0 0
        %3723 = vmatpush1.bf16.msra.mxu0 0
        %3724 = vmatprep.subr.bf16.mxu0 0
        %3725 = vmatpush1.bf16.msra.mxu0 0
        %3726 = vmatprep.subr.bf16.mxu0 0
        %3727 = vmatpush1.bf16.msra.mxu0 0
        %3728 = vmatprep.mubr.bf16.mxu0 %v3691
        %3729 = vmatmul.mubr.bf16.gmra.mrb[0].mxu0 %v3634
        %v3730 = vpop.f32.mrb[0].mxu0
        %v3731 = vadd.f32 0.0, %v3730
        %v3732 = vpop.f32.mrb[0].mxu0
        %v3733 = vpop.f32.mrb[0].mxu0
        %v3734 = vadd.f32 0.0, %v3733
        %v3735 = vpop.f32.mrb[0].mxu0
        %3736 = vdwg.mxu0
        %v3737 = vadd.f32 %v3604, %v3731
        %v3738 = vadd.f32 %v3607, %v3734
        %v3739 = vpack.c.bf16 %v3330, %v3337
        %v3740 = vpack.c.bf16 %v3331, %v3338
        %v3741 = vpack.c.bf16 %v3339, %v3339
        %v3742 = vpack.c.bf16 %v3340, %v3340
        %s3743 = scalar_lea.vmem %s15, 204
        %v3744 = vld [vmem:[%s3743] sm:$0xf]
        %v3745 = vld [vmem:[%s3743 + $0x4] sm:$0xf]
        %v3746 = vld [vmem:[%s3743 + $0x8] sm:$0xf]
        %v3747 = vld [vmem:[%s3743 + $0xc] sm:$0xf]
        %v3748 = vld [vmem:[%s3743 + $0x10] sm:$0xf]
        %v3749 = vld [vmem:[%s3743 + $0x14] sm:$0xf]
        %v3750 = vld [vmem:[%s3743 + $0x18] sm:$0xf]
        %v3751 = vld [vmem:[%s3743 + $0x1c] sm:$0xf]
        %v3752 = vld [vmem:[%s3743 + $0x20] sm:$0xf]
        %v3753 = vld [vmem:[%s3743 + $0x24] sm:$0xf]
        %v3754 = vld [vmem:[%s3743 + $0x28] sm:$0xf]
        %v3755 = vld [vmem:[%s3743 + $0x2c] sm:$0xf]
        %v3756 = vld [vmem:[%s3743 + $0x30] sm:$0xf]
        %v3757 = vld [vmem:[%s3743 + $0x34] sm:$0xf]
        %v3758 = vld [vmem:[%s3743 + $0x38] sm:$0xf]
        %v3759 = vld [vmem:[%s3743 + $0x3c] sm:$0xf]
        %v3760 = vld [vmem:[%s3743 + $0x40] sm:$0xf]
        %v3762 = vshrl.u32 %v3739, 16
        %v3764 = vshll.u32 %v3739, 16
        %v3766 = vrot.slane %v3764, 1
        %v3767 = vor.u32 %v3762, %v3766
        %v3769 = vshll.u32 %v3741, 16
        %v3771 = vrot.slane %v3769, 1
        %v3772 = vsel %vm760, %v3767, %v3771
        %v3774 = vshrl.u32 %v3740, 16
        %v3776 = vshll.u32 %v3740, 16
        %v3778 = vrot.slane %v3776, 1
        %v3779 = vor.u32 %v3774, %v3778
        %v3781 = vshll.u32 %v3742, 16
        %v3783 = vrot.slane %v3781, 1
        %v3784 = vsel %vm760, %v3779, %v3783
        %v3803 = vunpack.c.l.b16 %v3744
        %v3804 = vunpack.c.l.b16 %v3745
        %v3805 = vunpack.c.l.b16 %v3746
        %v3806 = vunpack.c.l.b16 %v3747
        %v3807 = vunpack.c.l.b16 %v3748
        %v3808 = vunpack.c.l.b16 %v3749
        %v3809 = vunpack.c.l.b16 %v3750
        %v3810 = vunpack.c.l.b16 %v3751
        %v3811 = vunpack.c.l.b16 %v3752
        %v3812 = vunpack.c.l.b16 %v3753
        %v3813 = vunpack.c.l.b16 %v3754
        %v3814 = vunpack.c.l.b16 %v3755
        %v3815 = vunpack.c.l.b16 %v3756
        %v3816 = vunpack.c.l.b16 %v3757
        %v3817 = vunpack.c.l.b16 %v3758
        %v3818 = vunpack.c.l.b16 %v3759
        %v3819 = vunpack.c.l.b16 %v3760
        %v3820 = vpack.c.b16 %v3804, %v3803
        %v3821 = vpack.c.b16 %v3806, %v3805
        %v3822 = vpack.c.b16 %v3808, %v3807
        %v3823 = vpack.c.b16 %v3810, %v3809
        %v3824 = vpack.c.b16 %v3812, %v3811
        %v3825 = vpack.c.b16 %v3814, %v3813
        %v3826 = vpack.c.b16 %v3816, %v3815
        %v3827 = vpack.c.b16 %v3818, %v3817
        %v3828 = vpack.c.b16 %v3819, %v3819
        %v3838 = vsel %vm693, %v3784, 0
        %v3841 = vsel %vm1250, %v3828, 0
        %3843 = vmatprep.subr.bf16.mxu0 0
        %3844 = vmatpush1.bf16.msra.mxu0 %v3820
        %3845 = vmatprep.subr.bf16.mxu0 0
        %3846 = vmatpush1.bf16.msra.mxu0 %v3821
        %3847 = vmatprep.subr.bf16.mxu0 0
        %3848 = vmatpush1.bf16.msra.mxu0 %v3822
        %3849 = vmatprep.subr.bf16.mxu0 0
        %3850 = vmatpush1.bf16.msra.mxu0 %v3823
        %3851 = vmatprep.subr.bf16.mxu0 0
        %3852 = vmatpush1.bf16.msra.mxu0 %v3824
        %3853 = vmatprep.subr.bf16.mxu0 0
        %3854 = vmatpush1.bf16.msra.mxu0 %v3825
        %3855 = vmatprep.subr.bf16.mxu0 0
        %3856 = vmatpush1.bf16.msra.mxu0 %v3826
        %3857 = vmatprep.subr.bf16.mxu0 0
        %3858 = vmatpush1.bf16.msra.mxu0 %v3827
        %3859 = vmatprep.subr.bf16.mxu0 0
        %3860 = vmatpush1.bf16.msra.mxu0 %v3841
        %3861 = vmatprep.subr.bf16.mxu0 0
        %3862 = vmatpush1.bf16.msra.mxu0 0
        %3863 = vmatprep.subr.bf16.mxu0 0
        %3864 = vmatpush1.bf16.msra.mxu0 0
        %3865 = vmatprep.subr.bf16.mxu0 0
        %3866 = vmatpush1.bf16.msra.mxu0 0
        %3867 = vmatprep.subr.bf16.mxu0 0
        %3868 = vmatpush1.bf16.msra.mxu0 0
        %3869 = vmatprep.subr.bf16.mxu0 0
        %3870 = vmatpush1.bf16.msra.mxu0 0
        %3871 = vmatprep.subr.bf16.mxu0 0
        %3872 = vmatpush1.bf16.msra.mxu0 0
        %3873 = vmatprep.subr.bf16.mxu0 0
        %3874 = vmatpush1.bf16.msra.mxu0 0
        %3875 = vmatprep.mubr.bf16.mxu0 %v3838
        %3876 = vmatmul.mubr.bf16.gmra.mrb[0].mxu0 %v3772
        %v3877 = vpop.f32.mrb[0].mxu0
        %v3878 = vadd.f32 0.0, %v3877
        %v3879 = vpop.f32.mrb[0].mxu0
        %v3880 = vpop.f32.mrb[0].mxu0
        %v3881 = vadd.f32 0.0, %v3880
        %v3882 = vpop.f32.mrb[0].mxu0
        %3883 = vdwg.mxu0
        %v3884 = vadd.f32 %v3737, %v3878
        %v3885 = vadd.f32 %v3738, %v3881
        %s3886 = scalar_lea.vmem %s15, 272
        %v3887 = vld [vmem:[%s3886] sm:$0xf]
        %v3888 = vld [vmem:[%s3886 + $0x4] sm:$0xf]
        %v3889 = vld [vmem:[%s3886 + $0x8] sm:$0xf]
        %v3890 = vld [vmem:[%s3886 + $0xc] sm:$0xf]
        %v3891 = vld [vmem:[%s3886 + $0x10] sm:$0xf]
        %v3892 = vld [vmem:[%s3886 + $0x14] sm:$0xf]
        %v3893 = vld [vmem:[%s3886 + $0x18] sm:$0xf]
        %v3894 = vld [vmem:[%s3886 + $0x1c] sm:$0xf]
        %v3895 = vld [vmem:[%s3886 + $0x20] sm:$0xf]
        %v3896 = vld [vmem:[%s3886 + $0x24] sm:$0xf]
        %v3897 = vld [vmem:[%s3886 + $0x28] sm:$0xf]
        %v3898 = vld [vmem:[%s3886 + $0x2c] sm:$0xf]
        %v3899 = vld [vmem:[%s3886 + $0x30] sm:$0xf]
        %v3900 = vld [vmem:[%s3886 + $0x34] sm:$0xf]
        %v3901 = vld [vmem:[%s3886 + $0x38] sm:$0xf]
        %v3902 = vld [vmem:[%s3886 + $0x3c] sm:$0xf]
        %v3903 = vld [vmem:[%s3886 + $0x40] sm:$0xf]
        %v3908 = vrot.slane %v3739, 2
        %v3909 = vrot.slane %v3741, 2
        %v3910 = vsel %vm1392, %v3908, %v3909
        %v3911 = vrot.slane %v3740, 2
        %v3912 = vrot.slane %v3742, 2
        %v3913 = vsel %vm1392, %v3911, %v3912
        %v3932 = vunpack.c.l.b16 %v3887
        %v3933 = vunpack.c.l.b16 %v3888
        %v3934 = vunpack.c.l.b16 %v3889
        %v3935 = vunpack.c.l.b16 %v3890
        %v3936 = vunpack.c.l.b16 %v3891
        %v3937 = vunpack.c.l.b16 %v3892
        %v3938 = vunpack.c.l.b16 %v3893
        %v3939 = vunpack.c.l.b16 %v3894
        %v3940 = vunpack.c.l.b16 %v3895
        %v3941 = vunpack.c.l.b16 %v3896
        %v3942 = vunpack.c.l.b16 %v3897
        %v3943 = vunpack.c.l.b16 %v3898
        %v3944 = vunpack.c.l.b16 %v3899
        %v3945 = vunpack.c.l.b16 %v3900
        %v3946 = vunpack.c.l.b16 %v3901
        %v3947 = vunpack.c.l.b16 %v3902
        %v3948 = vunpack.c.l.b16 %v3903
        %v3949 = vpack.c.b16 %v3933, %v3932
        %v3950 = vpack.c.b16 %v3935, %v3934
        %v3951 = vpack.c.b16 %v3937, %v3936
        %v3952 = vpack.c.b16 %v3939, %v3938
        %v3953 = vpack.c.b16 %v3941, %v3940
        %v3954 = vpack.c.b16 %v3943, %v3942
        %v3955 = vpack.c.b16 %v3945, %v3944
        %v3956 = vpack.c.b16 %v3947, %v3946
        %v3957 = vpack.c.b16 %v3948, %v3948
        %v3967 = vsel %vm693, %v3913, 0
        %v3970 = vsel %vm1250, %v3957, 0
        %3972 = vmatprep.subr.bf16.mxu0 0
        %3973 = vmatpush1.bf16.msra.mxu0 %v3949
        %3974 = vmatprep.subr.bf16.mxu0 0
        %3975 = vmatpush1.bf16.msra.mxu0 %v3950
        %3976 = vmatprep.subr.bf16.mxu0 0
        %3977 = vmatpush1.bf16.msra.mxu0 %v3951
        %3978 = vmatprep.subr.bf16.mxu0 0
        %3979 = vmatpush1.bf16.msra.mxu0 %v3952
        %3980 = vmatprep.subr.bf16.mxu0 0
        %3981 = vmatpush1.bf16.msra.mxu0 %v3953
        %3982 = vmatprep.subr.bf16.mxu0 0
        %3983 = vmatpush1.bf16.msra.mxu0 %v3954
        %3984 = vmatprep.subr.bf16.mxu0 0
        %3985 = vmatpush1.bf16.msra.mxu0 %v3955
        %3986 = vmatprep.subr.bf16.mxu0 0
        %3987 = vmatpush1.bf16.msra.mxu0 %v3956
        %3988 = vmatprep.subr.bf16.mxu0 0
        %3989 = vmatpush1.bf16.msra.mxu0 %v3970
        %3990 = vmatprep.subr.bf16.mxu0 0
        %3991 = vmatpush1.bf16.msra.mxu0 0
        %3992 = vmatprep.subr.bf16.mxu0 0
        %3993 = vmatpush1.bf16.msra.mxu0 0
        %3994 = vmatprep.subr.bf16.mxu0 0
        %3995 = vmatpush1.bf16.msra.mxu0 0
        %3996 = vmatprep.subr.bf16.mxu0 0
        %3997 = vmatpush1.bf16.msra.mxu0 0
        %3998 = vmatprep.subr.bf16.mxu0 0
        %3999 = vmatpush1.bf16.msra.mxu0 0
        %4000 = vmatprep.subr.bf16.mxu0 0
        %4001 = vmatpush1.bf16.msra.mxu0 0
        %4002 = vmatprep.subr.bf16.mxu0 0
        %4003 = vmatpush1.bf16.msra.mxu0 0
        %4004 = vmatprep.mubr.bf16.mxu0 %v3967
        %4005 = vmatmul.mubr.bf16.gmra.mrb[0].mxu0 %v3910
        %v4006 = vpop.f32.mrb[0].mxu0
        %v4007 = vadd.f32 0.0, %v4006
        %v4008 = vpop.f32.mrb[0].mxu0
        %v4009 = vpop.f32.mrb[0].mxu0
        %v4010 = vadd.f32 0.0, %v4009
        %v4011 = vpop.f32.mrb[0].mxu0
        %4012 = vdwg.mxu0
        %v4013 = vadd.f32 %v3884, %v4007
        %v4014 = vadd.f32 %v3885, %v4010
        %s4015 = scalar_lea.vmem %s15, 340
        %v4016 = vld [vmem:[%s4015] sm:$0xf]
        %v4017 = vld [vmem:[%s4015 + $0x4] sm:$0xf]
        %v4018 = vld [vmem:[%s4015 + $0x8] sm:$0xf]
        %v4019 = vld [vmem:[%s4015 + $0xc] sm:$0xf]
        %v4020 = vld [vmem:[%s4015 + $0x10] sm:$0xf]
        %v4021 = vld [vmem:[%s4015 + $0x14] sm:$0xf]
        %v4022 = vld [vmem:[%s4015 + $0x18] sm:$0xf]
        %v4023 = vld [vmem:[%s4015 + $0x1c] sm:$0xf]
        %v4024 = vld [vmem:[%s4015 + $0x20] sm:$0xf]
        %v4025 = vld [vmem:[%s4015 + $0x24] sm:$0xf]
        %v4026 = vld [vmem:[%s4015 + $0x28] sm:$0xf]
        %v4027 = vld [vmem:[%s4015 + $0x2c] sm:$0xf]
        %v4028 = vld [vmem:[%s4015 + $0x30] sm:$0xf]
        %v4029 = vld [vmem:[%s4015 + $0x34] sm:$0xf]
        %v4030 = vld [vmem:[%s4015 + $0x38] sm:$0xf]
        %v4031 = vld [vmem:[%s4015 + $0x3c] sm:$0xf]
        %v4032 = vld [vmem:[%s4015 + $0x40] sm:$0xf]
        %vm4033 = vsmask.f32 4352
        %v4034 = vrot.slane %v3762, 3
        %v4035 = vrot.slane %v3764, 4
        %v4036 = vor.u32 %v4034, %v4035
        %v4037 = vshrl.u32 %v3741, 16
        %v4039 = vrot.slane %v4037, 3
        %v4040 = vrot.slane %v3769, 4
        %v4041 = vor.u32 %v4039, %v4040
        %v4042 = vsel %vm4033, %v4036, %v4041
        %v4043 = vrot.slane %v3774, 3
        %v4044 = vrot.slane %v3776, 4
        %v4045 = vor.u32 %v4043, %v4044
        %v4046 = vshrl.u32 %v3742, 16
        %v4048 = vrot.slane %v4046, 3
        %v4049 = vrot.slane %v3781, 4
        %v4050 = vor.u32 %v4048, %v4049
        %v4051 = vsel %vm4033, %v4045, %v4050
        %v4070 = vunpack.c.l.b16 %v4016
        %v4071 = vunpack.c.l.b16 %v4017
        %v4072 = vunpack.c.l.b16 %v4018
        %v4073 = vunpack.c.l.b16 %v4019
        %v4074 = vunpack.c.l.b16 %v4020
        %v4075 = vunpack.c.l.b16 %v4021
        %v4076 = vunpack.c.l.b16 %v4022
        %v4077 = vunpack.c.l.b16 %v4023
        %v4078 = vunpack.c.l.b16 %v4024
        %v4079 = vunpack.c.l.b16 %v4025
        %v4080 = vunpack.c.l.b16 %v4026
        %v4081 = vunpack.c.l.b16 %v4027
        %v4082 = vunpack.c.l.b16 %v4028
        %v4083 = vunpack.c.l.b16 %v4029
        %v4084 = vunpack.c.l.b16 %v4030
        %v4085 = vunpack.c.l.b16 %v4031
        %v4086 = vunpack.c.l.b16 %v4032
        %v4087 = vpack.c.b16 %v4071, %v4070
        %v4088 = vpack.c.b16 %v4073, %v4072
        %v4089 = vpack.c.b16 %v4075, %v4074
        %v4090 = vpack.c.b16 %v4077, %v4076
        %v4091 = vpack.c.b16 %v4079, %v4078
        %v4092 = vpack.c.b16 %v4081, %v4080
        %v4093 = vpack.c.b16 %v4083, %v4082
        %v4094 = vpack.c.b16 %v4085, %v4084
        %v4095 = vpack.c.b16 %v4086, %v4086
        %v4105 = vsel %vm693, %v4051, 0
        %v4108 = vsel %vm1250, %v4095, 0
        %4110 = vmatprep.subr.bf16.mxu0 0
        %4111 = vmatpush1.bf16.msra.mxu0 %v4087
        %4112 = vmatprep.subr.bf16.mxu0 0
        %4113 = vmatpush1.bf16.msra.mxu0 %v4088
        %4114 = vmatprep.subr.bf16.mxu0 0
        %4115 = vmatpush1.bf16.msra.mxu0 %v4089
        %4116 = vmatprep.subr.bf16.mxu0 0
        %4117 = vmatpush1.bf16.msra.mxu0 %v4090
        %4118 = vmatprep.subr.bf16.mxu0 0
        %4119 = vmatpush1.bf16.msra.mxu0 %v4091
        %4120 = vmatprep.subr.bf16.mxu0 0
        %4121 = vmatpush1.bf16.msra.mxu0 %v4092
        %4122 = vmatprep.subr.bf16.mxu0 0
        %4123 = vmatpush1.bf16.msra.mxu0 %v4093
        %4124 = vmatprep.subr.bf16.mxu0 0
        %4125 = vmatpush1.bf16.msra.mxu0 %v4094
        %4126 = vmatprep.subr.bf16.mxu0 0
        %4127 = vmatpush1.bf16.msra.mxu0 %v4108
        %4128 = vmatprep.subr.bf16.mxu0 0
        %4129 = vmatpush1.bf16.msra.mxu0 0
        %4130 = vmatprep.subr.bf16.mxu0 0
        %4131 = vmatpush1.bf16.msra.mxu0 0
        %4132 = vmatprep.subr.bf16.mxu0 0
        %4133 = vmatpush1.bf16.msra.mxu0 0
        %4134 = vmatprep.subr.bf16.mxu0 0
        %4135 = vmatpush1.bf16.msra.mxu0 0
        %4136 = vmatprep.subr.bf16.mxu0 0
        %4137 = vmatpush1.bf16.msra.mxu0 0
        %4138 = vmatprep.subr.bf16.mxu0 0
        %4139 = vmatpush1.bf16.msra.mxu0 0
        %4140 = vmatprep.subr.bf16.mxu0 0
        %4141 = vmatpush1.bf16.msra.mxu0 0
        %4142 = vmatprep.mubr.bf16.mxu0 %v4105
        %4143 = vmatmul.mubr.bf16.gmra.mrb[0].mxu0 %v4042
        %v4144 = vpop.f32.mrb[0].mxu0
        %v4145 = vadd.f32 0.0, %v4144
        %v4146 = vpop.f32.mrb[0].mxu0
        %v4147 = vpop.f32.mrb[0].mxu0
        %v4148 = vadd.f32 0.0, %v4147
        %v4149 = vpop.f32.mrb[0].mxu0
        %4150 = vdwg.mxu0
        %v4151 = vadd.f32 %v4013, %v4145
        %v4152 = vadd.f32 %v4014, %v4148
        %v4153 = vpack.c.bf16 %v3339, %v3330
        %v4154 = vpack.c.bf16 %v3340, %v3331
        %s4155 = scalar_lea.vmem %s15, 408
        %v4156 = vld [vmem:[%s4155] sm:$0xf]
        %v4157 = vld [vmem:[%s4155 + $0x4] sm:$0xf]
        %v4158 = vld [vmem:[%s4155 + $0x8] sm:$0xf]
        %v4159 = vld [vmem:[%s4155 + $0xc] sm:$0xf]
        %v4160 = vld [vmem:[%s4155 + $0x10] sm:$0xf]
        %v4161 = vld [vmem:[%s4155 + $0x14] sm:$0xf]
        %v4162 = vld [vmem:[%s4155 + $0x18] sm:$0xf]
        %v4163 = vld [vmem:[%s4155 + $0x1c] sm:$0xf]
        %v4164 = vld [vmem:[%s4155 + $0x20] sm:$0xf]
        %v4165 = vld [vmem:[%s4155 + $0x24] sm:$0xf]
        %v4166 = vld [vmem:[%s4155 + $0x28] sm:$0xf]
        %v4167 = vld [vmem:[%s4155 + $0x2c] sm:$0xf]
        %v4168 = vld [vmem:[%s4155 + $0x30] sm:$0xf]
        %v4169 = vld [vmem:[%s4155 + $0x34] sm:$0xf]
        %v4170 = vld [vmem:[%s4155 + $0x38] sm:$0xf]
        %v4171 = vld [vmem:[%s4155 + $0x3c] sm:$0xf]
        %v4172 = vld [vmem:[%s4155 + $0x40] sm:$0xf]
        %v4175 = vrot.slane %v4153, 1
        %v4176 = vrot.slane %v2341, 1
        %v4177 = vsel %vm1005, %v4175, %v4176
        %v4178 = vrot.slane %v4154, 1
        %v4179 = vsel %vm1005, %v4178, %v4176
        %v4198 = vunpack.c.l.b16 %v4156
        %v4199 = vunpack.c.l.b16 %v4157
        %v4200 = vunpack.c.l.b16 %v4158
        %v4201 = vunpack.c.l.b16 %v4159
        %v4202 = vunpack.c.l.b16 %v4160
        %v4203 = vunpack.c.l.b16 %v4161
        %v4204 = vunpack.c.l.b16 %v4162
        %v4205 = vunpack.c.l.b16 %v4163
        %v4206 = vunpack.c.l.b16 %v4164
        %v4207 = vunpack.c.l.b16 %v4165
        %v4208 = vunpack.c.l.b16 %v4166
        %v4209 = vunpack.c.l.b16 %v4167
        %v4210 = vunpack.c.l.b16 %v4168
        %v4211 = vunpack.c.l.b16 %v4169
        %v4212 = vunpack.c.l.b16 %v4170
        %v4213 = vunpack.c.l.b16 %v4171
        %v4214 = vunpack.c.l.b16 %v4172
        %v4215 = vpack.c.b16 %v4199, %v4198
        %v4216 = vpack.c.b16 %v4201, %v4200
        %v4217 = vpack.c.b16 %v4203, %v4202
        %v4218 = vpack.c.b16 %v4205, %v4204
        %v4219 = vpack.c.b16 %v4207, %v4206
        %v4220 = vpack.c.b16 %v4209, %v4208
        %v4221 = vpack.c.b16 %v4211, %v4210
        %v4222 = vpack.c.b16 %v4213, %v4212
        %v4223 = vpack.c.b16 %v4214, %v4214
        %v4233 = vsel %vm693, %v4179, 0
        %v4236 = vsel %vm1250, %v4223, 0
        %4238 = vmatprep.subr.bf16.mxu0 0
        %4239 = vmatpush1.bf16.msra.mxu0 %v4215
        %4240 = vmatprep.subr.bf16.mxu0 0
        %4241 = vmatpush1.bf16.msra.mxu0 %v4216
        %4242 = vmatprep.subr.bf16.mxu0 0
        %4243 = vmatpush1.bf16.msra.mxu0 %v4217
        %4244 = vmatprep.subr.bf16.mxu0 0
        %4245 = vmatpush1.bf16.msra.mxu0 %v4218
        %4246 = vmatprep.subr.bf16.mxu0 0
        %4247 = vmatpush1.bf16.msra.mxu0 %v4219
        %4248 = vmatprep.subr.bf16.mxu0 0
        %4249 = vmatpush1.bf16.msra.mxu0 %v4220
        %4250 = vmatprep.subr.bf16.mxu0 0
        %4251 = vmatpush1.bf16.msra.mxu0 %v4221
        %4252 = vmatprep.subr.bf16.mxu0 0
        %4253 = vmatpush1.bf16.msra.mxu0 %v4222
        %4254 = vmatprep.subr.bf16.mxu0 0
        %4255 = vmatpush1.bf16.msra.mxu0 %v4236
        %4256 = vmatprep.subr.bf16.mxu0 0
        %4257 = vmatpush1.bf16.msra.mxu0 0
        %4258 = vmatprep.subr.bf16.mxu0 0
        %4259 = vmatpush1.bf16.msra.mxu0 0
        %4260 = vmatprep.subr.bf16.mxu0 0
        %4261 = vmatpush1.bf16.msra.mxu0 0
        %4262 = vmatprep.subr.bf16.mxu0 0
        %4263 = vmatpush1.bf16.msra.mxu0 0
        %4264 = vmatprep.subr.bf16.mxu0 0
        %4265 = vmatpush1.bf16.msra.mxu0 0
        %4266 = vmatprep.subr.bf16.mxu0 0
        %4267 = vmatpush1.bf16.msra.mxu0 0
        %4268 = vmatprep.subr.bf16.mxu0 0
        %4269 = vmatpush1.bf16.msra.mxu0 0
        %4270 = vmatprep.mubr.bf16.mxu0 %v4233
        %4271 = vmatmul.mubr.bf16.gmra.mrb[0].mxu0 %v4177
        %v4272 = vpop.f32.mrb[0].mxu0
        %v4273 = vadd.f32 0.0, %v4272
        %v4274 = vpop.f32.mrb[0].mxu0
        %v4275 = vpop.f32.mrb[0].mxu0
        %v4276 = vadd.f32 0.0, %v4275
        %v4277 = vpop.f32.mrb[0].mxu0
        %4278 = vdwg.mxu0
        %v4279 = vadd.f32 %v4151, %v4273
        %v4280 = vadd.f32 %v4152, %v4276
        %v4281 = vld [vmem:[%s16] sm:$0x1]
        %v4283 = vlaneseq
        %v4284 = vshrl.u32 %v4283, 7
        %v4285 = vsub.s32 0, %v4284
        %v4286 = vrot.slane %v4281, %v4285
        %v4288 = vadd.f32 %v4279, %v4286
        %v4289 = vadd.f32 %v4280, %v4286
        %v4290 = vpack.c.bf16 %v4289, %v4288
        %v4291 = vld [vmem:[%s17] sm:$0xf]
        %v4292 = vld [vmem:[%s17 + $0x4] sm:$0xf]
        %v4293 = vld [vmem:[%s17 + $0x8] sm:$0xf]
        %v4294 = vld [vmem:[%s17 + $0xc] sm:$0xf]
        %v4295 = vld [vmem:[%s17 + $0x10] sm:$0xf]
        %v4296 = vld [vmem:[%s17 + $0x14] sm:$0xf]
        %v4297 = vld [vmem:[%s17 + $0x18] sm:$0xf]
        %v4298 = vld [vmem:[%s17 + $0x1c] sm:$0xf]
        %v4299 = vld [vmem:[%s18] sm:$0x1]
        %v4301 = vlaneseq
        %v4302 = vshrl.u32 %v4301, 7
        %v4303 = vsub.s32 0, %v4302
        %v4304 = vrot.slane %v4299, %v4303
        %v4314 = vunpack.c.l.b16 %v4291
        %v4315 = vunpack.c.l.b16 %v4292
        %v4316 = vunpack.c.l.b16 %v4293
        %v4317 = vunpack.c.l.b16 %v4294
        %v4318 = vunpack.c.l.b16 %v4295
        %v4319 = vunpack.c.l.b16 %v4296
        %v4320 = vunpack.c.l.b16 %v4297
        %v4321 = vunpack.c.l.b16 %v4298
        %v4322 = vpack.c.b16 %v4315, %v4314
        %v4323 = vpack.c.b16 %v4317, %v4316
        %v4324 = vpack.c.b16 %v4319, %v4318
        %v4325 = vpack.c.b16 %v4321, %v4320
        %v4331 = vsel %vm2614, %v4290, 0
        %4333 = vmatprep.subr.bf16.mxu0 0
        %4334 = vmatpush1.bf16.msra.mxu0 %v4322
        %4335 = vmatprep.subr.bf16.mxu0 0
        %4336 = vmatpush1.bf16.msra.mxu0 %v4323
        %4337 = vmatprep.subr.bf16.mxu0 0
        %4338 = vmatpush1.bf16.msra.mxu0 %v4324
        %4339 = vmatprep.subr.bf16.mxu0 0
        %4340 = vmatpush1.bf16.msra.mxu0 %v4325
        %4341 = vmatprep.subr.bf16.mxu0 0
        %4342 = vmatpush1.bf16.msra.mxu0 0
        %4343 = vmatprep.subr.bf16.mxu0 0
        %4344 = vmatpush1.bf16.msra.mxu0 0
        %4345 = vmatprep.subr.bf16.mxu0 0
        %4346 = vmatpush1.bf16.msra.mxu0 0
        %4347 = vmatprep.subr.bf16.mxu0 0
        %4348 = vmatpush1.bf16.msra.mxu0 0
        %4349 = vmatprep.subr.bf16.mxu0 0
        %4350 = vmatpush1.bf16.msra.mxu0 0
        %4351 = vmatprep.subr.bf16.mxu0 0
        %4352 = vmatpush1.bf16.msra.mxu0 0
        %4353 = vmatprep.subr.bf16.mxu0 0
        %4354 = vmatpush1.bf16.msra.mxu0 0
        %4355 = vmatprep.subr.bf16.mxu0 0
        %4356 = vmatpush1.bf16.msra.mxu0 0
        %4357 = vmatprep.subr.bf16.mxu0 0
        %4358 = vmatpush1.bf16.msra.mxu0 0
        %4359 = vmatprep.subr.bf16.mxu0 0
        %4360 = vmatpush1.bf16.msra.mxu0 0
        %4361 = vmatprep.subr.bf16.mxu0 0
        %4362 = vmatpush1.bf16.msra.mxu0 0
        %4363 = vmatprep.subr.bf16.mxu0 0
        %4364 = vmatpush1.bf16.msra.mxu0 0
        %4365 = vmatprep.mubr.bf16.mxu0 0
        %4366 = vmatmul.mubr.bf16.gmra.mrb[0].mxu0 %v4331
        %v4367 = vpop.f32.mrb[0].mxu0
        %v4368 = vadd.f32 %v4304, %v4367
        %v4369 = vpop.f32.mrb[0].mxu0
        %v4370 = vpop.f32.mrb[0].mxu0
        %v4371 = vadd.f32 %v4304, %v4370
        %v4372 = vpop.f32.mrb[0].mxu0
        %4373 = vdwg.mxu0
        %v4374 = vmul.f32 %v4368, %v1143
        %v4375 = vmul.f32 %v4371, %v1144
        %4378 = vrot.lane.b32.xlu0 %v4374, 64
        %v4379 = vpop.permute.xlu0 %4378
        %4380 = vrot.lane.b32.xlu0 %v4375, 64
        %v4381 = vpop.permute.xlu0 %4380
        %v4384 = vsel %vm2614, %v2659, %v4379
        %v4385 = vsel %vm2614, %v2660, %v4381
        %v4386 = vpack.c.bf16 %v1509, %v1508
        %v4387 = vpack.c.bf16 %v4385, %v4384
        %v4388 = vld [vmem:[%s19] sm:$0xf]
        %v4389 = vld [vmem:[%s19 + $0x4] sm:$0xf]
        %v4390 = vld [vmem:[%s19 + $0x8] sm:$0xf]
        %v4391 = vld [vmem:[%s19 + $0xc] sm:$0xf]
        %v4392 = vld [vmem:[%s19 + $0x10] sm:$0xf]
        %v4393 = vld [vmem:[%s19 + $0x14] sm:$0xf]
        %v4394 = vld [vmem:[%s19 + $0x18] sm:$0xf]
        %v4395 = vld [vmem:[%s19 + $0x1c] sm:$0xf]
        %v4396 = vld [vmem:[%s19 + $0x20] sm:$0xf]
        %v4397 = vld [vmem:[%s19 + $0x24] sm:$0xf]
        %v4398 = vld [vmem:[%s19 + $0x28] sm:$0xf]
        %v4399 = vld [vmem:[%s19 + $0x2c] sm:$0xf]
        %v4400 = vld [vmem:[%s19 + $0x30] sm:$0xf]
        %v4401 = vld [vmem:[%s19 + $0x34] sm:$0xf]
        %v4402 = vld [vmem:[%s19 + $0x38] sm:$0xf]
        %v4403 = vld [vmem:[%s19 + $0x3c] sm:$0xf]
        %v4404 = vld [vmem:[%s19 + $0x40] sm:$0xf]
        %v4405 = vld [vmem:[%s19 + $0x44] sm:$0xf]
        %v4406 = vld [vmem:[%s19 + $0x48] sm:$0xf]
        %v4407 = vld [vmem:[%s19 + $0x4c] sm:$0xf]
        %v4408 = vld [vmem:[%s19 + $0x50] sm:$0xf]
        %v4409 = vld [vmem:[%s19 + $0x54] sm:$0xf]
        %v4410 = vld [vmem:[%s19 + $0x58] sm:$0xf]
        %v4411 = vld [vmem:[%s19 + $0x5c] sm:$0xf]
        %v4412 = vld [vmem:[%s19 + $0x60] sm:$0xf]
        %v4413 = vld [vmem:[%s19 + $0x64] sm:$0xf]
        %v4414 = vld [vmem:[%s19 + $0x68] sm:$0xf]
        %v4415 = vld [vmem:[%s19 + $0x6c] sm:$0xf]
        %v4416 = vld [vmem:[%s19 + $0x70] sm:$0xf]
        %v4417 = vld [vmem:[%s19 + $0x74] sm:$0xf]
        %v4418 = vld [vmem:[%s19 + $0x78] sm:$0xf]
        %v4419 = vld [vmem:[%s19 + $0x7c] sm:$0xf]
        %v4452 = vunpack.c.l.b16 %v4388
        %v4453 = vunpack.c.l.b16 %v4389
        %v4454 = vunpack.c.l.b16 %v4390
        %v4455 = vunpack.c.l.b16 %v4391
        %v4456 = vunpack.c.l.b16 %v4392
        %v4457 = vunpack.c.l.b16 %v4393
        %v4458 = vunpack.c.l.b16 %v4394
        %v4459 = vunpack.c.l.b16 %v4395
        %v4460 = vunpack.c.l.b16 %v4396
        %v4461 = vunpack.c.l.b16 %v4397
        %v4462 = vunpack.c.l.b16 %v4398
        %v4463 = vunpack.c.l.b16 %v4399
        %v4464 = vunpack.c.l.b16 %v4400
        %v4465 = vunpack.c.l.b16 %v4401
        %v4466 = vunpack.c.l.b16 %v4402
        %v4467 = vunpack.c.l.b16 %v4403
        %v4468 = vunpack.c.l.b16 %v4404
        %v4469 = vunpack.c.l.b16 %v4405
        %v4470 = vunpack.c.l.b16 %v4406
        %v4471 = vunpack.c.l.b16 %v4407
        %v4472 = vunpack.c.l.b16 %v4408
        %v4473 = vunpack.c.l.b16 %v4409
        %v4474 = vunpack.c.l.b16 %v4410
        %v4475 = vunpack.c.l.b16 %v4411
        %v4476 = vunpack.c.l.b16 %v4412
        %v4477 = vunpack.c.l.b16 %v4413
        %v4478 = vunpack.c.l.b16 %v4414
        %v4479 = vunpack.c.l.b16 %v4415
        %v4480 = vunpack.c.l.b16 %v4416
        %v4481 = vunpack.c.l.b16 %v4417
        %v4482 = vunpack.c.l.b16 %v4418
        %v4483 = vunpack.c.l.b16 %v4419
        %v4484 = vpack.c.b16 %v4453, %v4452
        %v4485 = vpack.c.b16 %v4455, %v4454
        %v4486 = vpack.c.b16 %v4457, %v4456
        %v4487 = vpack.c.b16 %v4459, %v4458
        %v4488 = vpack.c.b16 %v4461, %v4460
        %v4489 = vpack.c.b16 %v4463, %v4462
        %v4490 = vpack.c.b16 %v4465, %v4464
        %v4491 = vpack.c.b16 %v4467, %v4466
        %v4492 = vpack.c.b16 %v4469, %v4468
        %v4493 = vpack.c.b16 %v4471, %v4470
        %v4494 = vpack.c.b16 %v4473, %v4472
        %v4495 = vpack.c.b16 %v4475, %v4474
        %v4496 = vpack.c.b16 %v4477, %v4476
        %v4497 = vpack.c.b16 %v4479, %v4478
        %v4498 = vpack.c.b16 %v4481, %v4480
        %v4499 = vpack.c.b16 %v4483, %v4482
        %4516 = vmatprep.subr.bf16.mxu0 0
        %4517 = vmatpush1.bf16.msra.mxu0 %v4484
        %4518 = vmatprep.subr.bf16.mxu0 0
        %4519 = vmatpush1.bf16.msra.mxu0 %v4485
        %4520 = vmatprep.subr.bf16.mxu0 0
        %4521 = vmatpush1.bf16.msra.mxu0 %v4486
        %4522 = vmatprep.subr.bf16.mxu0 0
        %4523 = vmatpush1.bf16.msra.mxu0 %v4487
        %4524 = vmatprep.subr.bf16.mxu0 0
        %4525 = vmatpush1.bf16.msra.mxu0 %v4488
        %4526 = vmatprep.subr.bf16.mxu0 0
        %4527 = vmatpush1.bf16.msra.mxu0 %v4489
        %4528 = vmatprep.subr.bf16.mxu0 0
        %4529 = vmatpush1.bf16.msra.mxu0 %v4490
        %4530 = vmatprep.subr.bf16.mxu0 0
        %4531 = vmatpush1.bf16.msra.mxu0 %v4491
        %4532 = vmatprep.subr.bf16.mxu0 0
        %4533 = vmatpush1.bf16.msra.mxu0 %v4492
        %4534 = vmatprep.subr.bf16.mxu0 0
        %4535 = vmatpush1.bf16.msra.mxu0 %v4493
        %4536 = vmatprep.subr.bf16.mxu0 0
        %4537 = vmatpush1.bf16.msra.mxu0 %v4494
        %4538 = vmatprep.subr.bf16.mxu0 0
        %4539 = vmatpush1.bf16.msra.mxu0 %v4495
        %4540 = vmatprep.subr.bf16.mxu0 0
        %4541 = vmatpush1.bf16.msra.mxu0 %v4496
        %4542 = vmatprep.subr.bf16.mxu0 0
        %4543 = vmatpush1.bf16.msra.mxu0 %v4497
        %4544 = vmatprep.subr.bf16.mxu0 0
        %4545 = vmatpush1.bf16.msra.mxu0 %v4498
        %4546 = vmatprep.subr.bf16.mxu0 0
        %4547 = vmatpush1.bf16.msra.mxu0 %v4499
        %4548 = vmatprep.mubr.bf16.mxu0 %v4387
        %4549 = vmatmul.mubr.bf16.gmra.mrb[0].mxu0 %v4386
        %v4550 = vpop.f32.mrb[0].mxu0
        %v4551 = vadd.f32 0.0, %v4550
        %v4552 = vpop.f32.mrb[0].mxu0
        %v4553 = vpop.f32.mrb[0].mxu0
        %v4554 = vadd.f32 0.0, %v4553
        %v4555 = vpop.f32.mrb[0].mxu0
        %4556 = vdwg.mxu0
        %v4557 = vld [vmem:[%s20] sm:$0x1]
        %v4559 = vlaneseq
        %v4560 = vshrl.u32 %v4559, 7
        %v4561 = vsub.s32 0, %v4560
        %v4562 = vrot.slane %v4557, %v4561
        %v4564 = vmul.f32 %v4551, %v4562
        %v4565 = vmul.f32 %v4554, %v4562
        %v4566 = vld [vmem:[%s21] sm:$0x1]
        %v4568 = vlaneseq
        %v4569 = vshrl.u32 %v4568, 7
        %v4570 = vsub.s32 0, %v4569
        %v4571 = vrot.slane %v4566, %v4570
        %v4573 = vadd.f32 %v4564, %v4571
        %v4574 = vadd.f32 %v4565, %v4571
        %v4575 = vxor.u32 %v4573, 2147483648
        %v4576 = vxor.u32 %v4574, 2147483648
        %v4577 = vmul.f32 %v4575, 1.442695
        %v4578 = vpow.pop %v4577
        %v4579 = vmul.f32 %v4576, 1.442695
        %v4580 = vpow.pop %v4579
        %v4581 = vadd.f32 %v4578, 1.0
        %v4582 = vadd.f32 %v4580, 1.0
        %v4583 = vrcp.pop %v4581
        %v4584 = vmul.f32 1.0, %v4583
        %v4585 = vrcp.pop %v4582
        %v4586 = vmul.f32 1.0, %v4585
        %v4587 = vmul.f32 %v4573, %v4584
        %v4588 = vmul.f32 %v4574, %v4586
        %v4589 = vadd.f32 %v4587, %v683
        %v4590 = vadd.f32 %v4588, %v684
        %4591 = vst [vmem:[%s676] sm:$0xff] %v4589
        %4592 = vst [vmem:[%s676 + $0x8] sm:$0xff] %v4590
        %s4593 = sand.u32 %s511, 1
        %s4594 = scalar_lea.sflag [#allocation3], %s4593
        %s4595 = sand.u32 %s511, 1
        %s4596 = smul.addr %s4595, 16
        %s4597 = scalar_lea.vmem [#allocation2], %s4596
        // Predicated region
        $region109: #{tpu_custom_call.1} parent=107 // pred_check
          %p4598 = pneg %p521
        $region110: #{tpu_custom_call.1} parent=107 // pred_check_branch
          %4600 = sbr.rel (%p4598) target = $region112
        $region111: #{tpu_custom_call.1} parent=107 // pred_region
          %s4602 = ssub.s32 256, 256
          %4603 = vsyncadd %s4594, %s4602
          %s4604 = smul.addr %s36, 2
          %s4605 = smul.addr %s4604, 128
          %s4606 = scalar_lea.hbm %s22, %s4605
          %s4607 = sshll.u32 %s4597, 4
          %s4608 = int_to_ptr.vmem [resolvable:$true] %s4607
          %4613 = dma.vmem_to_hbm [thread:$0]  %s4608, 256, %s4606, %s4594, 128, 128, 8
        $region112: #{tpu_custom_call.1} parent=107 // pred_fallthru
          _
      $region108: #{tpu_custom_call.1} parent=5 // pred_fallthru
        _
      %p4614 = scmp.le.s32.totalorder 2, %s31
      // Predicated region
      $region113: #{tpu_custom_call.1} parent=5 // pred_check
        %p4615 = pneg %p4614
      $region114: #{tpu_custom_call.1} parent=5 // pred_check_branch
        %4617 = sbr.rel (%p4615) target = $region116
      $region115: #{tpu_custom_call.1} parent=5 // pred_region
        %s4618 = ssub.s32 %s31, 2
        // Predicated region
        $region117: #{tpu_custom_call.1} parent=115 // pred_check
          %p4619 = pneg %p527
        $region118: #{tpu_custom_call.1} parent=115 // pred_check_branch
          %4621 = sbr.rel (%p4619) target = $region120
        $region119: #{tpu_custom_call.1} parent=115 // pred_region
          %s4622 = sand.u32 %s512, 1
          %s4623 = scalar_lea.sflag [#allocation3], %s4622
          %s4624 = sand.u32 %s512, 1
          %s4625 = smul.addr %s4624, 16
          %s4626 = scalar_lea.vmem [#allocation2], %s4625
          %4627 = dma.done %s4623, 256
        $region120: #{tpu_custom_call.1} parent=115 // pred_fallthru
          _
      $region116: #{tpu_custom_call.1} parent=5 // pred_fallthru
        _
    $region6: #{tpu_custom_call.1} parent=1 // loop_footer
      %s35 = sadd.s32 1, %s31
    $region7: #{tpu_custom_call.1} parent=1 // loop_footer_branch
      %30 = sbr.rel target = $region3
    $region8: #{tpu_custom_call.1} parent=1 // loop_exit
      _
    %4628 = vsyncpa [#allocation3], 1
    %s4629 = scalar_lea.sflag [#allocation3], 1
    %4630 = vsyncpa %s4629, 1

</llo_original>
